<compile_context>
chip_gen: v6e
topology: v6e:2x2x1
jax: 0.10.0
libtpu: 0.0.40
codegen_flags: <defaults>
</compile_context>

<pallas_src>
import jax
import jax.numpy as jnp
import numpy as np
from jax.experimental import pallas as pl
from jax.experimental.pallas import tpu as pltpu

HIDDEN = 512            # CombinedModel hardcodes 512 / 1024
LANE = 128
SUBLANE = 8
MAX_BATCH_BLOCK = 64    # review: 64-128; 64 keeps the f32 conv intermediate
                        # (BB*HW x 128 lanes) at <= 8 MiB -> fits v7x 64 MiB VMEM


def _round_up(x, m):
    return (x + m - 1) // m * m


# ----------------------------------------------------------------------------
# Fused kernel: conv (one im2col matmul) + ReLU + GAP + fc / betti_fc +
# classifier.  One grid step handles BB images (BB*HW patch rows).
# ----------------------------------------------------------------------------
def fused_kernel(patches_ref, betti_ref, wconv_ref, bconv_ref,
                 wr_ref, br_ref, wb_ref, bb_ref,
                 wct_ref, wcb_ref, bc_ref, out_ref):
    Fp = wconv_ref.shape[1]
    BB = out_ref.shape[0]
    HW = patches_ref.shape[0] // BB

    # conv3x3 + bias + ReLU as a single MXU dot on the (already dot-shaped,
    # bf16) im2col patches; accumulate in f32.
    conv = jnp.dot(patches_ref[...], wconv_ref[...],
                   preferred_element_type=jnp.float32)        # [BB*HW, Fp] f32
    conv = jnp.maximum(conv + bconv_ref[...], 0.0)

    # global average pool: plain sum over HW (the 1/HW scale is folded into
    # the resnet.fc weight in the wrapper).
    pooled = jnp.sum(conv.reshape(BB, HW, Fp), axis=1)        # [BB, Fp] f32

    # resnet.fc and betti_fc as two dense half-width dots (no zero-padded
    # block-diagonal weights).
    rf = jnp.dot(pooled.astype(jnp.bfloat16), wr_ref[...],
                 preferred_element_type=jnp.float32) + br_ref[...]   # [BB,512]
    bf = jnp.dot(betti_ref[...], wb_ref[...],
                 preferred_element_type=jnp.float32) + bb_ref[...]   # [BB,512]

    # classifier on the (implicit) concat: cat@Wc == rf@Wc_top + bf@Wc_bot.
    out_ref[...] = (jnp.dot(rf.astype(jnp.bfloat16), wct_ref[...],
                            preferred_element_type=jnp.float32)
                    + jnp.dot(bf.astype(jnp.bfloat16), wcb_ref[...],
                              preferred_element_type=jnp.float32)
                    + bc_ref[...])


# ----------------------------------------------------------------------------
# Wrapper: im2col, padding only where it matters, weight prep, one pallas_call.
# ----------------------------------------------------------------------------
def combined_model_forward(image_nhwc, betti, params):
    B, H, W, C = image_nhwc.shape
    KH, KW, _, F = params["conv_w"].shape
    BETTI = betti.shape[1]
    NC = params["wc"].shape[1]
    HW = H * W

    # Batch block: adaptive up to 64 so toy batches don't waste compute but
    # real batches get a proper MXU M dimension (and >=2 grid steps on v7x).
    BB = min(MAX_BATCH_BLOCK, _round_up(B, SUBLANE))
    B_pad = _round_up(B, BB)

    KC = KH * KW * C                      # true contraction size (NOT padded)
    F_pad = _round_up(F, LANE)            # lane-dense conv output / fc input
    NC_pad = _round_up(NC, LANE)          # lane-dense output stores

    # --- im2col in the wrapper (SAME padding); (kh, kw, c) order matches
    #     conv_w.reshape(KC, F).  Pre-flattened to [B_pad*HW, KC], bf16.
    ph, pw = KH // 2, KW // 2
    xp = jnp.pad(image_nhwc, ((0, 0), (ph, ph), (pw, pw), (0, 0)))
    cols = [xp[:, kh:kh + H, kw:kw + W, :]
            for kh in range(KH) for kw in range(KW)]
    patches = jnp.concatenate(cols, axis=-1).reshape(B, HW, KC)
    patches = jnp.pad(patches, ((0, B_pad - B), (0, 0), (0, 0)))
    patches = patches.reshape(B_pad * HW, KC).astype(jnp.bfloat16)

    betti_p = jnp.pad(betti, ((0, B_pad - B), (0, 0))).astype(jnp.bfloat16)

    # conv weight as im2col matrix (bf16), lane-padded on F only.
    wconv = jnp.pad(params["conv_w"].reshape(KC, F).astype(jnp.bfloat16),
                    ((0, 0), (0, F_pad - F)))
    bconv = jnp.pad(params["conv_b"], (0, F_pad - F)).reshape(1, F_pad)  # f32

    # resnet.fc with the 1/HW GAP scale folded in; rows padded to F_pad.
    wr = jnp.pad((params["wr"] / HW).astype(jnp.bfloat16),
                 ((0, F_pad - F), (0, 0)))
    br = params["br"].reshape(1, HIDDEN)                                 # f32
    wb = params["wb"].astype(jnp.bfloat16)
    bb = params["bb"].reshape(1, HIDDEN)                                 # f32

    # classifier split across the concat halves; lane-padded on NC only.
    wct = jnp.pad(params["wc"][:HIDDEN].astype(jnp.bfloat16),
                  ((0, 0), (0, NC_pad - NC)))
    wcb = jnp.pad(params["wc"][HIDDEN:].astype(jnp.bfloat16),
                  ((0, 0), (0, NC_pad - NC)))
    bc = jnp.pad(params["bc"], (0, NC_pad - NC)).reshape(1, NC_pad)      # f32

    out = pl.pallas_call(
        fused_kernel,
        out_shape=jax.ShapeDtypeStruct((B_pad, NC_pad), jnp.float32),
        grid=(B_pad // BB,),
        in_specs=[
            pl.BlockSpec((BB * HW, KC), lambda i: (i, 0)),     # patches (streamed)
            pl.BlockSpec((BB, BETTI), lambda i: (i, 0)),       # betti (streamed)
            pl.BlockSpec((KC, F_pad), lambda i: (0, 0)),       # conv W   (resident)
            pl.BlockSpec((1, F_pad), lambda i: (0, 0)),        # conv b
            pl.BlockSpec((F_pad, HIDDEN), lambda i: (0, 0)),   # resnet.fc W (1/HW folded)
            pl.BlockSpec((1, HIDDEN), lambda i: (0, 0)),       # resnet.fc b
            pl.BlockSpec((BETTI, HIDDEN), lambda i: (0, 0)),   # betti_fc W
            pl.BlockSpec((1, HIDDEN), lambda i: (0, 0)),       # betti_fc b
            pl.BlockSpec((HIDDEN, NC_pad), lambda i: (0, 0)),  # classifier W (top half)
            pl.BlockSpec((HIDDEN, NC_pad), lambda i: (0, 0)),  # classifier W (bottom half)
            pl.BlockSpec((1, NC_pad), lambda i: (0, 0)),       # classifier b
        ],
        out_specs=pl.BlockSpec((BB, NC_pad), lambda i: (i, 0)),
        compiler_params=pltpu.CompilerParams(
            dimension_semantics=("parallel",),
            # Explicit budget with headroom: ~1.7 MiB double-buffered bf16
            # patches + <=8 MiB f32 conv intermediate + ~1.5 MiB resident
            # weights at BB=64; safe on v5e/v6e (128 MiB) and v7x (64 MiB).
            vmem_limit_bytes=32 * 1024 * 1024),
    )(patches, betti_p, wconv, bconv, wr, br, wb, bb, wct, wcb, bc)

    return out[:B, :NC]


# ----------------------------------------------------------------------------
# Pure-JAX reference (f32 end-to-end)
# ----------------------------------------------------------------------------
def reference_forward(image_nhwc, betti, params):
    conv = jax.lax.conv_general_dilated(
        image_nhwc, params["conv_w"], window_strides=(1, 1), padding="SAME",
        dimension_numbers=("NHWC", "HWIO", "NHWC"))
    conv = jnp.maximum(conv + params["conv_b"][None, None, None, :], 0.0)
    pooled = jnp.mean(conv, axis=(1, 2))
    rf = pooled @ params["wr"] + params["br"]
    bf = betti @ params["wb"] + params["bb"]
    cat = jnp.concatenate([rf, bf], axis=1)
    return cat @ params["wc"] + params["bc"]


if __name__ == "__main__":
    B, C_in, H, W = 2, 3, 16, 16
    F = 8                       # synthetic resnet.fc.in_features
    BETTI = 32                  # betti_curve_size
    NUM_CLASSES = 10

    key = jax.random.PRNGKey(0)
    ks = jax.random.split(key, 10)
    params = {
        "conv_w": jax.random.normal(ks[0], (3, 3, C_in, F), jnp.float32) * 0.1,
        "conv_b": jax.random.normal(ks[1], (F,), jnp.float32) * 0.1,
        "wr": jax.random.normal(ks[2], (F, HIDDEN), jnp.float32) * 0.05,
        "br": jax.random.normal(ks[3], (HIDDEN,), jnp.float32) * 0.05,
        "wb": jax.random.normal(ks[4], (BETTI, HIDDEN), jnp.float32) * 0.05,
        "bb": jax.random.normal(ks[5], (HIDDEN,), jnp.float32) * 0.05,
        "wc": jax.random.normal(ks[6], (2 * HIDDEN, NUM_CLASSES),
                                jnp.float32) * 0.05,
        "bc": jax.random.normal(ks[7], (NUM_CLASSES,), jnp.float32) * 0.05,
    }

    image = jax.random.normal(ks[8], (B, H, W, C_in), jnp.float32)  # NHWC
    betti = jax.random.normal(ks[9], (B, BETTI), jnp.float32)

    out = combined_model_forward(image, betti, params)
    out = jax.block_until_ready(out)

    ref = reference_forward(image, betti, params)
    # bf16 dot operands with f32 accumulation -> bf16-appropriate tolerance.
    np.testing.assert_allclose(np.asarray(out), np.asarray(ref),
                               rtol=3e-2, atol=3e-2)
    print("KERNEL_OK")
</pallas_src>

<mosaic_0001>
module attributes {stable_mosaic.version = 11 : i64} {
  func.func @fused_kernel(%arg0: i32, %arg1: memref<2048x27xbf16, #tpu.memory_space<vmem>>, %arg2: memref<8x32xbf16, #tpu.memory_space<vmem>>, %arg3: memref<27x128xbf16, #tpu.memory_space<vmem>>, %arg4: memref<1x128xf32, #tpu.memory_space<vmem>>, %arg5: memref<128x512xbf16, #tpu.memory_space<vmem>>, %arg6: memref<1x512xf32, #tpu.memory_space<vmem>>, %arg7: memref<32x512xbf16, #tpu.memory_space<vmem>>, %arg8: memref<1x512xf32, #tpu.memory_space<vmem>>, %arg9: memref<512x128xbf16, #tpu.memory_space<vmem>>, %arg10: memref<512x128xbf16, #tpu.memory_space<vmem>>, %arg11: memref<1x128xf32, #tpu.memory_space<vmem>>, %arg12: memref<8x128xf32, #tpu.memory_space<vmem>>) attributes {dimension_semantics = [#tpu.dimension_semantics<parallel>], iteration_bounds = array<i64: 1>, scalar_prefetch = 0 : i64, scratch_operands = 0 : i64, tpu.core_type = #tpu.core_type<tc>, window_params = [{transform_indices = @transform_0, window_bounds = array<i64: 2048, 27>}, {transform_indices = @transform_1, window_bounds = array<i64: 8, 32>}, {pipeline_mode = #tpu.pipeline_mode<synchronous>, transform_indices = @transform_2, window_bounds = array<i64: 27, 128>}, {pipeline_mode = #tpu.pipeline_mode<synchronous>, transform_indices = @transform_3, window_bounds = array<i64: 1, 128>}, {pipeline_mode = #tpu.pipeline_mode<synchronous>, transform_indices = @transform_4, window_bounds = array<i64: 128, 512>}, {pipeline_mode = #tpu.pipeline_mode<synchronous>, transform_indices = @transform_5, window_bounds = array<i64: 1, 512>}, {pipeline_mode = #tpu.pipeline_mode<synchronous>, transform_indices = @transform_6, window_bounds = array<i64: 32, 512>}, {pipeline_mode = #tpu.pipeline_mode<synchronous>, transform_indices = @transform_7, window_bounds = array<i64: 1, 512>}, {pipeline_mode = #tpu.pipeline_mode<synchronous>, transform_indices = @transform_8, window_bounds = array<i64: 512, 128>}, {pipeline_mode = #tpu.pipeline_mode<synchronous>, transform_indices = @transform_9, window_bounds = array<i64: 512, 128>}, {pipeline_mode = #tpu.pipeline_mode<synchronous>, transform_indices = @transform_10, window_bounds = array<i64: 1, 128>}, {transform_indices = @transform_11, window_bounds = array<i64: 8, 128>}]} {
    %c0 = arith.constant 0 : index
    %c0_0 = arith.constant 0 : index
    %0 = vector.load %arg1[%c0, %c0_0] : memref<2048x27xbf16, #tpu.memory_space<vmem>>, vector<2048x27xbf16>
    %c0_1 = arith.constant 0 : index
    %c0_2 = arith.constant 0 : index
    %1 = vector.load %arg3[%c0_1, %c0_2] : memref<27x128xbf16, #tpu.memory_space<vmem>>, vector<27x128xbf16>
    %cst = arith.constant dense<0.000000e+00> : vector<2048x128xf32>
    %2 = tpu.matmul %0, %1, %cst {dimension_numbers = #tpu.dot_dimension_numbers<[1], [0], [0], [1], [0, 0, 1, 1], [], []>} : vector<2048x27xbf16>, vector<27x128xbf16>, vector<2048x128xf32> -> vector<2048x128xf32>
    %c0_3 = arith.constant 0 : index
    %c0_4 = arith.constant 0 : index
    %3 = vector.load %arg4[%c0_3, %c0_4] : memref<1x128xf32, #tpu.memory_space<vmem>>, vector<1x128xf32>
    %4 = vector.broadcast %3 : vector<1x128xf32> to vector<2048x128xf32>
    %5 = arith.addf %2, %4 : vector<2048x128xf32>
    %cst_5 = arith.constant 0.000000e+00 : f32
    %6 = vector.broadcast %cst_5 : f32 to vector<2048x128xf32>
    %7 = arith.maximumf %5, %6 : vector<2048x128xf32>
    %8 = vector.shape_cast %7 : vector<2048x128xf32> to vector<8x256x128xf32>
    %cst_6 = arith.constant dense<0.000000e+00> : vector<8x128xf32>
    %9 = vector.multi_reduction <add>, %8, %cst_6 [1] : vector<8x256x128xf32> to vector<8x128xf32>
    %10 = arith.truncf %9 : vector<8x128xf32> to vector<8x128xbf16>
    %c0_7 = arith.constant 0 : index
    %c0_8 = arith.constant 0 : index
    %11 = vector.load %arg5[%c0_7, %c0_8] : memref<128x512xbf16, #tpu.memory_space<vmem>>, vector<128x512xbf16>
    %cst_9 = arith.constant dense<0.000000e+00> : vector<8x512xf32>
    %12 = tpu.matmul %10, %11, %cst_9 {dimension_numbers = #tpu.dot_dimension_numbers<[1], [0], [0], [1], [0, 0, 1, 1], [], []>} : vector<8x128xbf16>, vector<128x512xbf16>, vector<8x512xf32> -> vector<8x512xf32>
    %c0_10 = arith.constant 0 : index
    %c0_11 = arith.constant 0 : index
    %13 = vector.load %arg6[%c0_10, %c0_11] : memref<1x512xf32, #tpu.memory_space<vmem>>, vector<1x512xf32>
    %14 = vector.broadcast %13 : vector<1x512xf32> to vector<8x512xf32>
    %15 = arith.addf %12, %14 : vector<8x512xf32>
    %c0_12 = arith.constant 0 : index
    %c0_13 = arith.constant 0 : index
    %16 = vector.load %arg2[%c0_12, %c0_13] : memref<8x32xbf16, #tpu.memory_space<vmem>>, vector<8x32xbf16>
    %c0_14 = arith.constant 0 : index
    %c0_15 = arith.constant 0 : index
    %17 = vector.load %arg7[%c0_14, %c0_15] : memref<32x512xbf16, #tpu.memory_space<vmem>>, vector<32x512xbf16>
    %cst_16 = arith.constant dense<0.000000e+00> : vector<8x512xf32>
    %18 = tpu.matmul %16, %17, %cst_16 {dimension_numbers = #tpu.dot_dimension_numbers<[1], [0], [0], [1], [0, 0, 1, 1], [], []>} : vector<8x32xbf16>, vector<32x512xbf16>, vector<8x512xf32> -> vector<8x512xf32>
    %c0_17 = arith.constant 0 : index
    %c0_18 = arith.constant 0 : index
    %19 = vector.load %arg8[%c0_17, %c0_18] : memref<1x512xf32, #tpu.memory_space<vmem>>, vector<1x512xf32>
    %20 = vector.broadcast %19 : vector<1x512xf32> to vector<8x512xf32>
    %21 = arith.addf %18, %20 : vector<8x512xf32>
    %22 = arith.truncf %15 : vector<8x512xf32> to vector<8x512xbf16>
    %c0_19 = arith.constant 0 : index
    %c0_20 = arith.constant 0 : index
    %23 = vector.load %arg9[%c0_19, %c0_20] : memref<512x128xbf16, #tpu.memory_space<vmem>>, vector<512x128xbf16>
    %cst_21 = arith.constant dense<0.000000e+00> : vector<8x128xf32>
    %24 = tpu.matmul %22, %23, %cst_21 {dimension_numbers = #tpu.dot_dimension_numbers<[1], [0], [0], [1], [0, 0, 1, 1], [], []>} : vector<8x512xbf16>, vector<512x128xbf16>, vector<8x128xf32> -> vector<8x128xf32>
    %25 = arith.truncf %21 : vector<8x512xf32> to vector<8x512xbf16>
    %c0_22 = arith.constant 0 : index
    %c0_23 = arith.constant 0 : index
    %26 = vector.load %arg10[%c0_22, %c0_23] : memref<512x128xbf16, #tpu.memory_space<vmem>>, vector<512x128xbf16>
    %cst_24 = arith.constant dense<0.000000e+00> : vector<8x128xf32>
    %27 = tpu.matmul %25, %26, %cst_24 {dimension_numbers = #tpu.dot_dimension_numbers<[1], [0], [0], [1], [0, 0, 1, 1], [], []>} : vector<8x512xbf16>, vector<512x128xbf16>, vector<8x128xf32> -> vector<8x128xf32>
    %28 = arith.addf %24, %27 : vector<8x128xf32>
    %c0_25 = arith.constant 0 : index
    %c0_26 = arith.constant 0 : index
    %29 = vector.load %arg11[%c0_25, %c0_26] : memref<1x128xf32, #tpu.memory_space<vmem>>, vector<1x128xf32>
    %30 = vector.broadcast %29 : vector<1x128xf32> to vector<8x128xf32>
    %31 = arith.addf %28, %30 : vector<8x128xf32>
    %c0_27 = arith.constant 0 : index
    %c0_28 = arith.constant 0 : index
    %32 = vector.load %arg12[%c0_27, %c0_28] : memref<8x128xf32, #tpu.memory_space<vmem>>, vector<8x128xf32>
    tpu.vector_store %arg12[%c0_27, %c0_28], %31 {strides = array<i32>} : memref<8x128xf32, #tpu.memory_space<vmem>>, vector<8x128xf32>,
    return
  }
  func.func @transform_0(%arg0: i32) -> (i32, i32) {
    %c0_i32 = arith.constant 0 : i32
    %c0_i32_0 = arith.constant 0 : i32
    return %arg0, %c0_i32 : i32, i32
  }
  func.func @transform_1(%arg0: i32) -> (i32, i32) {
    %c0_i32 = arith.constant 0 : i32
    %c0_i32_0 = arith.constant 0 : i32
    return %arg0, %c0_i32 : i32, i32
  }
  func.func @transform_2(%arg0: i32) -> (i32, i32) {
    %c0_i32 = arith.constant 0 : i32
    %c0_i32_0 = arith.constant 0 : i32
    %c0_i32_1 = arith.constant 0 : i32
    return %c0_i32, %c0_i32_0 : i32, i32
  }
  func.func @transform_3(%arg0: i32) -> (i32, i32) {
    %c0_i32 = arith.constant 0 : i32
    %c0_i32_0 = arith.constant 0 : i32
    %c0_i32_1 = arith.constant 0 : i32
    return %c0_i32, %c0_i32_0 : i32, i32
  }
  func.func @transform_4(%arg0: i32) -> (i32, i32) {
    %c0_i32 = arith.constant 0 : i32
    %c0_i32_0 = arith.constant 0 : i32
    %c0_i32_1 = arith.constant 0 : i32
    return %c0_i32, %c0_i32_0 : i32, i32
  }
  func.func @transform_5(%arg0: i32) -> (i32, i32) {
    %c0_i32 = arith.constant 0 : i32
    %c0_i32_0 = arith.constant 0 : i32
    %c0_i32_1 = arith.constant 0 : i32
    return %c0_i32, %c0_i32_0 : i32, i32
  }
  func.func @transform_6(%arg0: i32) -> (i32, i32) {
    %c0_i32 = arith.constant 0 : i32
    %c0_i32_0 = arith.constant 0 : i32
    %c0_i32_1 = arith.constant 0 : i32
    return %c0_i32, %c0_i32_0 : i32, i32
  }
  func.func @transform_7(%arg0: i32) -> (i32, i32) {
    %c0_i32 = arith.constant 0 : i32
    %c0_i32_0 = arith.constant 0 : i32
    %c0_i32_1 = arith.constant 0 : i32
    return %c0_i32, %c0_i32_0 : i32, i32
  }
  func.func @transform_8(%arg0: i32) -> (i32, i32) {
    %c0_i32 = arith.constant 0 : i32
    %c0_i32_0 = arith.constant 0 : i32
    %c0_i32_1 = arith.constant 0 : i32
    return %c0_i32, %c0_i32_0 : i32, i32
  }
  func.func @transform_9(%arg0: i32) -> (i32, i32) {
    %c0_i32 = arith.constant 0 : i32
    %c0_i32_0 = arith.constant 0 : i32
    %c0_i32_1 = arith.constant 0 : i32
    return %c0_i32, %c0_i32_0 : i32, i32
  }
  func.func @transform_10(%arg0: i32) -> (i32, i32) {
    %c0_i32 = arith.constant 0 : i32
    %c0_i32_0 = arith.constant 0 : i32
    %c0_i32_1 = arith.constant 0 : i32
    return %c0_i32, %c0_i32_0 : i32, i32
  }
  func.func @transform_11(%arg0: i32) -> (i32, i32) {
    %c0_i32 = arith.constant 0 : i32
    %c0_i32_0 = arith.constant 0 : i32
    return %arg0, %c0_i32 : i32, i32
  }
}

</mosaic_0001>

<llo_original>
// kernel: tpu_custom_call.1
$region0: #{tpu_custom_call.1}
  #allocation0 [shape = 'u32[]', space=smem, size = 0x4, offset = 0x4, fixed_abs, tag = 'smem constant byte address 0x4 - core index']
  #allocation1 [shape = 'u32[144,128]{1,0:T(1,128)}', space=vmem, size = 0x12000, scoped, tag = 'internal scratch']
  %s0 = inlined_call_operand.vmem [shape: bf16[2048,27], index: 0, kind: input, shape index: {}]
  %s1 = inlined_call_operand.vmem [shape: bf16[8,32], index: 1, kind: input, shape index: {}]
  %s2 = inlined_call_operand.vmem [shape: bf16[27,128], index: 2, kind: input, shape index: {}]
  %s3 = inlined_call_operand.vmem [shape: f32[1,128], index: 3, kind: input, shape index: {}]
  %s4 = inlined_call_operand.vmem [shape: bf16[128,512], index: 4, kind: input, shape index: {}]
  %s5 = inlined_call_operand.vmem [shape: f32[1,512], index: 5, kind: input, shape index: {}]
  %s6 = inlined_call_operand.vmem [shape: bf16[32,512], index: 6, kind: input, shape index: {}]
  %s7 = inlined_call_operand.vmem [shape: f32[1,512], index: 7, kind: input, shape index: {}]
  %s8 = inlined_call_operand.vmem [shape: bf16[512,128], index: 8, kind: input, shape index: {}]
  %s9 = inlined_call_operand.vmem [shape: bf16[512,128], index: 9, kind: input, shape index: {}]
  %s10 = inlined_call_operand.vmem [shape: f32[1,128], index: 10, kind: input, shape index: {}]
  %s11 = inlined_call_operand.hbm [shape: f32[8,128], index: 11, kind: output, shape index: {}]
  %s12 = sld [smem:[#allocation0]]
  $region54: #{tpu_custom_call.1} parent=0
    _
  %s14 = ssub.s32 1, %s12
  %s15 = scalar_select 0, %s14, %s12
  $region1: #{tpu_custom_call.1} parent=0
    #allocation2 [shape = 'u8[4096]{0}', space=vmem, size = 0x1000, scoped, tag = 'output window, operand 0, single buffered']
    #allocation3 [shape = 's32[1]{0}', space=sflag, size = 0x4, scoped, tag = 'scoped memory for tpu_custom_call.1']
    %16 = vsyncpa [#allocation3], 0
    // Predicated region
    $region2: #{tpu_custom_call.1} parent=1 // pred_check
      _
    $region3: #{tpu_custom_call.1} parent=1 // pred_check_branch
      %18 = sbr.rel (0) target = $region5
    $region4: #{tpu_custom_call.1} parent=1 // pred_region
      _
    $region5: #{tpu_custom_call.1} parent=1 // pred_fallthru
      _
    // Predicated region
    $region6: #{tpu_custom_call.1} parent=1 // pred_check
      _
    $region7: #{tpu_custom_call.1} parent=1 // pred_check_branch
      %20 = sbr.rel (0) target = $region9
    $region8: #{tpu_custom_call.1} parent=1 // pred_region
      _
    $region9: #{tpu_custom_call.1} parent=1 // pred_fallthru
      _
    // Predicated region
    $region10: #{tpu_custom_call.1} parent=1 // pred_check
      _
    $region11: #{tpu_custom_call.1} parent=1 // pred_check_branch
      %22 = sbr.rel (0) target = $region13
    $region12: #{tpu_custom_call.1} parent=1 // pred_region
      _
    $region13: #{tpu_custom_call.1} parent=1 // pred_fallthru
      _
    // Predicated region
    $region14: #{tpu_custom_call.1} parent=1 // pred_check
      _
    $region15: #{tpu_custom_call.1} parent=1 // pred_check_branch
      %24 = sbr.rel (0) target = $region17
    $region16: #{tpu_custom_call.1} parent=1 // pred_region
      _
    $region17: #{tpu_custom_call.1} parent=1 // pred_fallthru
      _
    // Predicated region
    $region18: #{tpu_custom_call.1} parent=1 // pred_check
      _
    $region19: #{tpu_custom_call.1} parent=1 // pred_check_branch
      %26 = sbr.rel (0) target = $region21
    $region20: #{tpu_custom_call.1} parent=1 // pred_region
      _
    $region21: #{tpu_custom_call.1} parent=1 // pred_fallthru
      _
    // Predicated region
    $region22: #{tpu_custom_call.1} parent=1 // pred_check
      _
    $region23: #{tpu_custom_call.1} parent=1 // pred_check_branch
      %28 = sbr.rel (0) target = $region25
    $region24: #{tpu_custom_call.1} parent=1 // pred_region
      _
    $region25: #{tpu_custom_call.1} parent=1 // pred_fallthru
      _
    // Predicated region
    $region26: #{tpu_custom_call.1} parent=1 // pred_check
      _
    $region27: #{tpu_custom_call.1} parent=1 // pred_check_branch
      %30 = sbr.rel (0) target = $region29
    $region28: #{tpu_custom_call.1} parent=1 // pred_region
      _
    $region29: #{tpu_custom_call.1} parent=1 // pred_fallthru
      _
    // Predicated region
    $region30: #{tpu_custom_call.1} parent=1 // pred_check
      _
    $region31: #{tpu_custom_call.1} parent=1 // pred_check_branch
      %32 = sbr.rel (0) target = $region33
    $region32: #{tpu_custom_call.1} parent=1 // pred_region
      _
    $region33: #{tpu_custom_call.1} parent=1 // pred_fallthru
      _
    // Predicated region
    $region34: #{tpu_custom_call.1} parent=1 // pred_check
      _
    $region35: #{tpu_custom_call.1} parent=1 // pred_check_branch
      %34 = sbr.rel (0) target = $region37
    $region36: #{tpu_custom_call.1} parent=1 // pred_region
      _
    $region37: #{tpu_custom_call.1} parent=1 // pred_fallthru
      _
    // Predicated region
    $region38: #{tpu_custom_call.1} parent=1 // pred_check
      _
    $region39: #{tpu_custom_call.1} parent=1 // pred_check_branch
      %36 = sbr.rel (0) target = $region41
    $region40: #{tpu_custom_call.1} parent=1 // pred_region
      _
    $region41: #{tpu_custom_call.1} parent=1 // pred_fallthru
      _
    // Predicated region
    $region42: #{tpu_custom_call.1} parent=1 // pred_check
      _
    $region43: #{tpu_custom_call.1} parent=1 // pred_check_branch
      %38 = sbr.rel (0) target = $region45
    $region44: #{tpu_custom_call.1} parent=1 // pred_region
      _
    $region45: #{tpu_custom_call.1} parent=1 // pred_fallthru
      _
    %v40 = vld [vmem:[%s0] sm:$0xf]
    %v41 = vld [vmem:[%s0 + $0x4] sm:$0xf]
    %v42 = vld [vmem:[%s0 + $0x8] sm:$0xf]
    %v43 = vld [vmem:[%s0 + $0xc] sm:$0xf]
    %v44 = vld [vmem:[%s0 + $0x10] sm:$0xf]
    %v45 = vld [vmem:[%s0 + $0x14] sm:$0xf]
    %v46 = vld [vmem:[%s0 + $0x18] sm:$0xf]
    %v47 = vld [vmem:[%s0 + $0x1c] sm:$0xf]
    %v48 = vld [vmem:[%s0 + $0x20] sm:$0xf]
    %v49 = vld [vmem:[%s0 + $0x24] sm:$0xf]
    %v50 = vld [vmem:[%s0 + $0x28] sm:$0xf]
    %v51 = vld [vmem:[%s0 + $0x2c] sm:$0xf]
    %v52 = vld [vmem:[%s0 + $0x30] sm:$0xf]
    %v53 = vld [vmem:[%s0 + $0x34] sm:$0xf]
    %v54 = vld [vmem:[%s0 + $0x38] sm:$0xf]
    %v55 = vld [vmem:[%s0 + $0x3c] sm:$0xf]
    %v56 = vld [vmem:[%s0 + $0x40] sm:$0xf]
    %v57 = vld [vmem:[%s0 + $0x44] sm:$0xf]
    %v58 = vld [vmem:[%s0 + $0x48] sm:$0xf]
    %v59 = vld [vmem:[%s0 + $0x4c] sm:$0xf]
    %v60 = vld [vmem:[%s0 + $0x50] sm:$0xf]
    %v61 = vld [vmem:[%s0 + $0x54] sm:$0xf]
    %v62 = vld [vmem:[%s0 + $0x58] sm:$0xf]
    %v63 = vld [vmem:[%s0 + $0x5c] sm:$0xf]
    %v64 = vld [vmem:[%s0 + $0x60] sm:$0xf]
    %v65 = vld [vmem:[%s0 + $0x64] sm:$0xf]
    %v66 = vld [vmem:[%s0 + $0x68] sm:$0xf]
    %v67 = vld [vmem:[%s0 + $0x6c] sm:$0xf]
    %v68 = vld [vmem:[%s0 + $0x70] sm:$0xf]
    %v69 = vld [vmem:[%s0 + $0x74] sm:$0xf]
    %v70 = vld [vmem:[%s0 + $0x78] sm:$0xf]
    %v71 = vld [vmem:[%s0 + $0x7c] sm:$0xf]
    %v72 = vld [vmem:[%s0 + $0x80] sm:$0xf]
    %v73 = vld [vmem:[%s0 + $0x84] sm:$0xf]
    %v74 = vld [vmem:[%s0 + $0x88] sm:$0xf]
    %v75 = vld [vmem:[%s0 + $0x8c] sm:$0xf]
    %v76 = vld [vmem:[%s0 + $0x90] sm:$0xf]
    %v77 = vld [vmem:[%s0 + $0x94] sm:$0xf]
    %v78 = vld [vmem:[%s0 + $0x98] sm:$0xf]
    %v79 = vld [vmem:[%s0 + $0x9c] sm:$0xf]
    %v80 = vld [vmem:[%s0 + $0xa0] sm:$0xf]
    %v81 = vld [vmem:[%s0 + $0xa4] sm:$0xf]
    %v82 = vld [vmem:[%s0 + $0xa8] sm:$0xf]
    %v83 = vld [vmem:[%s0 + $0xac] sm:$0xf]
    %v84 = vld [vmem:[%s0 + $0xb0] sm:$0xf]
    %v85 = vld [vmem:[%s0 + $0xb4] sm:$0xf]
    %v86 = vld [vmem:[%s0 + $0xb8] sm:$0xf]
    %v87 = vld [vmem:[%s0 + $0xbc] sm:$0xf]
    %v88 = vld [vmem:[%s0 + $0xc0] sm:$0xf]
    %v89 = vld [vmem:[%s0 + $0xc4] sm:$0xf]
    %v90 = vld [vmem:[%s0 + $0xc8] sm:$0xf]
    %v91 = vld [vmem:[%s0 + $0xcc] sm:$0xf]
    %v92 = vld [vmem:[%s0 + $0xd0] sm:$0xf]
    %v93 = vld [vmem:[%s0 + $0xd4] sm:$0xf]
    %v94 = vld [vmem:[%s0 + $0xd8] sm:$0xf]
    %v95 = vld [vmem:[%s0 + $0xdc] sm:$0xf]
    %v96 = vld [vmem:[%s0 + $0xe0] sm:$0xf]
    %v97 = vld [vmem:[%s0 + $0xe4] sm:$0xf]
    %v98 = vld [vmem:[%s0 + $0xe8] sm:$0xf]
    %v99 = vld [vmem:[%s0 + $0xec] sm:$0xf]
    %v100 = vld [vmem:[%s0 + $0xf0] sm:$0xf]
    %v101 = vld [vmem:[%s0 + $0xf4] sm:$0xf]
    %v102 = vld [vmem:[%s0 + $0xf8] sm:$0xf]
    %v103 = vld [vmem:[%s0 + $0xfc] sm:$0xf]
    %v104 = vld [vmem:[%s0 + $0x100] sm:$0xf]
    %v105 = vld [vmem:[%s0 + $0x104] sm:$0xf]
    %v106 = vld [vmem:[%s0 + $0x108] sm:$0xf]
    %v107 = vld [vmem:[%s0 + $0x10c] sm:$0xf]
    %v108 = vld [vmem:[%s0 + $0x110] sm:$0xf]
    %v109 = vld [vmem:[%s0 + $0x114] sm:$0xf]
    %v110 = vld [vmem:[%s0 + $0x118] sm:$0xf]
    %v111 = vld [vmem:[%s0 + $0x11c] sm:$0xf]
    %v112 = vld [vmem:[%s0 + $0x120] sm:$0xf]
    %v113 = vld [vmem:[%s0 + $0x124] sm:$0xf]
    %v114 = vld [vmem:[%s0 + $0x128] sm:$0xf]
    %v115 = vld [vmem:[%s0 + $0x12c] sm:$0xf]
    %v116 = vld [vmem:[%s0 + $0x130] sm:$0xf]
    %v117 = vld [vmem:[%s0 + $0x134] sm:$0xf]
    %v118 = vld [vmem:[%s0 + $0x138] sm:$0xf]
    %v119 = vld [vmem:[%s0 + $0x13c] sm:$0xf]
    %v120 = vld [vmem:[%s0 + $0x140] sm:$0xf]
    %v121 = vld [vmem:[%s0 + $0x144] sm:$0xf]
    %v122 = vld [vmem:[%s0 + $0x148] sm:$0xf]
    %v123 = vld [vmem:[%s0 + $0x14c] sm:$0xf]
    %v124 = vld [vmem:[%s0 + $0x150] sm:$0xf]
    %v125 = vld [vmem:[%s0 + $0x154] sm:$0xf]
    %v126 = vld [vmem:[%s0 + $0x158] sm:$0xf]
    %v127 = vld [vmem:[%s0 + $0x15c] sm:$0xf]
    %v128 = vld [vmem:[%s0 + $0x160] sm:$0xf]
    %v129 = vld [vmem:[%s0 + $0x164] sm:$0xf]
    %v130 = vld [vmem:[%s0 + $0x168] sm:$0xf]
    %v131 = vld [vmem:[%s0 + $0x16c] sm:$0xf]
    %v132 = vld [vmem:[%s0 + $0x170] sm:$0xf]
    %v133 = vld [vmem:[%s0 + $0x174] sm:$0xf]
    %v134 = vld [vmem:[%s0 + $0x178] sm:$0xf]
    %v135 = vld [vmem:[%s0 + $0x17c] sm:$0xf]
    %v136 = vld [vmem:[%s0 + $0x180] sm:$0xf]
    %v137 = vld [vmem:[%s0 + $0x184] sm:$0xf]
    %v138 = vld [vmem:[%s0 + $0x188] sm:$0xf]
    %v139 = vld [vmem:[%s0 + $0x18c] sm:$0xf]
    %v140 = vld [vmem:[%s0 + $0x190] sm:$0xf]
    %v141 = vld [vmem:[%s0 + $0x194] sm:$0xf]
    %v142 = vld [vmem:[%s0 + $0x198] sm:$0xf]
    %v143 = vld [vmem:[%s0 + $0x19c] sm:$0xf]
    %v144 = vld [vmem:[%s0 + $0x1a0] sm:$0xf]
    %v145 = vld [vmem:[%s0 + $0x1a4] sm:$0xf]
    %v146 = vld [vmem:[%s0 + $0x1a8] sm:$0xf]
    %v147 = vld [vmem:[%s0 + $0x1ac] sm:$0xf]
    %v148 = vld [vmem:[%s0 + $0x1b0] sm:$0xf]
    %v149 = vld [vmem:[%s0 + $0x1b4] sm:$0xf]
    %v150 = vld [vmem:[%s0 + $0x1b8] sm:$0xf]
    %v151 = vld [vmem:[%s0 + $0x1bc] sm:$0xf]
    %v152 = vld [vmem:[%s0 + $0x1c0] sm:$0xf]
    %v153 = vld [vmem:[%s0 + $0x1c4] sm:$0xf]
    %v154 = vld [vmem:[%s0 + $0x1c8] sm:$0xf]
    %v155 = vld [vmem:[%s0 + $0x1cc] sm:$0xf]
    %v156 = vld [vmem:[%s0 + $0x1d0] sm:$0xf]
    %v157 = vld [vmem:[%s0 + $0x1d4] sm:$0xf]
    %v158 = vld [vmem:[%s0 + $0x1d8] sm:$0xf]
    %v159 = vld [vmem:[%s0 + $0x1dc] sm:$0xf]
    %v160 = vld [vmem:[%s0 + $0x1e0] sm:$0xf]
    %v161 = vld [vmem:[%s0 + $0x1e4] sm:$0xf]
    %v162 = vld [vmem:[%s0 + $0x1e8] sm:$0xf]
    %v163 = vld [vmem:[%s0 + $0x1ec] sm:$0xf]
    %v164 = vld [vmem:[%s0 + $0x1f0] sm:$0xf]
    %v165 = vld [vmem:[%s0 + $0x1f4] sm:$0xf]
    %v166 = vld [vmem:[%s0 + $0x1f8] sm:$0xf]
    %v167 = vld [vmem:[%s0 + $0x1fc] sm:$0xf]
    %v168 = vld [vmem:[%s0 + $0x200] sm:$0xf]
    %v169 = vld [vmem:[%s0 + $0x204] sm:$0xf]
    %v170 = vld [vmem:[%s0 + $0x208] sm:$0xf]
    %v171 = vld [vmem:[%s0 + $0x20c] sm:$0xf]
    %v172 = vld [vmem:[%s0 + $0x210] sm:$0xf]
    %v173 = vld [vmem:[%s0 + $0x214] sm:$0xf]
    %v174 = vld [vmem:[%s0 + $0x218] sm:$0xf]
    %v175 = vld [vmem:[%s0 + $0x21c] sm:$0xf]
    %v176 = vld [vmem:[%s0 + $0x220] sm:$0xf]
    %v177 = vld [vmem:[%s0 + $0x224] sm:$0xf]
    %v178 = vld [vmem:[%s0 + $0x228] sm:$0xf]
    %v179 = vld [vmem:[%s0 + $0x22c] sm:$0xf]
    %v180 = vld [vmem:[%s0 + $0x230] sm:$0xf]
    %v181 = vld [vmem:[%s0 + $0x234] sm:$0xf]
    %v182 = vld [vmem:[%s0 + $0x238] sm:$0xf]
    %v183 = vld [vmem:[%s0 + $0x23c] sm:$0xf]
    %v184 = vld [vmem:[%s0 + $0x240] sm:$0xf]
    %v185 = vld [vmem:[%s0 + $0x244] sm:$0xf]
    %v186 = vld [vmem:[%s0 + $0x248] sm:$0xf]
    %v187 = vld [vmem:[%s0 + $0x24c] sm:$0xf]
    %v188 = vld [vmem:[%s0 + $0x250] sm:$0xf]
    %v189 = vld [vmem:[%s0 + $0x254] sm:$0xf]
    %v190 = vld [vmem:[%s0 + $0x258] sm:$0xf]
    %v191 = vld [vmem:[%s0 + $0x25c] sm:$0xf]
    %v192 = vld [vmem:[%s0 + $0x260] sm:$0xf]
    %v193 = vld [vmem:[%s0 + $0x264] sm:$0xf]
    %v194 = vld [vmem:[%s0 + $0x268] sm:$0xf]
    %v195 = vld [vmem:[%s0 + $0x26c] sm:$0xf]
    %v196 = vld [vmem:[%s0 + $0x270] sm:$0xf]
    %v197 = vld [vmem:[%s0 + $0x274] sm:$0xf]
    %v198 = vld [vmem:[%s0 + $0x278] sm:$0xf]
    %v199 = vld [vmem:[%s0 + $0x27c] sm:$0xf]
    %v200 = vld [vmem:[%s0 + $0x280] sm:$0xf]
    %v201 = vld [vmem:[%s0 + $0x284] sm:$0xf]
    %v202 = vld [vmem:[%s0 + $0x288] sm:$0xf]
    %v203 = vld [vmem:[%s0 + $0x28c] sm:$0xf]
    %v204 = vld [vmem:[%s0 + $0x290] sm:$0xf]
    %v205 = vld [vmem:[%s0 + $0x294] sm:$0xf]
    %v206 = vld [vmem:[%s0 + $0x298] sm:$0xf]
    %v207 = vld [vmem:[%s0 + $0x29c] sm:$0xf]
    %v208 = vld [vmem:[%s0 + $0x2a0] sm:$0xf]
    %v209 = vld [vmem:[%s0 + $0x2a4] sm:$0xf]
    %v210 = vld [vmem:[%s0 + $0x2a8] sm:$0xf]
    %v211 = vld [vmem:[%s0 + $0x2ac] sm:$0xf]
    %v212 = vld [vmem:[%s0 + $0x2b0] sm:$0xf]
    %v213 = vld [vmem:[%s0 + $0x2b4] sm:$0xf]
    %v214 = vld [vmem:[%s0 + $0x2b8] sm:$0xf]
    %v215 = vld [vmem:[%s0 + $0x2bc] sm:$0xf]
    %v216 = vld [vmem:[%s0 + $0x2c0] sm:$0xf]
    %v217 = vld [vmem:[%s0 + $0x2c4] sm:$0xf]
    %v218 = vld [vmem:[%s0 + $0x2c8] sm:$0xf]
    %v219 = vld [vmem:[%s0 + $0x2cc] sm:$0xf]
    %v220 = vld [vmem:[%s0 + $0x2d0] sm:$0xf]
    %v221 = vld [vmem:[%s0 + $0x2d4] sm:$0xf]
    %v222 = vld [vmem:[%s0 + $0x2d8] sm:$0xf]
    %v223 = vld [vmem:[%s0 + $0x2dc] sm:$0xf]
    %v224 = vld [vmem:[%s0 + $0x2e0] sm:$0xf]
    %v225 = vld [vmem:[%s0 + $0x2e4] sm:$0xf]
    %v226 = vld [vmem:[%s0 + $0x2e8] sm:$0xf]
    %v227 = vld [vmem:[%s0 + $0x2ec] sm:$0xf]
    %v228 = vld [vmem:[%s0 + $0x2f0] sm:$0xf]
    %v229 = vld [vmem:[%s0 + $0x2f4] sm:$0xf]
    %v230 = vld [vmem:[%s0 + $0x2f8] sm:$0xf]
    %v231 = vld [vmem:[%s0 + $0x2fc] sm:$0xf]
    %v232 = vld [vmem:[%s0 + $0x300] sm:$0xf]
    %v233 = vld [vmem:[%s0 + $0x304] sm:$0xf]
    %v234 = vld [vmem:[%s0 + $0x308] sm:$0xf]
    %v235 = vld [vmem:[%s0 + $0x30c] sm:$0xf]
    %v236 = vld [vmem:[%s0 + $0x310] sm:$0xf]
    %v237 = vld [vmem:[%s0 + $0x314] sm:$0xf]
    %v238 = vld [vmem:[%s0 + $0x318] sm:$0xf]
    %v239 = vld [vmem:[%s0 + $0x31c] sm:$0xf]
    %v240 = vld [vmem:[%s0 + $0x320] sm:$0xf]
    %v241 = vld [vmem:[%s0 + $0x324] sm:$0xf]
    %v242 = vld [vmem:[%s0 + $0x328] sm:$0xf]
    %v243 = vld [vmem:[%s0 + $0x32c] sm:$0xf]
    %v244 = vld [vmem:[%s0 + $0x330] sm:$0xf]
    %v245 = vld [vmem:[%s0 + $0x334] sm:$0xf]
    %v246 = vld [vmem:[%s0 + $0x338] sm:$0xf]
    %v247 = vld [vmem:[%s0 + $0x33c] sm:$0xf]
    %v248 = vld [vmem:[%s0 + $0x340] sm:$0xf]
    %v249 = vld [vmem:[%s0 + $0x344] sm:$0xf]
    %v250 = vld [vmem:[%s0 + $0x348] sm:$0xf]
    %v251 = vld [vmem:[%s0 + $0x34c] sm:$0xf]
    %v252 = vld [vmem:[%s0 + $0x350] sm:$0xf]
    %v253 = vld [vmem:[%s0 + $0x354] sm:$0xf]
    %v254 = vld [vmem:[%s0 + $0x358] sm:$0xf]
    %v255 = vld [vmem:[%s0 + $0x35c] sm:$0xf]
    %v256 = vld [vmem:[%s0 + $0x360] sm:$0xf]
    %v257 = vld [vmem:[%s0 + $0x364] sm:$0xf]
    %v258 = vld [vmem:[%s0 + $0x368] sm:$0xf]
    %v259 = vld [vmem:[%s0 + $0x36c] sm:$0xf]
    %v260 = vld [vmem:[%s0 + $0x370] sm:$0xf]
    %v261 = vld [vmem:[%s0 + $0x374] sm:$0xf]
    %v262 = vld [vmem:[%s0 + $0x378] sm:$0xf]
    %v263 = vld [vmem:[%s0 + $0x37c] sm:$0xf]
    %v264 = vld [vmem:[%s0 + $0x380] sm:$0xf]
    %v265 = vld [vmem:[%s0 + $0x384] sm:$0xf]
    %v266 = vld [vmem:[%s0 + $0x388] sm:$0xf]
    %v267 = vld [vmem:[%s0 + $0x38c] sm:$0xf]
    %v268 = vld [vmem:[%s0 + $0x390] sm:$0xf]
    %v269 = vld [vmem:[%s0 + $0x394] sm:$0xf]
    %v270 = vld [vmem:[%s0 + $0x398] sm:$0xf]
    %v271 = vld [vmem:[%s0 + $0x39c] sm:$0xf]
    %v272 = vld [vmem:[%s0 + $0x3a0] sm:$0xf]
    %v273 = vld [vmem:[%s0 + $0x3a4] sm:$0xf]
    %v274 = vld [vmem:[%s0 + $0x3a8] sm:$0xf]
    %v275 = vld [vmem:[%s0 + $0x3ac] sm:$0xf]
    %v276 = vld [vmem:[%s0 + $0x3b0] sm:$0xf]
    %v277 = vld [vmem:[%s0 + $0x3b4] sm:$0xf]
    %v278 = vld [vmem:[%s0 + $0x3b8] sm:$0xf]
    %v279 = vld [vmem:[%s0 + $0x3bc] sm:$0xf]
    %v280 = vld [vmem:[%s0 + $0x3c0] sm:$0xf]
    %v281 = vld [vmem:[%s0 + $0x3c4] sm:$0xf]
    %v282 = vld [vmem:[%s0 + $0x3c8] sm:$0xf]
    %v283 = vld [vmem:[%s0 + $0x3cc] sm:$0xf]
    %v284 = vld [vmem:[%s0 + $0x3d0] sm:$0xf]
    %v285 = vld [vmem:[%s0 + $0x3d4] sm:$0xf]
    %v286 = vld [vmem:[%s0 + $0x3d8] sm:$0xf]
    %v287 = vld [vmem:[%s0 + $0x3dc] sm:$0xf]
    %v288 = vld [vmem:[%s0 + $0x3e0] sm:$0xf]
    %v289 = vld [vmem:[%s0 + $0x3e4] sm:$0xf]
    %v290 = vld [vmem:[%s0 + $0x3e8] sm:$0xf]
    %v291 = vld [vmem:[%s0 + $0x3ec] sm:$0xf]
    %v292 = vld [vmem:[%s0 + $0x3f0] sm:$0xf]
    %v293 = vld [vmem:[%s0 + $0x3f4] sm:$0xf]
    %v294 = vld [vmem:[%s0 + $0x3f8] sm:$0xf]
    %v295 = vld [vmem:[%s0 + $0x3fc] sm:$0xf]
    %v296 = vld [vmem:[%s2] sm:$0xf]
    %v297 = vld [vmem:[%s2 + $0x4] sm:$0xf]
    %v298 = vld [vmem:[%s2 + $0x8] sm:$0xf]
    %v299 = vld [vmem:[%s2 + $0xc] sm:$0x3]
    %v300 = vld [vmem:[%s3] sm:$0x1]
    %v302 = vlaneseq
    %v303 = vshrl.u32 %v302, 7
    %v304 = vsub.s32 0, %v303
    %v305 = vrot.slane %v300, %v304
    %v563 = vunpack.c.l.b16 %v40
    %v564 = vunpack.c.l.b16 %v41
    %v565 = vunpack.c.l.b16 %v42
    %v566 = vunpack.c.l.b16 %v43
    %v567 = vunpack.c.l.b16 %v44
    %v568 = vunpack.c.l.b16 %v45
    %v569 = vunpack.c.l.b16 %v46
    %v570 = vunpack.c.l.b16 %v47
    %v571 = vunpack.c.l.b16 %v48
    %v572 = vunpack.c.l.b16 %v49
    %v573 = vunpack.c.l.b16 %v50
    %v574 = vunpack.c.l.b16 %v51
    %v575 = vunpack.c.l.b16 %v52
    %v576 = vunpack.c.l.b16 %v53
    %v577 = vunpack.c.l.b16 %v54
    %v578 = vunpack.c.l.b16 %v55
    %v579 = vunpack.c.l.b16 %v56
    %v580 = vunpack.c.l.b16 %v57
    %v581 = vunpack.c.l.b16 %v58
    %v582 = vunpack.c.l.b16 %v59
    %v583 = vunpack.c.l.b16 %v60
    %v584 = vunpack.c.l.b16 %v61
    %v585 = vunpack.c.l.b16 %v62
    %v586 = vunpack.c.l.b16 %v63
    %v587 = vunpack.c.l.b16 %v64
    %v588 = vunpack.c.l.b16 %v65
    %v589 = vunpack.c.l.b16 %v66
    %v590 = vunpack.c.l.b16 %v67
    %v591 = vunpack.c.l.b16 %v68
    %v592 = vunpack.c.l.b16 %v69
    %v593 = vunpack.c.l.b16 %v70
    %v594 = vunpack.c.l.b16 %v71
    %v595 = vunpack.c.l.b16 %v72
    %v596 = vunpack.c.l.b16 %v73
    %v597 = vunpack.c.l.b16 %v74
    %v598 = vunpack.c.l.b16 %v75
    %v599 = vunpack.c.l.b16 %v76
    %v600 = vunpack.c.l.b16 %v77
    %v601 = vunpack.c.l.b16 %v78
    %v602 = vunpack.c.l.b16 %v79
    %v603 = vunpack.c.l.b16 %v80
    %v604 = vunpack.c.l.b16 %v81
    %v605 = vunpack.c.l.b16 %v82
    %v606 = vunpack.c.l.b16 %v83
    %v607 = vunpack.c.l.b16 %v84
    %v608 = vunpack.c.l.b16 %v85
    %v609 = vunpack.c.l.b16 %v86
    %v610 = vunpack.c.l.b16 %v87
    %v611 = vunpack.c.l.b16 %v88
    %v612 = vunpack.c.l.b16 %v89
    %v613 = vunpack.c.l.b16 %v90
    %v614 = vunpack.c.l.b16 %v91
    %v615 = vunpack.c.l.b16 %v92
    %v616 = vunpack.c.l.b16 %v93
    %v617 = vunpack.c.l.b16 %v94
    %v618 = vunpack.c.l.b16 %v95
    %v619 = vunpack.c.l.b16 %v96
    %v620 = vunpack.c.l.b16 %v97
    %v621 = vunpack.c.l.b16 %v98
    %v622 = vunpack.c.l.b16 %v99
    %v623 = vunpack.c.l.b16 %v100
    %v624 = vunpack.c.l.b16 %v101
    %v625 = vunpack.c.l.b16 %v102
    %v626 = vunpack.c.l.b16 %v103
    %v627 = vunpack.c.l.b16 %v104
    %v628 = vunpack.c.l.b16 %v105
    %v629 = vunpack.c.l.b16 %v106
    %v630 = vunpack.c.l.b16 %v107
    %v631 = vunpack.c.l.b16 %v108
    %v632 = vunpack.c.l.b16 %v109
    %v633 = vunpack.c.l.b16 %v110
    %v634 = vunpack.c.l.b16 %v111
    %v635 = vunpack.c.l.b16 %v112
    %v636 = vunpack.c.l.b16 %v113
    %v637 = vunpack.c.l.b16 %v114
    %v638 = vunpack.c.l.b16 %v115
    %v639 = vunpack.c.l.b16 %v116
    %v640 = vunpack.c.l.b16 %v117
    %v641 = vunpack.c.l.b16 %v118
    %v642 = vunpack.c.l.b16 %v119
    %v643 = vunpack.c.l.b16 %v120
    %v644 = vunpack.c.l.b16 %v121
    %v645 = vunpack.c.l.b16 %v122
    %v646 = vunpack.c.l.b16 %v123
    %v647 = vunpack.c.l.b16 %v124
    %v648 = vunpack.c.l.b16 %v125
    %v649 = vunpack.c.l.b16 %v126
    %v650 = vunpack.c.l.b16 %v127
    %v651 = vunpack.c.l.b16 %v128
    %v652 = vunpack.c.l.b16 %v129
    %v653 = vunpack.c.l.b16 %v130
    %v654 = vunpack.c.l.b16 %v131
    %v655 = vunpack.c.l.b16 %v132
    %v656 = vunpack.c.l.b16 %v133
    %v657 = vunpack.c.l.b16 %v134
    %v658 = vunpack.c.l.b16 %v135
    %v659 = vunpack.c.l.b16 %v136
    %v660 = vunpack.c.l.b16 %v137
    %v661 = vunpack.c.l.b16 %v138
    %v662 = vunpack.c.l.b16 %v139
    %v663 = vunpack.c.l.b16 %v140
    %v664 = vunpack.c.l.b16 %v141
    %v665 = vunpack.c.l.b16 %v142
    %v666 = vunpack.c.l.b16 %v143
    %v667 = vunpack.c.l.b16 %v144
    %v668 = vunpack.c.l.b16 %v145
    %v669 = vunpack.c.l.b16 %v146
    %v670 = vunpack.c.l.b16 %v147
    %v671 = vunpack.c.l.b16 %v148
    %v672 = vunpack.c.l.b16 %v149
    %v673 = vunpack.c.l.b16 %v150
    %v674 = vunpack.c.l.b16 %v151
    %v675 = vunpack.c.l.b16 %v152
    %v676 = vunpack.c.l.b16 %v153
    %v677 = vunpack.c.l.b16 %v154
    %v678 = vunpack.c.l.b16 %v155
    %v679 = vunpack.c.l.b16 %v156
    %v680 = vunpack.c.l.b16 %v157
    %v681 = vunpack.c.l.b16 %v158
    %v682 = vunpack.c.l.b16 %v159
    %v683 = vunpack.c.l.b16 %v160
    %v684 = vunpack.c.l.b16 %v161
    %v685 = vunpack.c.l.b16 %v162
    %v686 = vunpack.c.l.b16 %v163
    %v687 = vunpack.c.l.b16 %v164
    %v688 = vunpack.c.l.b16 %v165
    %v689 = vunpack.c.l.b16 %v166
    %v690 = vunpack.c.l.b16 %v167
    %v691 = vunpack.c.l.b16 %v168
    %v692 = vunpack.c.l.b16 %v169
    %v693 = vunpack.c.l.b16 %v170
    %v694 = vunpack.c.l.b16 %v171
    %v695 = vunpack.c.l.b16 %v172
    %v696 = vunpack.c.l.b16 %v173
    %v697 = vunpack.c.l.b16 %v174
    %v698 = vunpack.c.l.b16 %v175
    %v699 = vunpack.c.l.b16 %v176
    %v700 = vunpack.c.l.b16 %v177
    %v701 = vunpack.c.l.b16 %v178
    %v702 = vunpack.c.l.b16 %v179
    %v703 = vunpack.c.l.b16 %v180
    %v704 = vunpack.c.l.b16 %v181
    %v705 = vunpack.c.l.b16 %v182
    %v706 = vunpack.c.l.b16 %v183
    %v707 = vunpack.c.l.b16 %v184
    %v708 = vunpack.c.l.b16 %v185
    %v709 = vunpack.c.l.b16 %v186
    %v710 = vunpack.c.l.b16 %v187
    %v711 = vunpack.c.l.b16 %v188
    %v712 = vunpack.c.l.b16 %v189
    %v713 = vunpack.c.l.b16 %v190
    %v714 = vunpack.c.l.b16 %v191
    %v715 = vunpack.c.l.b16 %v192
    %v716 = vunpack.c.l.b16 %v193
    %v717 = vunpack.c.l.b16 %v194
    %v718 = vunpack.c.l.b16 %v195
    %v719 = vunpack.c.l.b16 %v196
    %v720 = vunpack.c.l.b16 %v197
    %v721 = vunpack.c.l.b16 %v198
    %v722 = vunpack.c.l.b16 %v199
    %v723 = vunpack.c.l.b16 %v200
    %v724 = vunpack.c.l.b16 %v201
    %v725 = vunpack.c.l.b16 %v202
    %v726 = vunpack.c.l.b16 %v203
    %v727 = vunpack.c.l.b16 %v204
    %v728 = vunpack.c.l.b16 %v205
    %v729 = vunpack.c.l.b16 %v206
    %v730 = vunpack.c.l.b16 %v207
    %v731 = vunpack.c.l.b16 %v208
    %v732 = vunpack.c.l.b16 %v209
    %v733 = vunpack.c.l.b16 %v210
    %v734 = vunpack.c.l.b16 %v211
    %v735 = vunpack.c.l.b16 %v212
    %v736 = vunpack.c.l.b16 %v213
    %v737 = vunpack.c.l.b16 %v214
    %v738 = vunpack.c.l.b16 %v215
    %v739 = vunpack.c.l.b16 %v216
    %v740 = vunpack.c.l.b16 %v217
    %v741 = vunpack.c.l.b16 %v218
    %v742 = vunpack.c.l.b16 %v219
    %v743 = vunpack.c.l.b16 %v220
    %v744 = vunpack.c.l.b16 %v221
    %v745 = vunpack.c.l.b16 %v222
    %v746 = vunpack.c.l.b16 %v223
    %v747 = vunpack.c.l.b16 %v224
    %v748 = vunpack.c.l.b16 %v225
    %v749 = vunpack.c.l.b16 %v226
    %v750 = vunpack.c.l.b16 %v227
    %v751 = vunpack.c.l.b16 %v228
    %v752 = vunpack.c.l.b16 %v229
    %v753 = vunpack.c.l.b16 %v230
    %v754 = vunpack.c.l.b16 %v231
    %v755 = vunpack.c.l.b16 %v232
    %v756 = vunpack.c.l.b16 %v233
    %v757 = vunpack.c.l.b16 %v234
    %v758 = vunpack.c.l.b16 %v235
    %v759 = vunpack.c.l.b16 %v236
    %v760 = vunpack.c.l.b16 %v237
    %v761 = vunpack.c.l.b16 %v238
    %v762 = vunpack.c.l.b16 %v239
    %v763 = vunpack.c.l.b16 %v240
    %v764 = vunpack.c.l.b16 %v241
    %v765 = vunpack.c.l.b16 %v242
    %v766 = vunpack.c.l.b16 %v243
    %v767 = vunpack.c.l.b16 %v244
    %v768 = vunpack.c.l.b16 %v245
    %v769 = vunpack.c.l.b16 %v246
    %v770 = vunpack.c.l.b16 %v247
    %v771 = vunpack.c.l.b16 %v248
    %v772 = vunpack.c.l.b16 %v249
    %v773 = vunpack.c.l.b16 %v250
    %v774 = vunpack.c.l.b16 %v251
    %v775 = vunpack.c.l.b16 %v252
    %v776 = vunpack.c.l.b16 %v253
    %v777 = vunpack.c.l.b16 %v254
    %v778 = vunpack.c.l.b16 %v255
    %v779 = vunpack.c.l.b16 %v256
    %v780 = vunpack.c.l.b16 %v257
    %v781 = vunpack.c.l.b16 %v258
    %v782 = vunpack.c.l.b16 %v259
    %v783 = vunpack.c.l.b16 %v260
    %v784 = vunpack.c.l.b16 %v261
    %v785 = vunpack.c.l.b16 %v262
    %v786 = vunpack.c.l.b16 %v263
    %v787 = vunpack.c.l.b16 %v264
    %v788 = vunpack.c.l.b16 %v265
    %v789 = vunpack.c.l.b16 %v266
    %v790 = vunpack.c.l.b16 %v267
    %v791 = vunpack.c.l.b16 %v268
    %v792 = vunpack.c.l.b16 %v269
    %v793 = vunpack.c.l.b16 %v270
    %v794 = vunpack.c.l.b16 %v271
    %v795 = vunpack.c.l.b16 %v272
    %v796 = vunpack.c.l.b16 %v273
    %v797 = vunpack.c.l.b16 %v274
    %v798 = vunpack.c.l.b16 %v275
    %v799 = vunpack.c.l.b16 %v276
    %v800 = vunpack.c.l.b16 %v277
    %v801 = vunpack.c.l.b16 %v278
    %v802 = vunpack.c.l.b16 %v279
    %v803 = vunpack.c.l.b16 %v280
    %v804 = vunpack.c.l.b16 %v281
    %v805 = vunpack.c.l.b16 %v282
    %v806 = vunpack.c.l.b16 %v283
    %v807 = vunpack.c.l.b16 %v284
    %v808 = vunpack.c.l.b16 %v285
    %v809 = vunpack.c.l.b16 %v286
    %v810 = vunpack.c.l.b16 %v287
    %v811 = vunpack.c.l.b16 %v288
    %v812 = vunpack.c.l.b16 %v289
    %v813 = vunpack.c.l.b16 %v290
    %v814 = vunpack.c.l.b16 %v291
    %v815 = vunpack.c.l.b16 %v292
    %v816 = vunpack.c.l.b16 %v293
    %v817 = vunpack.c.l.b16 %v294
    %v818 = vunpack.c.l.b16 %v295
    %v819 = vpack.c.b16 %v564, %v563
    %v820 = vpack.c.b16 %v566, %v565
    %v821 = vpack.c.b16 %v568, %v567
    %v822 = vpack.c.b16 %v570, %v569
    %v823 = vpack.c.b16 %v572, %v571
    %v824 = vpack.c.b16 %v574, %v573
    %v825 = vpack.c.b16 %v576, %v575
    %v826 = vpack.c.b16 %v578, %v577
    %v827 = vpack.c.b16 %v580, %v579
    %v828 = vpack.c.b16 %v582, %v581
    %v829 = vpack.c.b16 %v584, %v583
    %v830 = vpack.c.b16 %v586, %v585
    %v831 = vpack.c.b16 %v588, %v587
    %v832 = vpack.c.b16 %v590, %v589
    %v833 = vpack.c.b16 %v592, %v591
    %v834 = vpack.c.b16 %v594, %v593
    %v835 = vpack.c.b16 %v596, %v595
    %v836 = vpack.c.b16 %v598, %v597
    %v837 = vpack.c.b16 %v600, %v599
    %v838 = vpack.c.b16 %v602, %v601
    %v839 = vpack.c.b16 %v604, %v603
    %v840 = vpack.c.b16 %v606, %v605
    %v841 = vpack.c.b16 %v608, %v607
    %v842 = vpack.c.b16 %v610, %v609
    %v843 = vpack.c.b16 %v612, %v611
    %v844 = vpack.c.b16 %v614, %v613
    %v845 = vpack.c.b16 %v616, %v615
    %v846 = vpack.c.b16 %v618, %v617
    %v847 = vpack.c.b16 %v620, %v619
    %v848 = vpack.c.b16 %v622, %v621
    %v849 = vpack.c.b16 %v624, %v623
    %v850 = vpack.c.b16 %v626, %v625
    %v851 = vpack.c.b16 %v628, %v627
    %v852 = vpack.c.b16 %v630, %v629
    %v853 = vpack.c.b16 %v632, %v631
    %v854 = vpack.c.b16 %v634, %v633
    %v855 = vpack.c.b16 %v636, %v635
    %v856 = vpack.c.b16 %v638, %v637
    %v857 = vpack.c.b16 %v640, %v639
    %v858 = vpack.c.b16 %v642, %v641
    %v859 = vpack.c.b16 %v644, %v643
    %v860 = vpack.c.b16 %v646, %v645
    %v861 = vpack.c.b16 %v648, %v647
    %v862 = vpack.c.b16 %v650, %v649
    %v863 = vpack.c.b16 %v652, %v651
    %v864 = vpack.c.b16 %v654, %v653
    %v865 = vpack.c.b16 %v656, %v655
    %v866 = vpack.c.b16 %v658, %v657
    %v867 = vpack.c.b16 %v660, %v659
    %v868 = vpack.c.b16 %v662, %v661
    %v869 = vpack.c.b16 %v664, %v663
    %v870 = vpack.c.b16 %v666, %v665
    %v871 = vpack.c.b16 %v668, %v667
    %v872 = vpack.c.b16 %v670, %v669
    %v873 = vpack.c.b16 %v672, %v671
    %v874 = vpack.c.b16 %v674, %v673
    %v875 = vpack.c.b16 %v676, %v675
    %v876 = vpack.c.b16 %v678, %v677
    %v877 = vpack.c.b16 %v680, %v679
    %v878 = vpack.c.b16 %v682, %v681
    %v879 = vpack.c.b16 %v684, %v683
    %v880 = vpack.c.b16 %v686, %v685
    %v881 = vpack.c.b16 %v688, %v687
    %v882 = vpack.c.b16 %v690, %v689
    %v883 = vpack.c.b16 %v692, %v691
    %v884 = vpack.c.b16 %v694, %v693
    %v885 = vpack.c.b16 %v696, %v695
    %v886 = vpack.c.b16 %v698, %v697
    %v887 = vpack.c.b16 %v700, %v699
    %v888 = vpack.c.b16 %v702, %v701
    %v889 = vpack.c.b16 %v704, %v703
    %v890 = vpack.c.b16 %v706, %v705
    %v891 = vpack.c.b16 %v708, %v707
    %v892 = vpack.c.b16 %v710, %v709
    %v893 = vpack.c.b16 %v712, %v711
    %v894 = vpack.c.b16 %v714, %v713
    %v895 = vpack.c.b16 %v716, %v715
    %v896 = vpack.c.b16 %v718, %v717
    %v897 = vpack.c.b16 %v720, %v719
    %v898 = vpack.c.b16 %v722, %v721
    %v899 = vpack.c.b16 %v724, %v723
    %v900 = vpack.c.b16 %v726, %v725
    %v901 = vpack.c.b16 %v728, %v727
    %v902 = vpack.c.b16 %v730, %v729
    %v903 = vpack.c.b16 %v732, %v731
    %v904 = vpack.c.b16 %v734, %v733
    %v905 = vpack.c.b16 %v736, %v735
    %v906 = vpack.c.b16 %v738, %v737
    %v907 = vpack.c.b16 %v740, %v739
    %v908 = vpack.c.b16 %v742, %v741
    %v909 = vpack.c.b16 %v744, %v743
    %v910 = vpack.c.b16 %v746, %v745
    %v911 = vpack.c.b16 %v748, %v747
    %v912 = vpack.c.b16 %v750, %v749
    %v913 = vpack.c.b16 %v752, %v751
    %v914 = vpack.c.b16 %v754, %v753
    %v915 = vpack.c.b16 %v756, %v755
    %v916 = vpack.c.b16 %v758, %v757
    %v917 = vpack.c.b16 %v760, %v759
    %v918 = vpack.c.b16 %v762, %v761
    %v919 = vpack.c.b16 %v764, %v763
    %v920 = vpack.c.b16 %v766, %v765
    %v921 = vpack.c.b16 %v768, %v767
    %v922 = vpack.c.b16 %v770, %v769
    %v923 = vpack.c.b16 %v772, %v771
    %v924 = vpack.c.b16 %v774, %v773
    %v925 = vpack.c.b16 %v776, %v775
    %v926 = vpack.c.b16 %v778, %v777
    %v927 = vpack.c.b16 %v780, %v779
    %v928 = vpack.c.b16 %v782, %v781
    %v929 = vpack.c.b16 %v784, %v783
    %v930 = vpack.c.b16 %v786, %v785
    %v931 = vpack.c.b16 %v788, %v787
    %v932 = vpack.c.b16 %v790, %v789
    %v933 = vpack.c.b16 %v792, %v791
    %v934 = vpack.c.b16 %v794, %v793
    %v935 = vpack.c.b16 %v796, %v795
    %v936 = vpack.c.b16 %v798, %v797
    %v937 = vpack.c.b16 %v800, %v799
    %v938 = vpack.c.b16 %v802, %v801
    %v939 = vpack.c.b16 %v804, %v803
    %v940 = vpack.c.b16 %v806, %v805
    %v941 = vpack.c.b16 %v808, %v807
    %v942 = vpack.c.b16 %v810, %v809
    %v943 = vpack.c.b16 %v812, %v811
    %v944 = vpack.c.b16 %v814, %v813
    %v945 = vpack.c.b16 %v816, %v815
    %v946 = vpack.c.b16 %v818, %v817
    %v951 = vunpack.c.l.b16 %v296
    %v952 = vunpack.c.l.b16 %v297
    %v953 = vunpack.c.l.b16 %v298
    %v954 = vunpack.c.l.b16 %v299
    %v955 = vpack.c.b16 %v952, %v951
    %v956 = vpack.c.b16 %v954, %v953
    %vm958 = vcmask 220160
    %v960 = vsel %vm958, %v819, 0
    %v963 = vsel %vm958, %v820, 0
    %v966 = vsel %vm958, %v821, 0
    %v969 = vsel %vm958, %v822, 0
    %v972 = vsel %vm958, %v823, 0
    %v975 = vsel %vm958, %v824, 0
    %v978 = vsel %vm958, %v825, 0
    %v981 = vsel %vm958, %v826, 0
    %v984 = vsel %vm958, %v827, 0
    %v987 = vsel %vm958, %v828, 0
    %v990 = vsel %vm958, %v829, 0
    %v993 = vsel %vm958, %v830, 0
    %v996 = vsel %vm958, %v831, 0
    %v999 = vsel %vm958, %v832, 0
    %v1002 = vsel %vm958, %v833, 0
    %v1005 = vsel %vm958, %v834, 0
    %v1008 = vsel %vm958, %v835, 0
    %v1011 = vsel %vm958, %v836, 0
    %v1014 = vsel %vm958, %v837, 0
    %v1017 = vsel %vm958, %v838, 0
    %v1020 = vsel %vm958, %v839, 0
    %v1023 = vsel %vm958, %v840, 0
    %v1026 = vsel %vm958, %v841, 0
    %v1029 = vsel %vm958, %v842, 0
    %v1032 = vsel %vm958, %v843, 0
    %v1035 = vsel %vm958, %v844, 0
    %v1038 = vsel %vm958, %v845, 0
    %v1041 = vsel %vm958, %v846, 0
    %v1044 = vsel %vm958, %v847, 0
    %v1047 = vsel %vm958, %v848, 0
    %v1050 = vsel %vm958, %v849, 0
    %v1053 = vsel %vm958, %v850, 0
    %v1056 = vsel %vm958, %v851, 0
    %v1059 = vsel %vm958, %v852, 0
    %v1062 = vsel %vm958, %v853, 0
    %v1065 = vsel %vm958, %v854, 0
    %v1068 = vsel %vm958, %v855, 0
    %v1071 = vsel %vm958, %v856, 0
    %v1074 = vsel %vm958, %v857, 0
    %v1077 = vsel %vm958, %v858, 0
    %v1080 = vsel %vm958, %v859, 0
    %v1083 = vsel %vm958, %v860, 0
    %v1086 = vsel %vm958, %v861, 0
    %v1089 = vsel %vm958, %v862, 0
    %v1092 = vsel %vm958, %v863, 0
    %v1095 = vsel %vm958, %v864, 0
    %v1098 = vsel %vm958, %v865, 0
    %v1101 = vsel %vm958, %v866, 0
    %v1104 = vsel %vm958, %v867, 0
    %v1107 = vsel %vm958, %v868, 0
    %v1110 = vsel %vm958, %v869, 0
    %v1113 = vsel %vm958, %v870, 0
    %v1116 = vsel %vm958, %v871, 0
    %v1119 = vsel %vm958, %v872, 0
    %v1122 = vsel %vm958, %v873, 0
    %v1125 = vsel %vm958, %v874, 0
    %v1128 = vsel %vm958, %v875, 0
    %v1131 = vsel %vm958, %v876, 0
    %v1134 = vsel %vm958, %v877, 0
    %v1137 = vsel %vm958, %v878, 0
    %v1140 = vsel %vm958, %v879, 0
    %v1143 = vsel %vm958, %v880, 0
    %v1146 = vsel %vm958, %v881, 0
    %v1149 = vsel %vm958, %v882, 0
    %v1152 = vsel %vm958, %v883, 0
    %v1155 = vsel %vm958, %v884, 0
    %v1158 = vsel %vm958, %v885, 0
    %v1161 = vsel %vm958, %v886, 0
    %v1164 = vsel %vm958, %v887, 0
    %v1167 = vsel %vm958, %v888, 0
    %v1170 = vsel %vm958, %v889, 0
    %v1173 = vsel %vm958, %v890, 0
    %v1176 = vsel %vm958, %v891, 0
    %v1179 = vsel %vm958, %v892, 0
    %v1182 = vsel %vm958, %v893, 0
    %v1185 = vsel %vm958, %v894, 0
    %v1188 = vsel %vm958, %v895, 0
    %v1191 = vsel %vm958, %v896, 0
    %v1194 = vsel %vm958, %v897, 0
    %v1197 = vsel %vm958, %v898, 0
    %v1200 = vsel %vm958, %v899, 0
    %v1203 = vsel %vm958, %v900, 0
    %v1206 = vsel %vm958, %v901, 0
    %v1209 = vsel %vm958, %v902, 0
    %v1212 = vsel %vm958, %v903, 0
    %v1215 = vsel %vm958, %v904, 0
    %v1218 = vsel %vm958, %v905, 0
    %v1221 = vsel %vm958, %v906, 0
    %v1224 = vsel %vm958, %v907, 0
    %v1227 = vsel %vm958, %v908, 0
    %v1230 = vsel %vm958, %v909, 0
    %v1233 = vsel %vm958, %v910, 0
    %v1236 = vsel %vm958, %v911, 0
    %v1239 = vsel %vm958, %v912, 0
    %v1242 = vsel %vm958, %v913, 0
    %v1245 = vsel %vm958, %v914, 0
    %v1248 = vsel %vm958, %v915, 0
    %v1251 = vsel %vm958, %v916, 0
    %v1254 = vsel %vm958, %v917, 0
    %v1257 = vsel %vm958, %v918, 0
    %v1260 = vsel %vm958, %v919, 0
    %v1263 = vsel %vm958, %v920, 0
    %v1266 = vsel %vm958, %v921, 0
    %v1269 = vsel %vm958, %v922, 0
    %v1272 = vsel %vm958, %v923, 0
    %v1275 = vsel %vm958, %v924, 0
    %v1278 = vsel %vm958, %v925, 0
    %v1281 = vsel %vm958, %v926, 0
    %v1284 = vsel %vm958, %v927, 0
    %v1287 = vsel %vm958, %v928, 0
    %v1290 = vsel %vm958, %v929, 0
    %v1293 = vsel %vm958, %v930, 0
    %v1296 = vsel %vm958, %v931, 0
    %v1299 = vsel %vm958, %v932, 0
    %v1302 = vsel %vm958, %v933, 0
    %v1305 = vsel %vm958, %v934, 0
    %v1308 = vsel %vm958, %v935, 0
    %v1311 = vsel %vm958, %v936, 0
    %v1314 = vsel %vm958, %v937, 0
    %v1317 = vsel %vm958, %v938, 0
    %v1320 = vsel %vm958, %v939, 0
    %v1323 = vsel %vm958, %v940, 0
    %v1326 = vsel %vm958, %v941, 0
    %v1329 = vsel %vm958, %v942, 0
    %v1332 = vsel %vm958, %v943, 0
    %v1335 = vsel %vm958, %v944, 0
    %v1338 = vsel %vm958, %v945, 0
    %v1341 = vsel %vm958, %v946, 0
    %vm1343 = vcmask 1044480
    %vm1344 = vcmask 1045504
    %v1345 = vsel %vm1343, 4294967295, 65535
    %v1346 = vsel %vm1344, %v1345, 0
    %v1348 = vand.u32 %v956, %v1346
    %1350 = vmatprep.subr.bf16.mxu0 0
    %1351 = vmatpush1.bf16.msra.mxu0 0
    %1352 = vmatprep.subr.bf16.mxu0 0
    %1353 = vmatpush1.bf16.msra.mxu0 0
    %1354 = vmatprep.subr.bf16.mxu0 0
    %1355 = vmatpush1.bf16.msra.mxu0 0
    %1356 = vmatprep.subr.bf16.mxu0 0
    %1357 = vmatpush1.bf16.msra.mxu0 0
    %1358 = vmatprep.subr.bf16.mxu0 0
    %1359 = vmatpush1.bf16.msra.mxu0 0
    %1360 = vmatprep.subr.bf16.mxu0 0
    %1361 = vmatpush1.bf16.msra.mxu0 0
    %1362 = vmatprep.subr.bf16.mxu0 0
    %1363 = vmatpush1.bf16.msra.mxu0 %v1348
    %1364 = vmatprep.subr.bf16.mxu0 0
    %1365 = vmatpush1.bf16.msra.mxu0 %v955
    %1366 = vmatprep.subr.bf16.mxu0 0
    %1367 = vmatpush2.bf16.msra.mxu0 0
    %1368 = vmatprep.subr.bf16.mxu0 0
    %1369 = vmatpush2.bf16.msra.mxu0 0
    %1370 = vmatprep.subr.bf16.mxu0 0
    %1371 = vmatpush2.bf16.msra.mxu0 0
    %1372 = vmatprep.subr.bf16.mxu0 0
    %1373 = vmatpush2.bf16.msra.mxu0 0
    %1374 = vmatprep.subr.bf16.mxu0 0
    %1375 = vmatpush2.bf16.msra.mxu0 0
    %1376 = vmatprep.subr.bf16.mxu0 0
    %1377 = vmatpush2.bf16.msra.mxu0 0
    %1378 = vmatprep.subr.bf16.mxu0 0
    %1379 = vmatpush2.bf16.msra.mxu0 0
    %1380 = vmatprep.subr.bf16.mxu0 0
    %1381 = vmatpush2.bf16.msra.mxu0 0
    %1382 = vmatprep.mubr.bf16.mxu0 0
    %1383 = vmatmul.mubr.bf16.gmra.mxu0 %v960
    %v1384 = vpop.f32.mrf.mxu0
    %v1385 = vadd.f32 %v305, %v1384
    %v1386 = vpop.f32.mrf.mxu0
    %v1387 = vpop.f32.mrf.mxu0
    %v1388 = vadd.f32 %v305, %v1387
    %v1389 = vpop.f32.mrf.mxu0
    %1390 = vmatprep.mubr.bf16.mxu0 0
    %1391 = vmatmul.mubr.bf16.gmra.mxu0 %v963
    %v1392 = vpop.f32.mrf.mxu0
    %v1393 = vadd.f32 %v305, %v1392
    %v1394 = vpop.f32.mrf.mxu0
    %v1395 = vpop.f32.mrf.mxu0
    %v1396 = vadd.f32 %v305, %v1395
    %v1397 = vpop.f32.mrf.mxu0
    %1398 = vmatprep.mubr.bf16.mxu0 0
    %1399 = vmatmul.mubr.bf16.gmra.mxu0 %v966
    %v1400 = vpop.f32.mrf.mxu0
    %v1401 = vadd.f32 %v305, %v1400
    %v1402 = vpop.f32.mrf.mxu0
    %v1403 = vpop.f32.mrf.mxu0
    %v1404 = vadd.f32 %v305, %v1403
    %v1405 = vpop.f32.mrf.mxu0
    %1406 = vmatprep.mubr.bf16.mxu0 0
    %1407 = vmatmul.mubr.bf16.gmra.mxu0 %v969
    %v1408 = vpop.f32.mrf.mxu0
    %v1409 = vadd.f32 %v305, %v1408
    %v1410 = vpop.f32.mrf.mxu0
    %v1411 = vpop.f32.mrf.mxu0
    %v1412 = vadd.f32 %v305, %v1411
    %v1413 = vpop.f32.mrf.mxu0
    %1414 = vmatprep.mubr.bf16.mxu0 0
    %1415 = vmatmul.mubr.bf16.gmra.mxu0 %v972
    %v1416 = vpop.f32.mrf.mxu0
    %v1417 = vadd.f32 %v305, %v1416
    %v1418 = vpop.f32.mrf.mxu0
    %v1419 = vpop.f32.mrf.mxu0
    %v1420 = vadd.f32 %v305, %v1419
    %v1421 = vpop.f32.mrf.mxu0
    %1422 = vmatprep.mubr.bf16.mxu0 0
    %1423 = vmatmul.mubr.bf16.gmra.mxu0 %v975
    %v1424 = vpop.f32.mrf.mxu0
    %v1425 = vadd.f32 %v305, %v1424
    %v1426 = vpop.f32.mrf.mxu0
    %v1427 = vpop.f32.mrf.mxu0
    %v1428 = vadd.f32 %v305, %v1427
    %v1429 = vpop.f32.mrf.mxu0
    %1430 = vmatprep.mubr.bf16.mxu0 0
    %1431 = vmatmul.mubr.bf16.gmra.mxu0 %v978
    %v1432 = vpop.f32.mrf.mxu0
    %v1433 = vadd.f32 %v305, %v1432
    %v1434 = vpop.f32.mrf.mxu0
    %v1435 = vpop.f32.mrf.mxu0
    %v1436 = vadd.f32 %v305, %v1435
    %v1437 = vpop.f32.mrf.mxu0
    %1438 = vmatprep.mubr.bf16.mxu0 0
    %1439 = vmatmul.mubr.bf16.gmra.mxu0 %v981
    %v1440 = vpop.f32.mrf.mxu0
    %v1441 = vadd.f32 %v305, %v1440
    %v1442 = vpop.f32.mrf.mxu0
    %v1443 = vpop.f32.mrf.mxu0
    %v1444 = vadd.f32 %v305, %v1443
    %v1445 = vpop.f32.mrf.mxu0
    %1446 = vmatprep.mubr.bf16.mxu0 0
    %1447 = vmatmul.mubr.bf16.gmra.mxu0 %v984
    %v1448 = vpop.f32.mrf.mxu0
    %v1449 = vadd.f32 %v305, %v1448
    %v1450 = vpop.f32.mrf.mxu0
    %v1451 = vpop.f32.mrf.mxu0
    %v1452 = vadd.f32 %v305, %v1451
    %v1453 = vpop.f32.mrf.mxu0
    %1454 = vmatprep.mubr.bf16.mxu0 0
    %1455 = vmatmul.mubr.bf16.gmra.mxu0 %v987
    %v1456 = vpop.f32.mrf.mxu0
    %v1457 = vadd.f32 %v305, %v1456
    %v1458 = vpop.f32.mrf.mxu0
    %v1459 = vpop.f32.mrf.mxu0
    %v1460 = vadd.f32 %v305, %v1459
    %v1461 = vpop.f32.mrf.mxu0
    %1462 = vmatprep.mubr.bf16.mxu0 0
    %1463 = vmatmul.mubr.bf16.gmra.mxu0 %v990
    %v1464 = vpop.f32.mrf.mxu0
    %v1465 = vadd.f32 %v305, %v1464
    %v1466 = vpop.f32.mrf.mxu0
    %v1467 = vpop.f32.mrf.mxu0
    %v1468 = vadd.f32 %v305, %v1467
    %v1469 = vpop.f32.mrf.mxu0
    %1470 = vmatprep.mubr.bf16.mxu0 0
    %1471 = vmatmul.mubr.bf16.gmra.mxu0 %v993
    %v1472 = vpop.f32.mrf.mxu0
    %v1473 = vadd.f32 %v305, %v1472
    %v1474 = vpop.f32.mrf.mxu0
    %v1475 = vpop.f32.mrf.mxu0
    %v1476 = vadd.f32 %v305, %v1475
    %v1477 = vpop.f32.mrf.mxu0
    %1478 = vmatprep.mubr.bf16.mxu0 0
    %1479 = vmatmul.mubr.bf16.gmra.mxu0 %v996
    %v1480 = vpop.f32.mrf.mxu0
    %v1481 = vadd.f32 %v305, %v1480
    %v1482 = vpop.f32.mrf.mxu0
    %v1483 = vpop.f32.mrf.mxu0
    %v1484 = vadd.f32 %v305, %v1483
    %v1485 = vpop.f32.mrf.mxu0
    %1486 = vmatprep.mubr.bf16.mxu0 0
    %1487 = vmatmul.mubr.bf16.gmra.mxu0 %v999
    %v1488 = vpop.f32.mrf.mxu0
    %v1489 = vadd.f32 %v305, %v1488
    %v1490 = vpop.f32.mrf.mxu0
    %v1491 = vpop.f32.mrf.mxu0
    %v1492 = vadd.f32 %v305, %v1491
    %v1493 = vpop.f32.mrf.mxu0
    %1494 = vmatprep.mubr.bf16.mxu0 0
    %1495 = vmatmul.mubr.bf16.gmra.mxu0 %v1002
    %v1496 = vpop.f32.mrf.mxu0
    %v1497 = vadd.f32 %v305, %v1496
    %v1498 = vpop.f32.mrf.mxu0
    %v1499 = vpop.f32.mrf.mxu0
    %v1500 = vadd.f32 %v305, %v1499
    %v1501 = vpop.f32.mrf.mxu0
    %1502 = vmatprep.mubr.bf16.mxu0 0
    %1503 = vmatmul.mubr.bf16.gmra.mxu0 %v1005
    %v1504 = vpop.f32.mrf.mxu0
    %v1505 = vadd.f32 %v305, %v1504
    %v1506 = vpop.f32.mrf.mxu0
    %v1507 = vpop.f32.mrf.mxu0
    %v1508 = vadd.f32 %v305, %v1507
    %v1509 = vpop.f32.mrf.mxu0
    %1510 = vmatprep.mubr.bf16.mxu0 0
    %1511 = vmatmul.mubr.bf16.gmra.mxu0 %v1008
    %v1512 = vpop.f32.mrf.mxu0
    %v1513 = vadd.f32 %v305, %v1512
    %v1514 = vpop.f32.mrf.mxu0
    %v1515 = vpop.f32.mrf.mxu0
    %v1516 = vadd.f32 %v305, %v1515
    %v1517 = vpop.f32.mrf.mxu0
    %1518 = vmatprep.mubr.bf16.mxu0 0
    %1519 = vmatmul.mubr.bf16.gmra.mxu0 %v1011
    %v1520 = vpop.f32.mrf.mxu0
    %v1521 = vadd.f32 %v305, %v1520
    %v1522 = vpop.f32.mrf.mxu0
    %v1523 = vpop.f32.mrf.mxu0
    %v1524 = vadd.f32 %v305, %v1523
    %v1525 = vpop.f32.mrf.mxu0
    %1526 = vmatprep.mubr.bf16.mxu0 0
    %1527 = vmatmul.mubr.bf16.gmra.mxu0 %v1014
    %v1528 = vpop.f32.mrf.mxu0
    %v1529 = vadd.f32 %v305, %v1528
    %v1530 = vpop.f32.mrf.mxu0
    %v1531 = vpop.f32.mrf.mxu0
    %v1532 = vadd.f32 %v305, %v1531
    %v1533 = vpop.f32.mrf.mxu0
    %1534 = vmatprep.mubr.bf16.mxu0 0
    %1535 = vmatmul.mubr.bf16.gmra.mxu0 %v1017
    %v1536 = vpop.f32.mrf.mxu0
    %v1537 = vadd.f32 %v305, %v1536
    %v1538 = vpop.f32.mrf.mxu0
    %v1539 = vpop.f32.mrf.mxu0
    %v1540 = vadd.f32 %v305, %v1539
    %v1541 = vpop.f32.mrf.mxu0
    %1542 = vmatprep.mubr.bf16.mxu0 0
    %1543 = vmatmul.mubr.bf16.gmra.mxu0 %v1020
    %v1544 = vpop.f32.mrf.mxu0
    %v1545 = vadd.f32 %v305, %v1544
    %v1546 = vpop.f32.mrf.mxu0
    %v1547 = vpop.f32.mrf.mxu0
    %v1548 = vadd.f32 %v305, %v1547
    %v1549 = vpop.f32.mrf.mxu0
    %1550 = vmatprep.mubr.bf16.mxu0 0
    %1551 = vmatmul.mubr.bf16.gmra.mxu0 %v1023
    %v1552 = vpop.f32.mrf.mxu0
    %v1553 = vadd.f32 %v305, %v1552
    %v1554 = vpop.f32.mrf.mxu0
    %v1555 = vpop.f32.mrf.mxu0
    %v1556 = vadd.f32 %v305, %v1555
    %v1557 = vpop.f32.mrf.mxu0
    %1558 = vmatprep.mubr.bf16.mxu0 0
    %1559 = vmatmul.mubr.bf16.gmra.mxu0 %v1026
    %v1560 = vpop.f32.mrf.mxu0
    %v1561 = vadd.f32 %v305, %v1560
    %v1562 = vpop.f32.mrf.mxu0
    %v1563 = vpop.f32.mrf.mxu0
    %v1564 = vadd.f32 %v305, %v1563
    %v1565 = vpop.f32.mrf.mxu0
    %1566 = vmatprep.mubr.bf16.mxu0 0
    %1567 = vmatmul.mubr.bf16.gmra.mxu0 %v1029
    %v1568 = vpop.f32.mrf.mxu0
    %v1569 = vadd.f32 %v305, %v1568
    %v1570 = vpop.f32.mrf.mxu0
    %v1571 = vpop.f32.mrf.mxu0
    %v1572 = vadd.f32 %v305, %v1571
    %v1573 = vpop.f32.mrf.mxu0
    %1574 = vmatprep.mubr.bf16.mxu0 0
    %1575 = vmatmul.mubr.bf16.gmra.mxu0 %v1032
    %v1576 = vpop.f32.mrf.mxu0
    %v1577 = vadd.f32 %v305, %v1576
    %v1578 = vpop.f32.mrf.mxu0
    %v1579 = vpop.f32.mrf.mxu0
    %v1580 = vadd.f32 %v305, %v1579
    %v1581 = vpop.f32.mrf.mxu0
    %1582 = vmatprep.mubr.bf16.mxu0 0
    %1583 = vmatmul.mubr.bf16.gmra.mxu0 %v1035
    %v1584 = vpop.f32.mrf.mxu0
    %v1585 = vadd.f32 %v305, %v1584
    %v1586 = vpop.f32.mrf.mxu0
    %v1587 = vpop.f32.mrf.mxu0
    %v1588 = vadd.f32 %v305, %v1587
    %v1589 = vpop.f32.mrf.mxu0
    %1590 = vmatprep.mubr.bf16.mxu0 0
    %1591 = vmatmul.mubr.bf16.gmra.mxu0 %v1038
    %v1592 = vpop.f32.mrf.mxu0
    %v1593 = vadd.f32 %v305, %v1592
    %v1594 = vpop.f32.mrf.mxu0
    %v1595 = vpop.f32.mrf.mxu0
    %v1596 = vadd.f32 %v305, %v1595
    %v1597 = vpop.f32.mrf.mxu0
    %1598 = vmatprep.mubr.bf16.mxu0 0
    %1599 = vmatmul.mubr.bf16.gmra.mxu0 %v1041
    %v1600 = vpop.f32.mrf.mxu0
    %v1601 = vadd.f32 %v305, %v1600
    %v1602 = vpop.f32.mrf.mxu0
    %v1603 = vpop.f32.mrf.mxu0
    %v1604 = vadd.f32 %v305, %v1603
    %v1605 = vpop.f32.mrf.mxu0
    %1606 = vmatprep.mubr.bf16.mxu0 0
    %1607 = vmatmul.mubr.bf16.gmra.mxu0 %v1044
    %v1608 = vpop.f32.mrf.mxu0
    %v1609 = vadd.f32 %v305, %v1608
    %v1610 = vpop.f32.mrf.mxu0
    %v1611 = vpop.f32.mrf.mxu0
    %v1612 = vadd.f32 %v305, %v1611
    %v1613 = vpop.f32.mrf.mxu0
    %1614 = vmatprep.mubr.bf16.mxu0 0
    %1615 = vmatmul.mubr.bf16.gmra.mxu0 %v1047
    %v1616 = vpop.f32.mrf.mxu0
    %v1617 = vadd.f32 %v305, %v1616
    %v1618 = vpop.f32.mrf.mxu0
    %v1619 = vpop.f32.mrf.mxu0
    %v1620 = vadd.f32 %v305, %v1619
    %v1621 = vpop.f32.mrf.mxu0
    %1622 = vmatprep.mubr.bf16.mxu0 0
    %1623 = vmatmul.mubr.bf16.gmra.mxu0 %v1050
    %v1624 = vpop.f32.mrf.mxu0
    %v1625 = vadd.f32 %v305, %v1624
    %v1626 = vpop.f32.mrf.mxu0
    %v1627 = vpop.f32.mrf.mxu0
    %v1628 = vadd.f32 %v305, %v1627
    %v1629 = vpop.f32.mrf.mxu0
    %1630 = vmatprep.mubr.bf16.mxu0 0
    %1631 = vmatmul.mubr.bf16.gmra.mxu0 %v1053
    %v1632 = vpop.f32.mrf.mxu0
    %v1633 = vadd.f32 %v305, %v1632
    %v1634 = vpop.f32.mrf.mxu0
    %v1635 = vpop.f32.mrf.mxu0
    %v1636 = vadd.f32 %v305, %v1635
    %v1637 = vpop.f32.mrf.mxu0
    %1638 = vmatprep.mubr.bf16.mxu0 0
    %1639 = vmatmul.mubr.bf16.gmra.mxu0 %v1056
    %v1640 = vpop.f32.mrf.mxu0
    %v1641 = vadd.f32 %v305, %v1640
    %v1642 = vpop.f32.mrf.mxu0
    %v1643 = vpop.f32.mrf.mxu0
    %v1644 = vadd.f32 %v305, %v1643
    %v1645 = vpop.f32.mrf.mxu0
    %1646 = vmatprep.mubr.bf16.mxu0 0
    %1647 = vmatmul.mubr.bf16.gmra.mxu0 %v1059
    %v1648 = vpop.f32.mrf.mxu0
    %v1649 = vadd.f32 %v305, %v1648
    %v1650 = vpop.f32.mrf.mxu0
    %v1651 = vpop.f32.mrf.mxu0
    %v1652 = vadd.f32 %v305, %v1651
    %v1653 = vpop.f32.mrf.mxu0
    %1654 = vmatprep.mubr.bf16.mxu0 0
    %1655 = vmatmul.mubr.bf16.gmra.mxu0 %v1062
    %v1656 = vpop.f32.mrf.mxu0
    %v1657 = vadd.f32 %v305, %v1656
    %v1658 = vpop.f32.mrf.mxu0
    %v1659 = vpop.f32.mrf.mxu0
    %v1660 = vadd.f32 %v305, %v1659
    %v1661 = vpop.f32.mrf.mxu0
    %1662 = vmatprep.mubr.bf16.mxu0 0
    %1663 = vmatmul.mubr.bf16.gmra.mxu0 %v1065
    %v1664 = vpop.f32.mrf.mxu0
    %v1665 = vadd.f32 %v305, %v1664
    %v1666 = vpop.f32.mrf.mxu0
    %v1667 = vpop.f32.mrf.mxu0
    %v1668 = vadd.f32 %v305, %v1667
    %v1669 = vpop.f32.mrf.mxu0
    %1670 = vmatprep.mubr.bf16.mxu0 0
    %1671 = vmatmul.mubr.bf16.gmra.mxu0 %v1068
    %v1672 = vpop.f32.mrf.mxu0
    %v1673 = vadd.f32 %v305, %v1672
    %v1674 = vpop.f32.mrf.mxu0
    %v1675 = vpop.f32.mrf.mxu0
    %v1676 = vadd.f32 %v305, %v1675
    %v1677 = vpop.f32.mrf.mxu0
    %1678 = vmatprep.mubr.bf16.mxu0 0
    %1679 = vmatmul.mubr.bf16.gmra.mxu0 %v1071
    %v1680 = vpop.f32.mrf.mxu0
    %v1681 = vadd.f32 %v305, %v1680
    %v1682 = vpop.f32.mrf.mxu0
    %v1683 = vpop.f32.mrf.mxu0
    %v1684 = vadd.f32 %v305, %v1683
    %v1685 = vpop.f32.mrf.mxu0
    %1686 = vmatprep.mubr.bf16.mxu0 0
    %1687 = vmatmul.mubr.bf16.gmra.mxu0 %v1074
    %v1688 = vpop.f32.mrf.mxu0
    %v1689 = vadd.f32 %v305, %v1688
    %v1690 = vpop.f32.mrf.mxu0
    %v1691 = vpop.f32.mrf.mxu0
    %v1692 = vadd.f32 %v305, %v1691
    %v1693 = vpop.f32.mrf.mxu0
    %1694 = vmatprep.mubr.bf16.mxu0 0
    %1695 = vmatmul.mubr.bf16.gmra.mxu0 %v1077
    %v1696 = vpop.f32.mrf.mxu0
    %v1697 = vadd.f32 %v305, %v1696
    %v1698 = vpop.f32.mrf.mxu0
    %v1699 = vpop.f32.mrf.mxu0
    %v1700 = vadd.f32 %v305, %v1699
    %v1701 = vpop.f32.mrf.mxu0
    %1702 = vmatprep.mubr.bf16.mxu0 0
    %1703 = vmatmul.mubr.bf16.gmra.mxu0 %v1080
    %v1704 = vpop.f32.mrf.mxu0
    %v1705 = vadd.f32 %v305, %v1704
    %v1706 = vpop.f32.mrf.mxu0
    %v1707 = vpop.f32.mrf.mxu0
    %v1708 = vadd.f32 %v305, %v1707
    %v1709 = vpop.f32.mrf.mxu0
    %1710 = vmatprep.mubr.bf16.mxu0 0
    %1711 = vmatmul.mubr.bf16.gmra.mxu0 %v1083
    %v1712 = vpop.f32.mrf.mxu0
    %v1713 = vadd.f32 %v305, %v1712
    %v1714 = vpop.f32.mrf.mxu0
    %v1715 = vpop.f32.mrf.mxu0
    %v1716 = vadd.f32 %v305, %v1715
    %v1717 = vpop.f32.mrf.mxu0
    %1718 = vmatprep.mubr.bf16.mxu0 0
    %1719 = vmatmul.mubr.bf16.gmra.mxu0 %v1086
    %v1720 = vpop.f32.mrf.mxu0
    %v1721 = vadd.f32 %v305, %v1720
    %v1722 = vpop.f32.mrf.mxu0
    %v1723 = vpop.f32.mrf.mxu0
    %v1724 = vadd.f32 %v305, %v1723
    %v1725 = vpop.f32.mrf.mxu0
    %1726 = vmatprep.mubr.bf16.mxu0 0
    %1727 = vmatmul.mubr.bf16.gmra.mxu0 %v1089
    %v1728 = vpop.f32.mrf.mxu0
    %v1729 = vadd.f32 %v305, %v1728
    %v1730 = vpop.f32.mrf.mxu0
    %v1731 = vpop.f32.mrf.mxu0
    %v1732 = vadd.f32 %v305, %v1731
    %v1733 = vpop.f32.mrf.mxu0
    %1734 = vmatprep.mubr.bf16.mxu0 0
    %1735 = vmatmul.mubr.bf16.gmra.mxu0 %v1092
    %v1736 = vpop.f32.mrf.mxu0
    %v1737 = vadd.f32 %v305, %v1736
    %v1738 = vpop.f32.mrf.mxu0
    %v1739 = vpop.f32.mrf.mxu0
    %v1740 = vadd.f32 %v305, %v1739
    %v1741 = vpop.f32.mrf.mxu0
    %1742 = vmatprep.mubr.bf16.mxu0 0
    %1743 = vmatmul.mubr.bf16.gmra.mxu0 %v1095
    %v1744 = vpop.f32.mrf.mxu0
    %v1745 = vadd.f32 %v305, %v1744
    %v1746 = vpop.f32.mrf.mxu0
    %v1747 = vpop.f32.mrf.mxu0
    %v1748 = vadd.f32 %v305, %v1747
    %v1749 = vpop.f32.mrf.mxu0
    %1750 = vmatprep.mubr.bf16.mxu0 0
    %1751 = vmatmul.mubr.bf16.gmra.mxu0 %v1098
    %v1752 = vpop.f32.mrf.mxu0
    %v1753 = vadd.f32 %v305, %v1752
    %v1754 = vpop.f32.mrf.mxu0
    %v1755 = vpop.f32.mrf.mxu0
    %v1756 = vadd.f32 %v305, %v1755
    %v1757 = vpop.f32.mrf.mxu0
    %1758 = vmatprep.mubr.bf16.mxu0 0
    %1759 = vmatmul.mubr.bf16.gmra.mxu0 %v1101
    %v1760 = vpop.f32.mrf.mxu0
    %v1761 = vadd.f32 %v305, %v1760
    %v1762 = vpop.f32.mrf.mxu0
    %v1763 = vpop.f32.mrf.mxu0
    %v1764 = vadd.f32 %v305, %v1763
    %v1765 = vpop.f32.mrf.mxu0
    %1766 = vmatprep.mubr.bf16.mxu0 0
    %1767 = vmatmul.mubr.bf16.gmra.mxu0 %v1104
    %v1768 = vpop.f32.mrf.mxu0
    %v1769 = vadd.f32 %v305, %v1768
    %v1770 = vpop.f32.mrf.mxu0
    %v1771 = vpop.f32.mrf.mxu0
    %v1772 = vadd.f32 %v305, %v1771
    %v1773 = vpop.f32.mrf.mxu0
    %1774 = vmatprep.mubr.bf16.mxu0 0
    %1775 = vmatmul.mubr.bf16.gmra.mxu0 %v1107
    %v1776 = vpop.f32.mrf.mxu0
    %v1777 = vadd.f32 %v305, %v1776
    %v1778 = vpop.f32.mrf.mxu0
    %v1779 = vpop.f32.mrf.mxu0
    %v1780 = vadd.f32 %v305, %v1779
    %v1781 = vpop.f32.mrf.mxu0
    %1782 = vmatprep.mubr.bf16.mxu0 0
    %1783 = vmatmul.mubr.bf16.gmra.mxu0 %v1110
    %v1784 = vpop.f32.mrf.mxu0
    %v1785 = vadd.f32 %v305, %v1784
    %v1786 = vpop.f32.mrf.mxu0
    %v1787 = vpop.f32.mrf.mxu0
    %v1788 = vadd.f32 %v305, %v1787
    %v1789 = vpop.f32.mrf.mxu0
    %1790 = vmatprep.mubr.bf16.mxu0 0
    %1791 = vmatmul.mubr.bf16.gmra.mxu0 %v1113
    %v1792 = vpop.f32.mrf.mxu0
    %v1793 = vadd.f32 %v305, %v1792
    %v1794 = vpop.f32.mrf.mxu0
    %v1795 = vpop.f32.mrf.mxu0
    %v1796 = vadd.f32 %v305, %v1795
    %v1797 = vpop.f32.mrf.mxu0
    %1798 = vmatprep.mubr.bf16.mxu0 0
    %1799 = vmatmul.mubr.bf16.gmra.mxu0 %v1116
    %v1800 = vpop.f32.mrf.mxu0
    %v1801 = vadd.f32 %v305, %v1800
    %v1802 = vpop.f32.mrf.mxu0
    %v1803 = vpop.f32.mrf.mxu0
    %v1804 = vadd.f32 %v305, %v1803
    %v1805 = vpop.f32.mrf.mxu0
    %1806 = vmatprep.mubr.bf16.mxu0 0
    %1807 = vmatmul.mubr.bf16.gmra.mxu0 %v1119
    %v1808 = vpop.f32.mrf.mxu0
    %v1809 = vadd.f32 %v305, %v1808
    %v1810 = vpop.f32.mrf.mxu0
    %v1811 = vpop.f32.mrf.mxu0
    %v1812 = vadd.f32 %v305, %v1811
    %v1813 = vpop.f32.mrf.mxu0
    %1814 = vmatprep.mubr.bf16.mxu0 0
    %1815 = vmatmul.mubr.bf16.gmra.mxu0 %v1122
    %v1816 = vpop.f32.mrf.mxu0
    %v1817 = vadd.f32 %v305, %v1816
    %v1818 = vpop.f32.mrf.mxu0
    %v1819 = vpop.f32.mrf.mxu0
    %v1820 = vadd.f32 %v305, %v1819
    %v1821 = vpop.f32.mrf.mxu0
    %1822 = vmatprep.mubr.bf16.mxu0 0
    %1823 = vmatmul.mubr.bf16.gmra.mxu0 %v1125
    %v1824 = vpop.f32.mrf.mxu0
    %v1825 = vadd.f32 %v305, %v1824
    %v1826 = vpop.f32.mrf.mxu0
    %v1827 = vpop.f32.mrf.mxu0
    %v1828 = vadd.f32 %v305, %v1827
    %v1829 = vpop.f32.mrf.mxu0
    %1830 = vmatprep.mubr.bf16.mxu0 0
    %1831 = vmatmul.mubr.bf16.gmra.mxu0 %v1128
    %v1832 = vpop.f32.mrf.mxu0
    %v1833 = vadd.f32 %v305, %v1832
    %v1834 = vpop.f32.mrf.mxu0
    %v1835 = vpop.f32.mrf.mxu0
    %v1836 = vadd.f32 %v305, %v1835
    %v1837 = vpop.f32.mrf.mxu0
    %1838 = vmatprep.mubr.bf16.mxu0 0
    %1839 = vmatmul.mubr.bf16.gmra.mxu0 %v1131
    %v1840 = vpop.f32.mrf.mxu0
    %v1841 = vadd.f32 %v305, %v1840
    %v1842 = vpop.f32.mrf.mxu0
    %v1843 = vpop.f32.mrf.mxu0
    %v1844 = vadd.f32 %v305, %v1843
    %v1845 = vpop.f32.mrf.mxu0
    %1846 = vmatprep.mubr.bf16.mxu0 0
    %1847 = vmatmul.mubr.bf16.gmra.mxu0 %v1134
    %v1848 = vpop.f32.mrf.mxu0
    %v1849 = vadd.f32 %v305, %v1848
    %v1850 = vpop.f32.mrf.mxu0
    %v1851 = vpop.f32.mrf.mxu0
    %v1852 = vadd.f32 %v305, %v1851
    %v1853 = vpop.f32.mrf.mxu0
    %1854 = vmatprep.mubr.bf16.mxu0 0
    %1855 = vmatmul.mubr.bf16.gmra.mxu0 %v1137
    %v1856 = vpop.f32.mrf.mxu0
    %v1857 = vadd.f32 %v305, %v1856
    %v1858 = vpop.f32.mrf.mxu0
    %v1859 = vpop.f32.mrf.mxu0
    %v1860 = vadd.f32 %v305, %v1859
    %v1861 = vpop.f32.mrf.mxu0
    %1862 = vmatprep.mubr.bf16.mxu0 0
    %1863 = vmatmul.mubr.bf16.gmra.mxu0 %v1140
    %v1864 = vpop.f32.mrf.mxu0
    %v1865 = vadd.f32 %v305, %v1864
    %v1866 = vpop.f32.mrf.mxu0
    %v1867 = vpop.f32.mrf.mxu0
    %v1868 = vadd.f32 %v305, %v1867
    %v1869 = vpop.f32.mrf.mxu0
    %1870 = vmatprep.mubr.bf16.mxu0 0
    %1871 = vmatmul.mubr.bf16.gmra.mxu0 %v1143
    %v1872 = vpop.f32.mrf.mxu0
    %v1873 = vadd.f32 %v305, %v1872
    %v1874 = vpop.f32.mrf.mxu0
    %v1875 = vpop.f32.mrf.mxu0
    %v1876 = vadd.f32 %v305, %v1875
    %v1877 = vpop.f32.mrf.mxu0
    %1878 = vmatprep.mubr.bf16.mxu0 0
    %1879 = vmatmul.mubr.bf16.gmra.mxu0 %v1146
    %v1880 = vpop.f32.mrf.mxu0
    %v1881 = vadd.f32 %v305, %v1880
    %v1882 = vpop.f32.mrf.mxu0
    %v1883 = vpop.f32.mrf.mxu0
    %v1884 = vadd.f32 %v305, %v1883
    %v1885 = vpop.f32.mrf.mxu0
    %1886 = vmatprep.mubr.bf16.mxu0 0
    %1887 = vmatmul.mubr.bf16.gmra.mxu0 %v1149
    %v1888 = vpop.f32.mrf.mxu0
    %v1889 = vadd.f32 %v305, %v1888
    %v1890 = vpop.f32.mrf.mxu0
    %v1891 = vpop.f32.mrf.mxu0
    %v1892 = vadd.f32 %v305, %v1891
    %v1893 = vpop.f32.mrf.mxu0
    %1894 = vmatprep.mubr.bf16.mxu0 0
    %1895 = vmatmul.mubr.bf16.gmra.mxu0 %v1152
    %v1896 = vpop.f32.mrf.mxu0
    %v1897 = vadd.f32 %v305, %v1896
    %v1898 = vpop.f32.mrf.mxu0
    %v1899 = vpop.f32.mrf.mxu0
    %v1900 = vadd.f32 %v305, %v1899
    %v1901 = vpop.f32.mrf.mxu0
    %1902 = vmatprep.mubr.bf16.mxu0 0
    %1903 = vmatmul.mubr.bf16.gmra.mxu0 %v1155
    %v1904 = vpop.f32.mrf.mxu0
    %v1905 = vadd.f32 %v305, %v1904
    %v1906 = vpop.f32.mrf.mxu0
    %v1907 = vpop.f32.mrf.mxu0
    %v1908 = vadd.f32 %v305, %v1907
    %v1909 = vpop.f32.mrf.mxu0
    %1910 = vmatprep.mubr.bf16.mxu0 0
    %1911 = vmatmul.mubr.bf16.gmra.mxu0 %v1158
    %v1912 = vpop.f32.mrf.mxu0
    %v1913 = vadd.f32 %v305, %v1912
    %v1914 = vpop.f32.mrf.mxu0
    %v1915 = vpop.f32.mrf.mxu0
    %v1916 = vadd.f32 %v305, %v1915
    %v1917 = vpop.f32.mrf.mxu0
    %1918 = vmatprep.mubr.bf16.mxu0 0
    %1919 = vmatmul.mubr.bf16.gmra.mxu0 %v1161
    %v1920 = vpop.f32.mrf.mxu0
    %v1921 = vadd.f32 %v305, %v1920
    %v1922 = vpop.f32.mrf.mxu0
    %v1923 = vpop.f32.mrf.mxu0
    %v1924 = vadd.f32 %v305, %v1923
    %v1925 = vpop.f32.mrf.mxu0
    %1926 = vmatprep.mubr.bf16.mxu0 0
    %1927 = vmatmul.mubr.bf16.gmra.mxu0 %v1164
    %v1928 = vpop.f32.mrf.mxu0
    %v1929 = vadd.f32 %v305, %v1928
    %v1930 = vpop.f32.mrf.mxu0
    %v1931 = vpop.f32.mrf.mxu0
    %v1932 = vadd.f32 %v305, %v1931
    %v1933 = vpop.f32.mrf.mxu0
    %1934 = vmatprep.mubr.bf16.mxu0 0
    %1935 = vmatmul.mubr.bf16.gmra.mxu0 %v1167
    %v1936 = vpop.f32.mrf.mxu0
    %v1937 = vadd.f32 %v305, %v1936
    %v1938 = vpop.f32.mrf.mxu0
    %v1939 = vpop.f32.mrf.mxu0
    %v1940 = vadd.f32 %v305, %v1939
    %v1941 = vpop.f32.mrf.mxu0
    %1942 = vmatprep.mubr.bf16.mxu0 0
    %1943 = vmatmul.mubr.bf16.gmra.mxu0 %v1170
    %v1944 = vpop.f32.mrf.mxu0
    %v1945 = vadd.f32 %v305, %v1944
    %v1946 = vpop.f32.mrf.mxu0
    %v1947 = vpop.f32.mrf.mxu0
    %v1948 = vadd.f32 %v305, %v1947
    %v1949 = vpop.f32.mrf.mxu0
    %1950 = vmatprep.mubr.bf16.mxu0 0
    %1951 = vmatmul.mubr.bf16.gmra.mxu0 %v1173
    %v1952 = vpop.f32.mrf.mxu0
    %v1953 = vadd.f32 %v305, %v1952
    %v1954 = vpop.f32.mrf.mxu0
    %v1955 = vpop.f32.mrf.mxu0
    %v1956 = vadd.f32 %v305, %v1955
    %v1957 = vpop.f32.mrf.mxu0
    %1958 = vmatprep.mubr.bf16.mxu0 0
    %1959 = vmatmul.mubr.bf16.gmra.mxu0 %v1176
    %v1960 = vpop.f32.mrf.mxu0
    %v1961 = vadd.f32 %v305, %v1960
    %v1962 = vpop.f32.mrf.mxu0
    %v1963 = vpop.f32.mrf.mxu0
    %v1964 = vadd.f32 %v305, %v1963
    %v1965 = vpop.f32.mrf.mxu0
    %1966 = vmatprep.mubr.bf16.mxu0 0
    %1967 = vmatmul.mubr.bf16.gmra.mxu0 %v1179
    %v1968 = vpop.f32.mrf.mxu0
    %v1969 = vadd.f32 %v305, %v1968
    %v1970 = vpop.f32.mrf.mxu0
    %v1971 = vpop.f32.mrf.mxu0
    %v1972 = vadd.f32 %v305, %v1971
    %v1973 = vpop.f32.mrf.mxu0
    %1974 = vmatprep.mubr.bf16.mxu0 0
    %1975 = vmatmul.mubr.bf16.gmra.mxu0 %v1182
    %v1976 = vpop.f32.mrf.mxu0
    %v1977 = vadd.f32 %v305, %v1976
    %v1978 = vpop.f32.mrf.mxu0
    %v1979 = vpop.f32.mrf.mxu0
    %v1980 = vadd.f32 %v305, %v1979
    %v1981 = vpop.f32.mrf.mxu0
    %1982 = vmatprep.mubr.bf16.mxu0 0
    %1983 = vmatmul.mubr.bf16.gmra.mxu0 %v1185
    %v1984 = vpop.f32.mrf.mxu0
    %v1985 = vadd.f32 %v305, %v1984
    %v1986 = vpop.f32.mrf.mxu0
    %v1987 = vpop.f32.mrf.mxu0
    %v1988 = vadd.f32 %v305, %v1987
    %v1989 = vpop.f32.mrf.mxu0
    %1990 = vmatprep.mubr.bf16.mxu0 0
    %1991 = vmatmul.mubr.bf16.gmra.mxu0 %v1188
    %v1992 = vpop.f32.mrf.mxu0
    %v1993 = vadd.f32 %v305, %v1992
    %v1994 = vpop.f32.mrf.mxu0
    %v1995 = vpop.f32.mrf.mxu0
    %v1996 = vadd.f32 %v305, %v1995
    %v1997 = vpop.f32.mrf.mxu0
    %1998 = vmatprep.mubr.bf16.mxu0 0
    %1999 = vmatmul.mubr.bf16.gmra.mxu0 %v1191
    %v2000 = vpop.f32.mrf.mxu0
    %v2001 = vadd.f32 %v305, %v2000
    %v2002 = vpop.f32.mrf.mxu0
    %v2003 = vpop.f32.mrf.mxu0
    %v2004 = vadd.f32 %v305, %v2003
    %v2005 = vpop.f32.mrf.mxu0
    %2006 = vmatprep.mubr.bf16.mxu0 0
    %2007 = vmatmul.mubr.bf16.gmra.mxu0 %v1194
    %v2008 = vpop.f32.mrf.mxu0
    %v2009 = vadd.f32 %v305, %v2008
    %v2010 = vpop.f32.mrf.mxu0
    %v2011 = vpop.f32.mrf.mxu0
    %v2012 = vadd.f32 %v305, %v2011
    %v2013 = vpop.f32.mrf.mxu0
    %2014 = vmatprep.mubr.bf16.mxu0 0
    %2015 = vmatmul.mubr.bf16.gmra.mxu0 %v1197
    %v2016 = vpop.f32.mrf.mxu0
    %v2017 = vadd.f32 %v305, %v2016
    %v2018 = vpop.f32.mrf.mxu0
    %v2019 = vpop.f32.mrf.mxu0
    %v2020 = vadd.f32 %v305, %v2019
    %v2021 = vpop.f32.mrf.mxu0
    %2022 = vmatprep.mubr.bf16.mxu0 0
    %2023 = vmatmul.mubr.bf16.gmra.mxu0 %v1200
    %v2024 = vpop.f32.mrf.mxu0
    %v2025 = vadd.f32 %v305, %v2024
    %v2026 = vpop.f32.mrf.mxu0
    %v2027 = vpop.f32.mrf.mxu0
    %v2028 = vadd.f32 %v305, %v2027
    %v2029 = vpop.f32.mrf.mxu0
    %2030 = vmatprep.mubr.bf16.mxu0 0
    %2031 = vmatmul.mubr.bf16.gmra.mxu0 %v1203
    %v2032 = vpop.f32.mrf.mxu0
    %v2033 = vadd.f32 %v305, %v2032
    %v2034 = vpop.f32.mrf.mxu0
    %v2035 = vpop.f32.mrf.mxu0
    %v2036 = vadd.f32 %v305, %v2035
    %v2037 = vpop.f32.mrf.mxu0
    %2038 = vmatprep.mubr.bf16.mxu0 0
    %2039 = vmatmul.mubr.bf16.gmra.mxu0 %v1206
    %v2040 = vpop.f32.mrf.mxu0
    %v2041 = vadd.f32 %v305, %v2040
    %v2042 = vpop.f32.mrf.mxu0
    %v2043 = vpop.f32.mrf.mxu0
    %v2044 = vadd.f32 %v305, %v2043
    %v2045 = vpop.f32.mrf.mxu0
    %2046 = vmatprep.mubr.bf16.mxu0 0
    %2047 = vmatmul.mubr.bf16.gmra.mxu0 %v1209
    %v2048 = vpop.f32.mrf.mxu0
    %v2049 = vadd.f32 %v305, %v2048
    %v2050 = vpop.f32.mrf.mxu0
    %v2051 = vpop.f32.mrf.mxu0
    %v2052 = vadd.f32 %v305, %v2051
    %v2053 = vpop.f32.mrf.mxu0
    %2054 = vmatprep.mubr.bf16.mxu0 0
    %2055 = vmatmul.mubr.bf16.gmra.mxu0 %v1212
    %v2056 = vpop.f32.mrf.mxu0
    %v2057 = vadd.f32 %v305, %v2056
    %v2058 = vpop.f32.mrf.mxu0
    %v2059 = vpop.f32.mrf.mxu0
    %v2060 = vadd.f32 %v305, %v2059
    %v2061 = vpop.f32.mrf.mxu0
    %2062 = vmatprep.mubr.bf16.mxu0 0
    %2063 = vmatmul.mubr.bf16.gmra.mxu0 %v1215
    %v2064 = vpop.f32.mrf.mxu0
    %v2065 = vadd.f32 %v305, %v2064
    %v2066 = vpop.f32.mrf.mxu0
    %v2067 = vpop.f32.mrf.mxu0
    %v2068 = vadd.f32 %v305, %v2067
    %v2069 = vpop.f32.mrf.mxu0
    %2070 = vmatprep.mubr.bf16.mxu0 0
    %2071 = vmatmul.mubr.bf16.gmra.mxu0 %v1218
    %v2072 = vpop.f32.mrf.mxu0
    %v2073 = vadd.f32 %v305, %v2072
    %v2074 = vpop.f32.mrf.mxu0
    %v2075 = vpop.f32.mrf.mxu0
    %v2076 = vadd.f32 %v305, %v2075
    %v2077 = vpop.f32.mrf.mxu0
    %2078 = vmatprep.mubr.bf16.mxu0 0
    %2079 = vmatmul.mubr.bf16.gmra.mxu0 %v1221
    %v2080 = vpop.f32.mrf.mxu0
    %v2081 = vadd.f32 %v305, %v2080
    %v2082 = vpop.f32.mrf.mxu0
    %v2083 = vpop.f32.mrf.mxu0
    %v2084 = vadd.f32 %v305, %v2083
    %v2085 = vpop.f32.mrf.mxu0
    %2086 = vmatprep.mubr.bf16.mxu0 0
    %2087 = vmatmul.mubr.bf16.gmra.mxu0 %v1224
    %v2088 = vpop.f32.mrf.mxu0
    %v2089 = vadd.f32 %v305, %v2088
    %v2090 = vpop.f32.mrf.mxu0
    %v2091 = vpop.f32.mrf.mxu0
    %v2092 = vadd.f32 %v305, %v2091
    %v2093 = vpop.f32.mrf.mxu0
    %2094 = vmatprep.mubr.bf16.mxu0 0
    %2095 = vmatmul.mubr.bf16.gmra.mxu0 %v1227
    %v2096 = vpop.f32.mrf.mxu0
    %v2097 = vadd.f32 %v305, %v2096
    %v2098 = vpop.f32.mrf.mxu0
    %v2099 = vpop.f32.mrf.mxu0
    %v2100 = vadd.f32 %v305, %v2099
    %v2101 = vpop.f32.mrf.mxu0
    %2102 = vmatprep.mubr.bf16.mxu0 0
    %2103 = vmatmul.mubr.bf16.gmra.mxu0 %v1230
    %v2104 = vpop.f32.mrf.mxu0
    %v2105 = vadd.f32 %v305, %v2104
    %v2106 = vpop.f32.mrf.mxu0
    %v2107 = vpop.f32.mrf.mxu0
    %v2108 = vadd.f32 %v305, %v2107
    %v2109 = vpop.f32.mrf.mxu0
    %2110 = vmatprep.mubr.bf16.mxu0 0
    %2111 = vmatmul.mubr.bf16.gmra.mxu0 %v1233
    %v2112 = vpop.f32.mrf.mxu0
    %v2113 = vadd.f32 %v305, %v2112
    %v2114 = vpop.f32.mrf.mxu0
    %v2115 = vpop.f32.mrf.mxu0
    %v2116 = vadd.f32 %v305, %v2115
    %v2117 = vpop.f32.mrf.mxu0
    %2118 = vmatprep.mubr.bf16.mxu0 0
    %2119 = vmatmul.mubr.bf16.gmra.mxu0 %v1236
    %v2120 = vpop.f32.mrf.mxu0
    %v2121 = vadd.f32 %v305, %v2120
    %v2122 = vpop.f32.mrf.mxu0
    %v2123 = vpop.f32.mrf.mxu0
    %v2124 = vadd.f32 %v305, %v2123
    %v2125 = vpop.f32.mrf.mxu0
    %2126 = vmatprep.mubr.bf16.mxu0 0
    %2127 = vmatmul.mubr.bf16.gmra.mxu0 %v1239
    %v2128 = vpop.f32.mrf.mxu0
    %v2129 = vadd.f32 %v305, %v2128
    %v2130 = vpop.f32.mrf.mxu0
    %v2131 = vpop.f32.mrf.mxu0
    %v2132 = vadd.f32 %v305, %v2131
    %v2133 = vpop.f32.mrf.mxu0
    %2134 = vmatprep.mubr.bf16.mxu0 0
    %2135 = vmatmul.mubr.bf16.gmra.mxu0 %v1242
    %v2136 = vpop.f32.mrf.mxu0
    %v2137 = vadd.f32 %v305, %v2136
    %v2138 = vpop.f32.mrf.mxu0
    %v2139 = vpop.f32.mrf.mxu0
    %v2140 = vadd.f32 %v305, %v2139
    %v2141 = vpop.f32.mrf.mxu0
    %2142 = vmatprep.mubr.bf16.mxu0 0
    %2143 = vmatmul.mubr.bf16.gmra.mxu0 %v1245
    %v2144 = vpop.f32.mrf.mxu0
    %v2145 = vadd.f32 %v305, %v2144
    %v2146 = vpop.f32.mrf.mxu0
    %v2147 = vpop.f32.mrf.mxu0
    %v2148 = vadd.f32 %v305, %v2147
    %v2149 = vpop.f32.mrf.mxu0
    %2150 = vmatprep.mubr.bf16.mxu0 0
    %2151 = vmatmul.mubr.bf16.gmra.mxu0 %v1248
    %v2152 = vpop.f32.mrf.mxu0
    %v2153 = vadd.f32 %v305, %v2152
    %v2154 = vpop.f32.mrf.mxu0
    %v2155 = vpop.f32.mrf.mxu0
    %v2156 = vadd.f32 %v305, %v2155
    %v2157 = vpop.f32.mrf.mxu0
    %2158 = vmatprep.mubr.bf16.mxu0 0
    %2159 = vmatmul.mubr.bf16.gmra.mxu0 %v1251
    %v2160 = vpop.f32.mrf.mxu0
    %v2161 = vadd.f32 %v305, %v2160
    %v2162 = vpop.f32.mrf.mxu0
    %v2163 = vpop.f32.mrf.mxu0
    %v2164 = vadd.f32 %v305, %v2163
    %v2165 = vpop.f32.mrf.mxu0
    %2166 = vmatprep.mubr.bf16.mxu0 0
    %2167 = vmatmul.mubr.bf16.gmra.mxu0 %v1254
    %v2168 = vpop.f32.mrf.mxu0
    %v2169 = vadd.f32 %v305, %v2168
    %v2170 = vpop.f32.mrf.mxu0
    %v2171 = vpop.f32.mrf.mxu0
    %v2172 = vadd.f32 %v305, %v2171
    %v2173 = vpop.f32.mrf.mxu0
    %2174 = vmatprep.mubr.bf16.mxu0 0
    %2175 = vmatmul.mubr.bf16.gmra.mxu0 %v1257
    %v2176 = vpop.f32.mrf.mxu0
    %v2177 = vadd.f32 %v305, %v2176
    %v2178 = vpop.f32.mrf.mxu0
    %v2179 = vpop.f32.mrf.mxu0
    %v2180 = vadd.f32 %v305, %v2179
    %v2181 = vpop.f32.mrf.mxu0
    %2182 = vmatprep.mubr.bf16.mxu0 0
    %2183 = vmatmul.mubr.bf16.gmra.mxu0 %v1260
    %v2184 = vpop.f32.mrf.mxu0
    %v2185 = vadd.f32 %v305, %v2184
    %v2186 = vpop.f32.mrf.mxu0
    %v2187 = vpop.f32.mrf.mxu0
    %v2188 = vadd.f32 %v305, %v2187
    %v2189 = vpop.f32.mrf.mxu0
    %2190 = vmatprep.mubr.bf16.mxu0 0
    %2191 = vmatmul.mubr.bf16.gmra.mxu0 %v1263
    %v2192 = vpop.f32.mrf.mxu0
    %v2193 = vadd.f32 %v305, %v2192
    %v2194 = vpop.f32.mrf.mxu0
    %v2195 = vpop.f32.mrf.mxu0
    %v2196 = vadd.f32 %v305, %v2195
    %v2197 = vpop.f32.mrf.mxu0
    %2198 = vmatprep.mubr.bf16.mxu0 0
    %2199 = vmatmul.mubr.bf16.gmra.mxu0 %v1266
    %v2200 = vpop.f32.mrf.mxu0
    %v2201 = vadd.f32 %v305, %v2200
    %v2202 = vpop.f32.mrf.mxu0
    %v2203 = vpop.f32.mrf.mxu0
    %v2204 = vadd.f32 %v305, %v2203
    %v2205 = vpop.f32.mrf.mxu0
    %2206 = vmatprep.mubr.bf16.mxu0 0
    %2207 = vmatmul.mubr.bf16.gmra.mxu0 %v1269
    %v2208 = vpop.f32.mrf.mxu0
    %v2209 = vadd.f32 %v305, %v2208
    %v2210 = vpop.f32.mrf.mxu0
    %v2211 = vpop.f32.mrf.mxu0
    %v2212 = vadd.f32 %v305, %v2211
    %v2213 = vpop.f32.mrf.mxu0
    %2214 = vmatprep.mubr.bf16.mxu0 0
    %2215 = vmatmul.mubr.bf16.gmra.mxu0 %v1272
    %v2216 = vpop.f32.mrf.mxu0
    %v2217 = vadd.f32 %v305, %v2216
    %v2218 = vpop.f32.mrf.mxu0
    %v2219 = vpop.f32.mrf.mxu0
    %v2220 = vadd.f32 %v305, %v2219
    %v2221 = vpop.f32.mrf.mxu0
    %2222 = vmatprep.mubr.bf16.mxu0 0
    %2223 = vmatmul.mubr.bf16.gmra.mxu0 %v1275
    %v2224 = vpop.f32.mrf.mxu0
    %v2225 = vadd.f32 %v305, %v2224
    %v2226 = vpop.f32.mrf.mxu0
    %v2227 = vpop.f32.mrf.mxu0
    %v2228 = vadd.f32 %v305, %v2227
    %v2229 = vpop.f32.mrf.mxu0
    %2230 = vmatprep.mubr.bf16.mxu0 0
    %2231 = vmatmul.mubr.bf16.gmra.mxu0 %v1278
    %v2232 = vpop.f32.mrf.mxu0
    %v2233 = vadd.f32 %v305, %v2232
    %v2234 = vpop.f32.mrf.mxu0
    %v2235 = vpop.f32.mrf.mxu0
    %v2236 = vadd.f32 %v305, %v2235
    %v2237 = vpop.f32.mrf.mxu0
    %2238 = vmatprep.mubr.bf16.mxu0 0
    %2239 = vmatmul.mubr.bf16.gmra.mxu0 %v1281
    %v2240 = vpop.f32.mrf.mxu0
    %v2241 = vadd.f32 %v305, %v2240
    %v2242 = vpop.f32.mrf.mxu0
    %v2243 = vpop.f32.mrf.mxu0
    %v2244 = vadd.f32 %v305, %v2243
    %v2245 = vpop.f32.mrf.mxu0
    %2246 = vmatprep.mubr.bf16.mxu0 0
    %2247 = vmatmul.mubr.bf16.gmra.mxu0 %v1284
    %v2248 = vpop.f32.mrf.mxu0
    %v2249 = vadd.f32 %v305, %v2248
    %v2250 = vpop.f32.mrf.mxu0
    %v2251 = vpop.f32.mrf.mxu0
    %v2252 = vadd.f32 %v305, %v2251
    %v2253 = vpop.f32.mrf.mxu0
    %2254 = vmatprep.mubr.bf16.mxu0 0
    %2255 = vmatmul.mubr.bf16.gmra.mxu0 %v1287
    %v2256 = vpop.f32.mrf.mxu0
    %v2257 = vadd.f32 %v305, %v2256
    %v2258 = vpop.f32.mrf.mxu0
    %v2259 = vpop.f32.mrf.mxu0
    %v2260 = vadd.f32 %v305, %v2259
    %v2261 = vpop.f32.mrf.mxu0
    %2262 = vmatprep.mubr.bf16.mxu0 0
    %2263 = vmatmul.mubr.bf16.gmra.mxu0 %v1290
    %v2264 = vpop.f32.mrf.mxu0
    %v2265 = vadd.f32 %v305, %v2264
    %v2266 = vpop.f32.mrf.mxu0
    %v2267 = vpop.f32.mrf.mxu0
    %v2268 = vadd.f32 %v305, %v2267
    %v2269 = vpop.f32.mrf.mxu0
    %2270 = vmatprep.mubr.bf16.mxu0 0
    %2271 = vmatmul.mubr.bf16.gmra.mxu0 %v1293
    %v2272 = vpop.f32.mrf.mxu0
    %v2273 = vadd.f32 %v305, %v2272
    %v2274 = vpop.f32.mrf.mxu0
    %v2275 = vpop.f32.mrf.mxu0
    %v2276 = vadd.f32 %v305, %v2275
    %v2277 = vpop.f32.mrf.mxu0
    %2278 = vmatprep.mubr.bf16.mxu0 0
    %2279 = vmatmul.mubr.bf16.gmra.mxu0 %v1296
    %v2280 = vpop.f32.mrf.mxu0
    %v2281 = vadd.f32 %v305, %v2280
    %v2282 = vpop.f32.mrf.mxu0
    %v2283 = vpop.f32.mrf.mxu0
    %v2284 = vadd.f32 %v305, %v2283
    %v2285 = vpop.f32.mrf.mxu0
    %2286 = vmatprep.mubr.bf16.mxu0 0
    %2287 = vmatmul.mubr.bf16.gmra.mxu0 %v1299
    %v2288 = vpop.f32.mrf.mxu0
    %v2289 = vadd.f32 %v305, %v2288
    %v2290 = vpop.f32.mrf.mxu0
    %v2291 = vpop.f32.mrf.mxu0
    %v2292 = vadd.f32 %v305, %v2291
    %v2293 = vpop.f32.mrf.mxu0
    %2294 = vmatprep.mubr.bf16.mxu0 0
    %2295 = vmatmul.mubr.bf16.gmra.mxu0 %v1302
    %v2296 = vpop.f32.mrf.mxu0
    %v2297 = vadd.f32 %v305, %v2296
    %v2298 = vpop.f32.mrf.mxu0
    %v2299 = vpop.f32.mrf.mxu0
    %v2300 = vadd.f32 %v305, %v2299
    %v2301 = vpop.f32.mrf.mxu0
    %2302 = vmatprep.mubr.bf16.mxu0 0
    %2303 = vmatmul.mubr.bf16.gmra.mxu0 %v1305
    %v2304 = vpop.f32.mrf.mxu0
    %v2305 = vadd.f32 %v305, %v2304
    %v2306 = vpop.f32.mrf.mxu0
    %v2307 = vpop.f32.mrf.mxu0
    %v2308 = vadd.f32 %v305, %v2307
    %v2309 = vpop.f32.mrf.mxu0
    %2310 = vmatprep.mubr.bf16.mxu0 0
    %2311 = vmatmul.mubr.bf16.gmra.mxu0 %v1308
    %v2312 = vpop.f32.mrf.mxu0
    %v2313 = vadd.f32 %v305, %v2312
    %v2314 = vpop.f32.mrf.mxu0
    %v2315 = vpop.f32.mrf.mxu0
    %v2316 = vadd.f32 %v305, %v2315
    %v2317 = vpop.f32.mrf.mxu0
    %2318 = vmatprep.mubr.bf16.mxu0 0
    %2319 = vmatmul.mubr.bf16.gmra.mxu0 %v1311
    %v2320 = vpop.f32.mrf.mxu0
    %v2321 = vadd.f32 %v305, %v2320
    %v2322 = vpop.f32.mrf.mxu0
    %v2323 = vpop.f32.mrf.mxu0
    %v2324 = vadd.f32 %v305, %v2323
    %v2325 = vpop.f32.mrf.mxu0
    %2326 = vmatprep.mubr.bf16.mxu0 0
    %2327 = vmatmul.mubr.bf16.gmra.mxu0 %v1314
    %v2328 = vpop.f32.mrf.mxu0
    %v2329 = vadd.f32 %v305, %v2328
    %v2330 = vpop.f32.mrf.mxu0
    %v2331 = vpop.f32.mrf.mxu0
    %v2332 = vadd.f32 %v305, %v2331
    %v2333 = vpop.f32.mrf.mxu0
    %2334 = vmatprep.mubr.bf16.mxu0 0
    %2335 = vmatmul.mubr.bf16.gmra.mxu0 %v1317
    %v2336 = vpop.f32.mrf.mxu0
    %v2337 = vadd.f32 %v305, %v2336
    %v2338 = vpop.f32.mrf.mxu0
    %v2339 = vpop.f32.mrf.mxu0
    %v2340 = vadd.f32 %v305, %v2339
    %v2341 = vpop.f32.mrf.mxu0
    %2342 = vmatprep.mubr.bf16.mxu0 0
    %2343 = vmatmul.mubr.bf16.gmra.mxu0 %v1320
    %v2344 = vpop.f32.mrf.mxu0
    %v2345 = vadd.f32 %v305, %v2344
    %v2346 = vpop.f32.mrf.mxu0
    %v2347 = vpop.f32.mrf.mxu0
    %v2348 = vadd.f32 %v305, %v2347
    %v2349 = vpop.f32.mrf.mxu0
    %2350 = vmatprep.mubr.bf16.mxu0 0
    %2351 = vmatmul.mubr.bf16.gmra.mxu0 %v1323
    %v2352 = vpop.f32.mrf.mxu0
    %v2353 = vadd.f32 %v305, %v2352
    %v2354 = vpop.f32.mrf.mxu0
    %v2355 = vpop.f32.mrf.mxu0
    %v2356 = vadd.f32 %v305, %v2355
    %v2357 = vpop.f32.mrf.mxu0
    %2358 = vmatprep.mubr.bf16.mxu0 0
    %2359 = vmatmul.mubr.bf16.gmra.mxu0 %v1326
    %v2360 = vpop.f32.mrf.mxu0
    %v2361 = vadd.f32 %v305, %v2360
    %v2362 = vpop.f32.mrf.mxu0
    %v2363 = vpop.f32.mrf.mxu0
    %v2364 = vadd.f32 %v305, %v2363
    %v2365 = vpop.f32.mrf.mxu0
    %2366 = vmatprep.mubr.bf16.mxu0 0
    %2367 = vmatmul.mubr.bf16.gmra.mxu0 %v1329
    %v2368 = vpop.f32.mrf.mxu0
    %v2369 = vadd.f32 %v305, %v2368
    %v2370 = vpop.f32.mrf.mxu0
    %v2371 = vpop.f32.mrf.mxu0
    %v2372 = vadd.f32 %v305, %v2371
    %v2373 = vpop.f32.mrf.mxu0
    %2374 = vmatprep.mubr.bf16.mxu0 0
    %2375 = vmatmul.mubr.bf16.gmra.mxu0 %v1332
    %v2376 = vpop.f32.mrf.mxu0
    %v2377 = vadd.f32 %v305, %v2376
    %v2378 = vpop.f32.mrf.mxu0
    %v2379 = vpop.f32.mrf.mxu0
    %v2380 = vadd.f32 %v305, %v2379
    %v2381 = vpop.f32.mrf.mxu0
    %2382 = vmatprep.mubr.bf16.mxu0 0
    %2383 = vmatmul.mubr.bf16.gmra.mxu0 %v1335
    %v2384 = vpop.f32.mrf.mxu0
    %v2385 = vadd.f32 %v305, %v2384
    %v2386 = vpop.f32.mrf.mxu0
    %v2387 = vpop.f32.mrf.mxu0
    %v2388 = vadd.f32 %v305, %v2387
    %v2389 = vpop.f32.mrf.mxu0
    %2390 = vmatprep.mubr.bf16.mxu0 0
    %2391 = vmatmul.mubr.bf16.gmra.mxu0 %v1338
    %v2392 = vpop.f32.mrf.mxu0
    %v2393 = vadd.f32 %v305, %v2392
    %v2394 = vpop.f32.mrf.mxu0
    %v2395 = vpop.f32.mrf.mxu0
    %v2396 = vadd.f32 %v305, %v2395
    %v2397 = vpop.f32.mrf.mxu0
    %2398 = vmatprep.mubr.bf16.mxu0 0
    %2399 = vmatmul.mubr.bf16.gmra.mxu0 %v1341
    %v2400 = vpop.f32.mrf.mxu0
    %v2401 = vadd.f32 %v305, %v2400
    %v2402 = vpop.f32.mrf.mxu0
    %v2403 = vpop.f32.mrf.mxu0
    %v2404 = vadd.f32 %v305, %v2403
    %v2405 = vpop.f32.mrf.mxu0
    %2406 = vdwg.mxu0
    %v2407 = vmax.f32 %v1385, 0.0
    %v2408 = vmax.f32 %v1388, 0.0
    %v2409 = vmax.f32 %v1393, 0.0
    %v2410 = vmax.f32 %v1396, 0.0
    %v2411 = vmax.f32 %v1401, 0.0
    %v2412 = vmax.f32 %v1404, 0.0
    %v2413 = vmax.f32 %v1409, 0.0
    %v2414 = vmax.f32 %v1412, 0.0
    %v2415 = vmax.f32 %v1417, 0.0
    %v2416 = vmax.f32 %v1420, 0.0
    %v2417 = vmax.f32 %v1425, 0.0
    %v2418 = vmax.f32 %v1428, 0.0
    %v2419 = vmax.f32 %v1433, 0.0
    %v2420 = vmax.f32 %v1436, 0.0
    %v2421 = vmax.f32 %v1441, 0.0
    %v2422 = vmax.f32 %v1444, 0.0
    %v2423 = vmax.f32 %v1449, 0.0
    %v2424 = vmax.f32 %v1452, 0.0
    %v2425 = vmax.f32 %v1457, 0.0
    %v2426 = vmax.f32 %v1460, 0.0
    %v2427 = vmax.f32 %v1465, 0.0
    %v2428 = vmax.f32 %v1468, 0.0
    %v2429 = vmax.f32 %v1473, 0.0
    %v2430 = vmax.f32 %v1476, 0.0
    %v2431 = vmax.f32 %v1481, 0.0
    %v2432 = vmax.f32 %v1484, 0.0
    %v2433 = vmax.f32 %v1489, 0.0
    %v2434 = vmax.f32 %v1492, 0.0
    %v2435 = vmax.f32 %v1497, 0.0
    %v2436 = vmax.f32 %v1500, 0.0
    %v2437 = vmax.f32 %v1505, 0.0
    %v2438 = vmax.f32 %v1508, 0.0
    %v2439 = vmax.f32 %v1513, 0.0
    %v2440 = vmax.f32 %v1516, 0.0
    %v2441 = vmax.f32 %v1521, 0.0
    %v2442 = vmax.f32 %v1524, 0.0
    %v2443 = vmax.f32 %v1529, 0.0
    %v2444 = vmax.f32 %v1532, 0.0
    %v2445 = vmax.f32 %v1537, 0.0
    %v2446 = vmax.f32 %v1540, 0.0
    %v2447 = vmax.f32 %v1545, 0.0
    %v2448 = vmax.f32 %v1548, 0.0
    %v2449 = vmax.f32 %v1553, 0.0
    %v2450 = vmax.f32 %v1556, 0.0
    %v2451 = vmax.f32 %v1561, 0.0
    %v2452 = vmax.f32 %v1564, 0.0
    %v2453 = vmax.f32 %v1569, 0.0
    %v2454 = vmax.f32 %v1572, 0.0
    %v2455 = vmax.f32 %v1577, 0.0
    %v2456 = vmax.f32 %v1580, 0.0
    %v2457 = vmax.f32 %v1585, 0.0
    %v2458 = vmax.f32 %v1588, 0.0
    %v2459 = vmax.f32 %v1593, 0.0
    %v2460 = vmax.f32 %v1596, 0.0
    %v2461 = vmax.f32 %v1601, 0.0
    %v2462 = vmax.f32 %v1604, 0.0
    %v2463 = vmax.f32 %v1609, 0.0
    %v2464 = vmax.f32 %v1612, 0.0
    %v2465 = vmax.f32 %v1617, 0.0
    %v2466 = vmax.f32 %v1620, 0.0
    %v2467 = vmax.f32 %v1625, 0.0
    %v2468 = vmax.f32 %v1628, 0.0
    %v2469 = vmax.f32 %v1633, 0.0
    %v2470 = vmax.f32 %v1636, 0.0
    %v2471 = vmax.f32 %v1641, 0.0
    %v2472 = vmax.f32 %v1644, 0.0
    %v2473 = vmax.f32 %v1649, 0.0
    %v2474 = vmax.f32 %v1652, 0.0
    %v2475 = vmax.f32 %v1657, 0.0
    %v2476 = vmax.f32 %v1660, 0.0
    %v2477 = vmax.f32 %v1665, 0.0
    %v2478 = vmax.f32 %v1668, 0.0
    %v2479 = vmax.f32 %v1673, 0.0
    %v2480 = vmax.f32 %v1676, 0.0
    %v2481 = vmax.f32 %v1681, 0.0
    %v2482 = vmax.f32 %v1684, 0.0
    %v2483 = vmax.f32 %v1689, 0.0
    %v2484 = vmax.f32 %v1692, 0.0
    %v2485 = vmax.f32 %v1697, 0.0
    %v2486 = vmax.f32 %v1700, 0.0
    %v2487 = vmax.f32 %v1705, 0.0
    %v2488 = vmax.f32 %v1708, 0.0
    %v2489 = vmax.f32 %v1713, 0.0
    %v2490 = vmax.f32 %v1716, 0.0
    %v2491 = vmax.f32 %v1721, 0.0
    %v2492 = vmax.f32 %v1724, 0.0
    %v2493 = vmax.f32 %v1729, 0.0
    %v2494 = vmax.f32 %v1732, 0.0
    %v2495 = vmax.f32 %v1737, 0.0
    %v2496 = vmax.f32 %v1740, 0.0
    %v2497 = vmax.f32 %v1745, 0.0
    %v2498 = vmax.f32 %v1748, 0.0
    %v2499 = vmax.f32 %v1753, 0.0
    %v2500 = vmax.f32 %v1756, 0.0
    %v2501 = vmax.f32 %v1761, 0.0
    %v2502 = vmax.f32 %v1764, 0.0
    %v2503 = vmax.f32 %v1769, 0.0
    %v2504 = vmax.f32 %v1772, 0.0
    %v2505 = vmax.f32 %v1777, 0.0
    %v2506 = vmax.f32 %v1780, 0.0
    %v2507 = vmax.f32 %v1785, 0.0
    %v2508 = vmax.f32 %v1788, 0.0
    %v2509 = vmax.f32 %v1793, 0.0
    %v2510 = vmax.f32 %v1796, 0.0
    %v2511 = vmax.f32 %v1801, 0.0
    %v2512 = vmax.f32 %v1804, 0.0
    %v2513 = vmax.f32 %v1809, 0.0
    %v2514 = vmax.f32 %v1812, 0.0
    %v2515 = vmax.f32 %v1817, 0.0
    %v2516 = vmax.f32 %v1820, 0.0
    %v2517 = vmax.f32 %v1825, 0.0
    %v2518 = vmax.f32 %v1828, 0.0
    %v2519 = vmax.f32 %v1833, 0.0
    %v2520 = vmax.f32 %v1836, 0.0
    %v2521 = vmax.f32 %v1841, 0.0
    %v2522 = vmax.f32 %v1844, 0.0
    %v2523 = vmax.f32 %v1849, 0.0
    %v2524 = vmax.f32 %v1852, 0.0
    %v2525 = vmax.f32 %v1857, 0.0
    %v2526 = vmax.f32 %v1860, 0.0
    %v2527 = vmax.f32 %v1865, 0.0
    %v2528 = vmax.f32 %v1868, 0.0
    %v2529 = vmax.f32 %v1873, 0.0
    %v2530 = vmax.f32 %v1876, 0.0
    %v2531 = vmax.f32 %v1881, 0.0
    %v2532 = vmax.f32 %v1884, 0.0
    %v2533 = vmax.f32 %v1889, 0.0
    %v2534 = vmax.f32 %v1892, 0.0
    %v2535 = vmax.f32 %v1897, 0.0
    %v2536 = vmax.f32 %v1900, 0.0
    %v2537 = vmax.f32 %v1905, 0.0
    %v2538 = vmax.f32 %v1908, 0.0
    %v2539 = vmax.f32 %v1913, 0.0
    %v2540 = vmax.f32 %v1916, 0.0
    %v2541 = vmax.f32 %v1921, 0.0
    %v2542 = vmax.f32 %v1924, 0.0
    %v2543 = vmax.f32 %v1929, 0.0
    %v2544 = vmax.f32 %v1932, 0.0
    %v2545 = vmax.f32 %v1937, 0.0
    %v2546 = vmax.f32 %v1940, 0.0
    %v2547 = vmax.f32 %v1945, 0.0
    %v2548 = vmax.f32 %v1948, 0.0
    %v2549 = vmax.f32 %v1953, 0.0
    %v2550 = vmax.f32 %v1956, 0.0
    %v2551 = vmax.f32 %v1961, 0.0
    %v2552 = vmax.f32 %v1964, 0.0
    %v2553 = vmax.f32 %v1969, 0.0
    %v2554 = vmax.f32 %v1972, 0.0
    %v2555 = vmax.f32 %v1977, 0.0
    %v2556 = vmax.f32 %v1980, 0.0
    %v2557 = vmax.f32 %v1985, 0.0
    %v2558 = vmax.f32 %v1988, 0.0
    %v2559 = vmax.f32 %v1993, 0.0
    %v2560 = vmax.f32 %v1996, 0.0
    %v2561 = vmax.f32 %v2001, 0.0
    %v2562 = vmax.f32 %v2004, 0.0
    %v2563 = vmax.f32 %v2009, 0.0
    %v2564 = vmax.f32 %v2012, 0.0
    %v2565 = vmax.f32 %v2017, 0.0
    %v2566 = vmax.f32 %v2020, 0.0
    %v2567 = vmax.f32 %v2025, 0.0
    %v2568 = vmax.f32 %v2028, 0.0
    %v2569 = vmax.f32 %v2033, 0.0
    %v2570 = vmax.f32 %v2036, 0.0
    %v2571 = vmax.f32 %v2041, 0.0
    %v2572 = vmax.f32 %v2044, 0.0
    %v2573 = vmax.f32 %v2049, 0.0
    %v2574 = vmax.f32 %v2052, 0.0
    %v2575 = vmax.f32 %v2057, 0.0
    %v2576 = vmax.f32 %v2060, 0.0
    %v2577 = vmax.f32 %v2065, 0.0
    %v2578 = vmax.f32 %v2068, 0.0
    %v2579 = vmax.f32 %v2073, 0.0
    %v2580 = vmax.f32 %v2076, 0.0
    %v2581 = vmax.f32 %v2081, 0.0
    %v2582 = vmax.f32 %v2084, 0.0
    %v2583 = vmax.f32 %v2089, 0.0
    %v2584 = vmax.f32 %v2092, 0.0
    %v2585 = vmax.f32 %v2097, 0.0
    %v2586 = vmax.f32 %v2100, 0.0
    %v2587 = vmax.f32 %v2105, 0.0
    %v2588 = vmax.f32 %v2108, 0.0
    %v2589 = vmax.f32 %v2113, 0.0
    %v2590 = vmax.f32 %v2116, 0.0
    %v2591 = vmax.f32 %v2121, 0.0
    %v2592 = vmax.f32 %v2124, 0.0
    %v2593 = vmax.f32 %v2129, 0.0
    %v2594 = vmax.f32 %v2132, 0.0
    %v2595 = vmax.f32 %v2137, 0.0
    %v2596 = vmax.f32 %v2140, 0.0
    %v2597 = vmax.f32 %v2145, 0.0
    %v2598 = vmax.f32 %v2148, 0.0
    %v2599 = vmax.f32 %v2153, 0.0
    %v2600 = vmax.f32 %v2156, 0.0
    %v2601 = vmax.f32 %v2161, 0.0
    %v2602 = vmax.f32 %v2164, 0.0
    %v2603 = vmax.f32 %v2169, 0.0
    %v2604 = vmax.f32 %v2172, 0.0
    %v2605 = vmax.f32 %v2177, 0.0
    %v2606 = vmax.f32 %v2180, 0.0
    %v2607 = vmax.f32 %v2185, 0.0
    %v2608 = vmax.f32 %v2188, 0.0
    %v2609 = vmax.f32 %v2193, 0.0
    %v2610 = vmax.f32 %v2196, 0.0
    %v2611 = vmax.f32 %v2201, 0.0
    %v2612 = vmax.f32 %v2204, 0.0
    %v2613 = vmax.f32 %v2209, 0.0
    %v2614 = vmax.f32 %v2212, 0.0
    %v2615 = vmax.f32 %v2217, 0.0
    %v2616 = vmax.f32 %v2220, 0.0
    %v2617 = vmax.f32 %v2225, 0.0
    %v2618 = vmax.f32 %v2228, 0.0
    %v2619 = vmax.f32 %v2233, 0.0
    %v2620 = vmax.f32 %v2236, 0.0
    %v2621 = vmax.f32 %v2241, 0.0
    %v2622 = vmax.f32 %v2244, 0.0
    %v2623 = vmax.f32 %v2249, 0.0
    %v2624 = vmax.f32 %v2252, 0.0
    %v2625 = vmax.f32 %v2257, 0.0
    %v2626 = vmax.f32 %v2260, 0.0
    %v2627 = vmax.f32 %v2265, 0.0
    %v2628 = vmax.f32 %v2268, 0.0
    %v2629 = vmax.f32 %v2273, 0.0
    %v2630 = vmax.f32 %v2276, 0.0
    %v2631 = vmax.f32 %v2281, 0.0
    %v2632 = vmax.f32 %v2284, 0.0
    %v2633 = vmax.f32 %v2289, 0.0
    %v2634 = vmax.f32 %v2292, 0.0
    %v2635 = vmax.f32 %v2297, 0.0
    %v2636 = vmax.f32 %v2300, 0.0
    %v2637 = vmax.f32 %v2305, 0.0
    %v2638 = vmax.f32 %v2308, 0.0
    %v2639 = vmax.f32 %v2313, 0.0
    %v2640 = vmax.f32 %v2316, 0.0
    %v2641 = vmax.f32 %v2321, 0.0
    %v2642 = vmax.f32 %v2324, 0.0
    %v2643 = vmax.f32 %v2329, 0.0
    %v2644 = vmax.f32 %v2332, 0.0
    %v2645 = vmax.f32 %v2337, 0.0
    %v2646 = vmax.f32 %v2340, 0.0
    %v2647 = vmax.f32 %v2345, 0.0
    %v2648 = vmax.f32 %v2348, 0.0
    %v2649 = vmax.f32 %v2353, 0.0
    %v2650 = vmax.f32 %v2356, 0.0
    %v2651 = vmax.f32 %v2361, 0.0
    %v2652 = vmax.f32 %v2364, 0.0
    %v2653 = vmax.f32 %v2369, 0.0
    %v2654 = vmax.f32 %v2372, 0.0
    %v2655 = vmax.f32 %v2377, 0.0
    %v2656 = vmax.f32 %v2380, 0.0
    %v2657 = vmax.f32 %v2385, 0.0
    %v2658 = vmax.f32 %v2388, 0.0
    %v2659 = vmax.f32 %v2393, 0.0
    %v2660 = vmax.f32 %v2396, 0.0
    %v2661 = vmax.f32 %v2401, 0.0
    %v2662 = vmax.f32 %v2404, 0.0
    %v2663 = vadd.f32 %v2407, %v2408
    %v2664 = vadd.f32 %v2663, %v2409
    %v2665 = vadd.f32 %v2664, %v2410
    %v2666 = vadd.f32 %v2665, %v2411
    %v2667 = vadd.f32 %v2666, %v2412
    %v2668 = vadd.f32 %v2667, %v2413
    %v2669 = vadd.f32 %v2668, %v2414
    %v2670 = vadd.f32 %v2669, %v2415
    %v2671 = vadd.f32 %v2670, %v2416
    %v2672 = vadd.f32 %v2671, %v2417
    %v2673 = vadd.f32 %v2672, %v2418
    %v2674 = vadd.f32 %v2673, %v2419
    %v2675 = vadd.f32 %v2674, %v2420
    %v2676 = vadd.f32 %v2675, %v2421
    %v2677 = vadd.f32 %v2676, %v2422
    %v2678 = vadd.f32 %v2677, %v2423
    %v2679 = vadd.f32 %v2678, %v2424
    %v2680 = vadd.f32 %v2679, %v2425
    %v2681 = vadd.f32 %v2680, %v2426
    %v2682 = vadd.f32 %v2681, %v2427
    %v2683 = vadd.f32 %v2682, %v2428
    %v2684 = vadd.f32 %v2683, %v2429
    %v2685 = vadd.f32 %v2684, %v2430
    %v2686 = vadd.f32 %v2685, %v2431
    %v2687 = vadd.f32 %v2686, %v2432
    %v2688 = vadd.f32 %v2687, %v2433
    %v2689 = vadd.f32 %v2688, %v2434
    %v2690 = vadd.f32 %v2689, %v2435
    %v2691 = vadd.f32 %v2690, %v2436
    %v2692 = vadd.f32 %v2691, %v2437
    %v2693 = vadd.f32 %v2692, %v2438
    %v2694 = vrot.slane %v2693, 4
    %v2695 = vadd.f32 %v2693, %v2694
    %v2696 = vrot.slane %v2695, 2
    %v2697 = vadd.f32 %v2695, %v2696
    %v2698 = vrot.slane %v2697, 1
    %v2699 = vadd.f32 %v2697, %v2698
    %v2700 = vadd.f32 %v2439, %v2440
    %v2701 = vadd.f32 %v2700, %v2441
    %v2702 = vadd.f32 %v2701, %v2442
    %v2703 = vadd.f32 %v2702, %v2443
    %v2704 = vadd.f32 %v2703, %v2444
    %v2705 = vadd.f32 %v2704, %v2445
    %v2706 = vadd.f32 %v2705, %v2446
    %v2707 = vadd.f32 %v2706, %v2447
    %v2708 = vadd.f32 %v2707, %v2448
    %v2709 = vadd.f32 %v2708, %v2449
    %v2710 = vadd.f32 %v2709, %v2450
    %v2711 = vadd.f32 %v2710, %v2451
    %v2712 = vadd.f32 %v2711, %v2452
    %v2713 = vadd.f32 %v2712, %v2453
    %v2714 = vadd.f32 %v2713, %v2454
    %v2715 = vadd.f32 %v2714, %v2455
    %v2716 = vadd.f32 %v2715, %v2456
    %v2717 = vadd.f32 %v2716, %v2457
    %v2718 = vadd.f32 %v2717, %v2458
    %v2719 = vadd.f32 %v2718, %v2459
    %v2720 = vadd.f32 %v2719, %v2460
    %v2721 = vadd.f32 %v2720, %v2461
    %v2722 = vadd.f32 %v2721, %v2462
    %v2723 = vadd.f32 %v2722, %v2463
    %v2724 = vadd.f32 %v2723, %v2464
    %v2725 = vadd.f32 %v2724, %v2465
    %v2726 = vadd.f32 %v2725, %v2466
    %v2727 = vadd.f32 %v2726, %v2467
    %v2728 = vadd.f32 %v2727, %v2468
    %v2729 = vadd.f32 %v2728, %v2469
    %v2730 = vadd.f32 %v2729, %v2470
    %v2731 = vrot.slane %v2730, 4
    %v2732 = vadd.f32 %v2730, %v2731
    %v2733 = vrot.slane %v2732, 2
    %v2734 = vadd.f32 %v2732, %v2733
    %v2735 = vrot.slane %v2734, 1
    %v2736 = vadd.f32 %v2734, %v2735
    %v2737 = vadd.f32 %v2471, %v2472
    %v2738 = vadd.f32 %v2737, %v2473
    %v2739 = vadd.f32 %v2738, %v2474
    %v2740 = vadd.f32 %v2739, %v2475
    %v2741 = vadd.f32 %v2740, %v2476
    %v2742 = vadd.f32 %v2741, %v2477
    %v2743 = vadd.f32 %v2742, %v2478
    %v2744 = vadd.f32 %v2743, %v2479
    %v2745 = vadd.f32 %v2744, %v2480
    %v2746 = vadd.f32 %v2745, %v2481
    %v2747 = vadd.f32 %v2746, %v2482
    %v2748 = vadd.f32 %v2747, %v2483
    %v2749 = vadd.f32 %v2748, %v2484
    %v2750 = vadd.f32 %v2749, %v2485
    %v2751 = vadd.f32 %v2750, %v2486
    %v2752 = vadd.f32 %v2751, %v2487
    %v2753 = vadd.f32 %v2752, %v2488
    %v2754 = vadd.f32 %v2753, %v2489
    %v2755 = vadd.f32 %v2754, %v2490
    %v2756 = vadd.f32 %v2755, %v2491
    %v2757 = vadd.f32 %v2756, %v2492
    %v2758 = vadd.f32 %v2757, %v2493
    %v2759 = vadd.f32 %v2758, %v2494
    %v2760 = vadd.f32 %v2759, %v2495
    %v2761 = vadd.f32 %v2760, %v2496
    %v2762 = vadd.f32 %v2761, %v2497
    %v2763 = vadd.f32 %v2762, %v2498
    %v2764 = vadd.f32 %v2763, %v2499
    %v2765 = vadd.f32 %v2764, %v2500
    %v2766 = vadd.f32 %v2765, %v2501
    %v2767 = vadd.f32 %v2766, %v2502
    %v2768 = vrot.slane %v2767, 4
    %v2769 = vadd.f32 %v2767, %v2768
    %v2770 = vrot.slane %v2769, 2
    %v2771 = vadd.f32 %v2769, %v2770
    %v2772 = vrot.slane %v2771, 1
    %v2773 = vadd.f32 %v2771, %v2772
    %v2774 = vadd.f32 %v2503, %v2504
    %v2775 = vadd.f32 %v2774, %v2505
    %v2776 = vadd.f32 %v2775, %v2506
    %v2777 = vadd.f32 %v2776, %v2507
    %v2778 = vadd.f32 %v2777, %v2508
    %v2779 = vadd.f32 %v2778, %v2509
    %v2780 = vadd.f32 %v2779, %v2510
    %v2781 = vadd.f32 %v2780, %v2511
    %v2782 = vadd.f32 %v2781, %v2512
    %v2783 = vadd.f32 %v2782, %v2513
    %v2784 = vadd.f32 %v2783, %v2514
    %v2785 = vadd.f32 %v2784, %v2515
    %v2786 = vadd.f32 %v2785, %v2516
    %v2787 = vadd.f32 %v2786, %v2517
    %v2788 = vadd.f32 %v2787, %v2518
    %v2789 = vadd.f32 %v2788, %v2519
    %v2790 = vadd.f32 %v2789, %v2520
    %v2791 = vadd.f32 %v2790, %v2521
    %v2792 = vadd.f32 %v2791, %v2522
    %v2793 = vadd.f32 %v2792, %v2523
    %v2794 = vadd.f32 %v2793, %v2524
    %v2795 = vadd.f32 %v2794, %v2525
    %v2796 = vadd.f32 %v2795, %v2526
    %v2797 = vadd.f32 %v2796, %v2527
    %v2798 = vadd.f32 %v2797, %v2528
    %v2799 = vadd.f32 %v2798, %v2529
    %v2800 = vadd.f32 %v2799, %v2530
    %v2801 = vadd.f32 %v2800, %v2531
    %v2802 = vadd.f32 %v2801, %v2532
    %v2803 = vadd.f32 %v2802, %v2533
    %v2804 = vadd.f32 %v2803, %v2534
    %v2805 = vrot.slane %v2804, 4
    %v2806 = vadd.f32 %v2804, %v2805
    %v2807 = vrot.slane %v2806, 2
    %v2808 = vadd.f32 %v2806, %v2807
    %v2809 = vrot.slane %v2808, 1
    %v2810 = vadd.f32 %v2808, %v2809
    %v2811 = vadd.f32 %v2535, %v2536
    %v2812 = vadd.f32 %v2811, %v2537
    %v2813 = vadd.f32 %v2812, %v2538
    %v2814 = vadd.f32 %v2813, %v2539
    %v2815 = vadd.f32 %v2814, %v2540
    %v2816 = vadd.f32 %v2815, %v2541
    %v2817 = vadd.f32 %v2816, %v2542
    %v2818 = vadd.f32 %v2817, %v2543
    %v2819 = vadd.f32 %v2818, %v2544
    %v2820 = vadd.f32 %v2819, %v2545
    %v2821 = vadd.f32 %v2820, %v2546
    %v2822 = vadd.f32 %v2821, %v2547
    %v2823 = vadd.f32 %v2822, %v2548
    %v2824 = vadd.f32 %v2823, %v2549
    %v2825 = vadd.f32 %v2824, %v2550
    %v2826 = vadd.f32 %v2825, %v2551
    %v2827 = vadd.f32 %v2826, %v2552
    %v2828 = vadd.f32 %v2827, %v2553
    %v2829 = vadd.f32 %v2828, %v2554
    %v2830 = vadd.f32 %v2829, %v2555
    %v2831 = vadd.f32 %v2830, %v2556
    %v2832 = vadd.f32 %v2831, %v2557
    %v2833 = vadd.f32 %v2832, %v2558
    %v2834 = vadd.f32 %v2833, %v2559
    %v2835 = vadd.f32 %v2834, %v2560
    %v2836 = vadd.f32 %v2835, %v2561
    %v2837 = vadd.f32 %v2836, %v2562
    %v2838 = vadd.f32 %v2837, %v2563
    %v2839 = vadd.f32 %v2838, %v2564
    %v2840 = vadd.f32 %v2839, %v2565
    %v2841 = vadd.f32 %v2840, %v2566
    %v2842 = vrot.slane %v2841, 4
    %v2843 = vadd.f32 %v2841, %v2842
    %v2844 = vrot.slane %v2843, 2
    %v2845 = vadd.f32 %v2843, %v2844
    %v2846 = vrot.slane %v2845, 1
    %v2847 = vadd.f32 %v2845, %v2846
    %v2848 = vadd.f32 %v2567, %v2568
    %v2849 = vadd.f32 %v2848, %v2569
    %v2850 = vadd.f32 %v2849, %v2570
    %v2851 = vadd.f32 %v2850, %v2571
    %v2852 = vadd.f32 %v2851, %v2572
    %v2853 = vadd.f32 %v2852, %v2573
    %v2854 = vadd.f32 %v2853, %v2574
    %v2855 = vadd.f32 %v2854, %v2575
    %v2856 = vadd.f32 %v2855, %v2576
    %v2857 = vadd.f32 %v2856, %v2577
    %v2858 = vadd.f32 %v2857, %v2578
    %v2859 = vadd.f32 %v2858, %v2579
    %v2860 = vadd.f32 %v2859, %v2580
    %v2861 = vadd.f32 %v2860, %v2581
    %v2862 = vadd.f32 %v2861, %v2582
    %v2863 = vadd.f32 %v2862, %v2583
    %v2864 = vadd.f32 %v2863, %v2584
    %v2865 = vadd.f32 %v2864, %v2585
    %v2866 = vadd.f32 %v2865, %v2586
    %v2867 = vadd.f32 %v2866, %v2587
    %v2868 = vadd.f32 %v2867, %v2588
    %v2869 = vadd.f32 %v2868, %v2589
    %v2870 = vadd.f32 %v2869, %v2590
    %v2871 = vadd.f32 %v2870, %v2591
    %v2872 = vadd.f32 %v2871, %v2592
    %v2873 = vadd.f32 %v2872, %v2593
    %v2874 = vadd.f32 %v2873, %v2594
    %v2875 = vadd.f32 %v2874, %v2595
    %v2876 = vadd.f32 %v2875, %v2596
    %v2877 = vadd.f32 %v2876, %v2597
    %v2878 = vadd.f32 %v2877, %v2598
    %v2879 = vrot.slane %v2878, 4
    %v2880 = vadd.f32 %v2878, %v2879
    %v2881 = vrot.slane %v2880, 2
    %v2882 = vadd.f32 %v2880, %v2881
    %v2883 = vrot.slane %v2882, 1
    %v2884 = vadd.f32 %v2882, %v2883
    %v2885 = vadd.f32 %v2599, %v2600
    %v2886 = vadd.f32 %v2885, %v2601
    %v2887 = vadd.f32 %v2886, %v2602
    %v2888 = vadd.f32 %v2887, %v2603
    %v2889 = vadd.f32 %v2888, %v2604
    %v2890 = vadd.f32 %v2889, %v2605
    %v2891 = vadd.f32 %v2890, %v2606
    %v2892 = vadd.f32 %v2891, %v2607
    %v2893 = vadd.f32 %v2892, %v2608
    %v2894 = vadd.f32 %v2893, %v2609
    %v2895 = vadd.f32 %v2894, %v2610
    %v2896 = vadd.f32 %v2895, %v2611
    %v2897 = vadd.f32 %v2896, %v2612
    %v2898 = vadd.f32 %v2897, %v2613
    %v2899 = vadd.f32 %v2898, %v2614
    %v2900 = vadd.f32 %v2899, %v2615
    %v2901 = vadd.f32 %v2900, %v2616
    %v2902 = vadd.f32 %v2901, %v2617
    %v2903 = vadd.f32 %v2902, %v2618
    %v2904 = vadd.f32 %v2903, %v2619
    %v2905 = vadd.f32 %v2904, %v2620
    %v2906 = vadd.f32 %v2905, %v2621
    %v2907 = vadd.f32 %v2906, %v2622
    %v2908 = vadd.f32 %v2907, %v2623
    %v2909 = vadd.f32 %v2908, %v2624
    %v2910 = vadd.f32 %v2909, %v2625
    %v2911 = vadd.f32 %v2910, %v2626
    %v2912 = vadd.f32 %v2911, %v2627
    %v2913 = vadd.f32 %v2912, %v2628
    %v2914 = vadd.f32 %v2913, %v2629
    %v2915 = vadd.f32 %v2914, %v2630
    %v2916 = vrot.slane %v2915, 4
    %v2917 = vadd.f32 %v2915, %v2916
    %v2918 = vrot.slane %v2917, 2
    %v2919 = vadd.f32 %v2917, %v2918
    %v2920 = vrot.slane %v2919, 1
    %v2921 = vadd.f32 %v2919, %v2920
    %v2922 = vadd.f32 %v2631, %v2632
    %v2923 = vadd.f32 %v2922, %v2633
    %v2924 = vadd.f32 %v2923, %v2634
    %v2925 = vadd.f32 %v2924, %v2635
    %v2926 = vadd.f32 %v2925, %v2636
    %v2927 = vadd.f32 %v2926, %v2637
    %v2928 = vadd.f32 %v2927, %v2638
    %v2929 = vadd.f32 %v2928, %v2639
    %v2930 = vadd.f32 %v2929, %v2640
    %v2931 = vadd.f32 %v2930, %v2641
    %v2932 = vadd.f32 %v2931, %v2642
    %v2933 = vadd.f32 %v2932, %v2643
    %v2934 = vadd.f32 %v2933, %v2644
    %v2935 = vadd.f32 %v2934, %v2645
    %v2936 = vadd.f32 %v2935, %v2646
    %v2937 = vadd.f32 %v2936, %v2647
    %v2938 = vadd.f32 %v2937, %v2648
    %v2939 = vadd.f32 %v2938, %v2649
    %v2940 = vadd.f32 %v2939, %v2650
    %v2941 = vadd.f32 %v2940, %v2651
    %v2942 = vadd.f32 %v2941, %v2652
    %v2943 = vadd.f32 %v2942, %v2653
    %v2944 = vadd.f32 %v2943, %v2654
    %v2945 = vadd.f32 %v2944, %v2655
    %v2946 = vadd.f32 %v2945, %v2656
    %v2947 = vadd.f32 %v2946, %v2657
    %v2948 = vadd.f32 %v2947, %v2658
    %v2949 = vadd.f32 %v2948, %v2659
    %v2950 = vadd.f32 %v2949, %v2660
    %v2951 = vadd.f32 %v2950, %v2661
    %v2952 = vadd.f32 %v2951, %v2662
    %v2953 = vrot.slane %v2952, 4
    %v2954 = vadd.f32 %v2952, %v2953
    %v2955 = vrot.slane %v2954, 2
    %v2956 = vadd.f32 %v2954, %v2955
    %v2957 = vrot.slane %v2956, 1
    %v2958 = vadd.f32 %v2956, %v2957
    %v2959 = vpack.c.bf16 %v2699, %v2699
    %v2960 = vpack.c.bf16 %v2736, %v2736
    %v2961 = vpack.c.bf16 %v2773, %v2773
    %v2962 = vpack.c.bf16 %v2810, %v2810
    %v2963 = vpack.c.bf16 %v2847, %v2847
    %v2964 = vpack.c.bf16 %v2884, %v2884
    %v2965 = vpack.c.bf16 %v2921, %v2921
    %v2966 = vpack.c.bf16 %v2958, %v2958
    %v2967 = vld [vmem:[%s4] sm:$0xff]
    %v2968 = vld [vmem:[%s4 + $0x8] sm:$0xff]
    %v2969 = vld [vmem:[%s4 + $0x10] sm:$0xff]
    %v2970 = vld [vmem:[%s4 + $0x18] sm:$0xff]
    %v2971 = vld [vmem:[%s4 + $0x20] sm:$0xff]
    %v2972 = vld [vmem:[%s4 + $0x28] sm:$0xff]
    %v2973 = vld [vmem:[%s4 + $0x30] sm:$0xff]
    %v2974 = vld [vmem:[%s4 + $0x38] sm:$0xff]
    %v2975 = vld [vmem:[%s4 + $0x40] sm:$0xff]
    %v2976 = vld [vmem:[%s4 + $0x48] sm:$0xff]
    %v2977 = vld [vmem:[%s4 + $0x50] sm:$0xff]
    %v2978 = vld [vmem:[%s4 + $0x58] sm:$0xff]
    %v2979 = vld [vmem:[%s4 + $0x60] sm:$0xff]
    %v2980 = vld [vmem:[%s4 + $0x68] sm:$0xff]
    %v2981 = vld [vmem:[%s4 + $0x70] sm:$0xff]
    %v2982 = vld [vmem:[%s4 + $0x78] sm:$0xff]
    %v2983 = vld [vmem:[%s4 + $0x80] sm:$0xff]
    %v2984 = vld [vmem:[%s4 + $0x88] sm:$0xff]
    %v2985 = vld [vmem:[%s4 + $0x90] sm:$0xff]
    %v2986 = vld [vmem:[%s4 + $0x98] sm:$0xff]
    %v2987 = vld [vmem:[%s4 + $0xa0] sm:$0xff]
    %v2988 = vld [vmem:[%s4 + $0xa8] sm:$0xff]
    %v2989 = vld [vmem:[%s4 + $0xb0] sm:$0xff]
    %v2990 = vld [vmem:[%s4 + $0xb8] sm:$0xff]
    %v2991 = vld [vmem:[%s4 + $0xc0] sm:$0xff]
    %v2992 = vld [vmem:[%s4 + $0xc8] sm:$0xff]
    %v2993 = vld [vmem:[%s4 + $0xd0] sm:$0xff]
    %v2994 = vld [vmem:[%s4 + $0xd8] sm:$0xff]
    %v2995 = vld [vmem:[%s4 + $0xe0] sm:$0xff]
    %v2996 = vld [vmem:[%s4 + $0xe8] sm:$0xff]
    %v2997 = vld [vmem:[%s4 + $0xf0] sm:$0xff]
    %v2998 = vld [vmem:[%s4 + $0xf8] sm:$0xff]
    %v2999 = vld [vmem:[%s5] sm:$0xf]
    %v3001 = vlaneseq
    %v3002 = vshrl.u32 %v3001, 7
    %v3003 = vsub.s32 0, %v3002
    %v3004 = vrot.slane %v2999, %v3003
    %v3005 = vlaneseq
    %v3006 = vshrl.u32 %v3005, 7
    %v3007 = vsub.s32 1, %v3006
    %v3008 = vrot.slane %v2999, %v3007
    %v3009 = vlaneseq
    %v3010 = vshrl.u32 %v3009, 7
    %v3011 = vsub.s32 2, %v3010
    %v3012 = vrot.slane %v2999, %v3011
    %v3013 = vlaneseq
    %v3014 = vshrl.u32 %v3013, 7
    %v3015 = vsub.s32 3, %v3014
    %v3016 = vrot.slane %v2999, %v3015
    %v3029 = vunpack.c.l.b16 %v2959
    %v3030 = vunpack.c.l.b16 %v2960
    %v3031 = vunpack.c.l.b16 %v2961
    %v3032 = vunpack.c.l.b16 %v2962
    %v3033 = vunpack.c.l.b16 %v2963
    %v3034 = vunpack.c.l.b16 %v2964
    %v3035 = vunpack.c.l.b16 %v2965
    %v3036 = vunpack.c.l.b16 %v2966
    %vm3037 = vcmask 1041409
    %v3038 = vsel %vm3037, %v3030, %v3029
    %vm3039 = vcmask 1042434
    %v3040 = vsel %vm3039, %v3031, %v3038
    %vm3041 = vcmask 1043459
    %v3042 = vsel %vm3041, %v3032, %v3040
    %vm3043 = vcmask 1044484
    %v3044 = vsel %vm3043, %v3033, %v3042
    %vm3045 = vcmask 1045509
    %v3046 = vsel %vm3045, %v3034, %v3044
    %vm3047 = vcmask 1046534
    %v3048 = vsel %vm3047, %v3035, %v3046
    %vm3049 = vcmask 1047559
    %v3050 = vsel %vm3049, %v3036, %v3048
    %v3051 = vpack.c.b16 %v3050, %v3050
    %v3085 = vunpack.c.l.b16 %v2967
    %v3086 = vunpack.c.h.b16 %v2967
    %v3087 = vunpack.c.l.b16 %v2968
    %v3088 = vunpack.c.h.b16 %v2968
    %v3089 = vunpack.c.l.b16 %v2969
    %v3090 = vunpack.c.h.b16 %v2969
    %v3091 = vunpack.c.l.b16 %v2970
    %v3092 = vunpack.c.h.b16 %v2970
    %v3093 = vunpack.c.l.b16 %v2971
    %v3094 = vunpack.c.h.b16 %v2971
    %v3095 = vunpack.c.l.b16 %v2972
    %v3096 = vunpack.c.h.b16 %v2972
    %v3097 = vunpack.c.l.b16 %v2973
    %v3098 = vunpack.c.h.b16 %v2973
    %v3099 = vunpack.c.l.b16 %v2974
    %v3100 = vunpack.c.h.b16 %v2974
    %v3101 = vunpack.c.l.b16 %v2975
    %v3102 = vunpack.c.h.b16 %v2975
    %v3103 = vunpack.c.l.b16 %v2976
    %v3104 = vunpack.c.h.b16 %v2976
    %v3105 = vunpack.c.l.b16 %v2977
    %v3106 = vunpack.c.h.b16 %v2977
    %v3107 = vunpack.c.l.b16 %v2978
    %v3108 = vunpack.c.h.b16 %v2978
    %v3109 = vunpack.c.l.b16 %v2979
    %v3110 = vunpack.c.h.b16 %v2979
    %v3111 = vunpack.c.l.b16 %v2980
    %v3112 = vunpack.c.h.b16 %v2980
    %v3113 = vunpack.c.l.b16 %v2981
    %v3114 = vunpack.c.h.b16 %v2981
    %v3115 = vunpack.c.l.b16 %v2982
    %v3116 = vunpack.c.h.b16 %v2982
    %v3117 = vunpack.c.l.b16 %v2983
    %v3118 = vunpack.c.h.b16 %v2983
    %v3119 = vunpack.c.l.b16 %v2984
    %v3120 = vunpack.c.h.b16 %v2984
    %v3121 = vunpack.c.l.b16 %v2985
    %v3122 = vunpack.c.h.b16 %v2985
    %v3123 = vunpack.c.l.b16 %v2986
    %v3124 = vunpack.c.h.b16 %v2986
    %v3125 = vunpack.c.l.b16 %v2987
    %v3126 = vunpack.c.h.b16 %v2987
    %v3127 = vunpack.c.l.b16 %v2988
    %v3128 = vunpack.c.h.b16 %v2988
    %v3129 = vunpack.c.l.b16 %v2989
    %v3130 = vunpack.c.h.b16 %v2989
    %v3131 = vunpack.c.l.b16 %v2990
    %v3132 = vunpack.c.h.b16 %v2990
    %v3133 = vunpack.c.l.b16 %v2991
    %v3134 = vunpack.c.h.b16 %v2991
    %v3135 = vunpack.c.l.b16 %v2992
    %v3136 = vunpack.c.h.b16 %v2992
    %v3137 = vunpack.c.l.b16 %v2993
    %v3138 = vunpack.c.h.b16 %v2993
    %v3139 = vunpack.c.l.b16 %v2994
    %v3140 = vunpack.c.h.b16 %v2994
    %v3141 = vunpack.c.l.b16 %v2995
    %v3142 = vunpack.c.h.b16 %v2995
    %v3143 = vunpack.c.l.b16 %v2996
    %v3144 = vunpack.c.h.b16 %v2996
    %v3145 = vunpack.c.l.b16 %v2997
    %v3146 = vunpack.c.h.b16 %v2997
    %v3147 = vunpack.c.l.b16 %v2998
    %v3148 = vunpack.c.h.b16 %v2998
    %v3149 = vpack.c.b16 %v3089, %v3085
    %v3150 = vpack.c.b16 %v3090, %v3086
    %v3151 = vpack.c.b16 %v3091, %v3087
    %v3152 = vpack.c.b16 %v3092, %v3088
    %v3153 = vpack.c.b16 %v3097, %v3093
    %v3154 = vpack.c.b16 %v3098, %v3094
    %v3155 = vpack.c.b16 %v3099, %v3095
    %v3156 = vpack.c.b16 %v3100, %v3096
    %v3157 = vpack.c.b16 %v3105, %v3101
    %v3158 = vpack.c.b16 %v3106, %v3102
    %v3159 = vpack.c.b16 %v3107, %v3103
    %v3160 = vpack.c.b16 %v3108, %v3104
    %v3161 = vpack.c.b16 %v3113, %v3109
    %v3162 = vpack.c.b16 %v3114, %v3110
    %v3163 = vpack.c.b16 %v3115, %v3111
    %v3164 = vpack.c.b16 %v3116, %v3112
    %v3165 = vpack.c.b16 %v3121, %v3117
    %v3166 = vpack.c.b16 %v3122, %v3118
    %v3167 = vpack.c.b16 %v3123, %v3119
    %v3168 = vpack.c.b16 %v3124, %v3120
    %v3169 = vpack.c.b16 %v3129, %v3125
    %v3170 = vpack.c.b16 %v3130, %v3126
    %v3171 = vpack.c.b16 %v3131, %v3127
    %v3172 = vpack.c.b16 %v3132, %v3128
    %v3173 = vpack.c.b16 %v3137, %v3133
    %v3174 = vpack.c.b16 %v3138, %v3134
    %v3175 = vpack.c.b16 %v3139, %v3135
    %v3176 = vpack.c.b16 %v3140, %v3136
    %v3177 = vpack.c.b16 %v3145, %v3141
    %v3178 = vpack.c.b16 %v3146, %v3142
    %v3179 = vpack.c.b16 %v3147, %v3143
    %v3180 = vpack.c.b16 %v3148, %v3144
    %3213 = vmatprep.subr.bf16.mxu0 %v3178
    %3214 = vmatpush1.bf16.msra.mxu0 %v3177
    %3215 = vmatprep.subr.bf16.mxu0 %v3174
    %3216 = vmatpush1.bf16.msra.mxu0 %v3173
    %3217 = vmatprep.subr.bf16.mxu0 %v3170
    %3218 = vmatpush1.bf16.msra.mxu0 %v3169
    %3219 = vmatprep.subr.bf16.mxu0 %v3166
    %3220 = vmatpush1.bf16.msra.mxu0 %v3165
    %3221 = vmatprep.subr.bf16.mxu0 %v3162
    %3222 = vmatpush1.bf16.msra.mxu0 %v3161
    %3223 = vmatprep.subr.bf16.mxu0 %v3158
    %3224 = vmatpush1.bf16.msra.mxu0 %v3157
    %3225 = vmatprep.subr.bf16.mxu0 %v3154
    %3226 = vmatpush1.bf16.msra.mxu0 %v3153
    %3227 = vmatprep.subr.bf16.mxu0 %v3150
    %3228 = vmatpush1.bf16.msra.mxu0 %v3149
    %3229 = vmatprep.subr.bf16.mxu0 0
    %3230 = vmatpush2.bf16.msra.mxu0 0
    %3231 = vmatprep.subr.bf16.mxu0 0
    %3232 = vmatpush2.bf16.msra.mxu0 0
    %3233 = vmatprep.subr.bf16.mxu0 0
    %3234 = vmatpush2.bf16.msra.mxu0 0
    %3235 = vmatprep.subr.bf16.mxu0 0
    %3236 = vmatpush2.bf16.msra.mxu0 0
    %3237 = vmatprep.subr.bf16.mxu0 0
    %3238 = vmatpush2.bf16.msra.mxu0 0
    %3239 = vmatprep.subr.bf16.mxu0 0
    %3240 = vmatpush2.bf16.msra.mxu0 0
    %3241 = vmatprep.subr.bf16.mxu0 0
    %3242 = vmatpush2.bf16.msra.mxu0 0
    %3243 = vmatprep.subr.bf16.mxu0 0
    %3244 = vmatpush2.bf16.msra.mxu0 0
    %3245 = vmatprep.mubr.bf16.mxu0 0
    %3246 = vmatmul.mubr.bf16.gmra.mxu0 %v3051
    %v3247 = vpop.f32.mrf.mxu0
    %v3248 = vadd.f32 %v3004, %v3247
    %v3249 = vpop.f32.mrf.mxu0
    %v3250 = vadd.f32 %v3008, %v3249
    %v3251 = vpop.f32.mrf.mxu0
    %v3252 = vpop.f32.mrf.mxu0
    %3253 = vdwg.mxu0
    %3254 = vmatprep.subr.bf16.mxu0 %v3180
    %3255 = vmatpush1.bf16.msra.mxu0 %v3179
    %3256 = vmatprep.subr.bf16.mxu0 %v3176
    %3257 = vmatpush1.bf16.msra.mxu0 %v3175
    %3258 = vmatprep.subr.bf16.mxu0 %v3172
    %3259 = vmatpush1.bf16.msra.mxu0 %v3171
    %3260 = vmatprep.subr.bf16.mxu0 %v3168
    %3261 = vmatpush1.bf16.msra.mxu0 %v3167
    %3262 = vmatprep.subr.bf16.mxu0 %v3164
    %3263 = vmatpush1.bf16.msra.mxu0 %v3163
    %3264 = vmatprep.subr.bf16.mxu0 %v3160
    %3265 = vmatpush1.bf16.msra.mxu0 %v3159
    %3266 = vmatprep.subr.bf16.mxu0 %v3156
    %3267 = vmatpush1.bf16.msra.mxu0 %v3155
    %3268 = vmatprep.subr.bf16.mxu0 %v3152
    %3269 = vmatpush1.bf16.msra.mxu0 %v3151
    %3270 = vmatprep.subr.bf16.mxu0 0
    %3271 = vmatpush2.bf16.msra.mxu0 0
    %3272 = vmatprep.subr.bf16.mxu0 0
    %3273 = vmatpush2.bf16.msra.mxu0 0
    %3274 = vmatprep.subr.bf16.mxu0 0
    %3275 = vmatpush2.bf16.msra.mxu0 0
    %3276 = vmatprep.subr.bf16.mxu0 0
    %3277 = vmatpush2.bf16.msra.mxu0 0
    %3278 = vmatprep.subr.bf16.mxu0 0
    %3279 = vmatpush2.bf16.msra.mxu0 0
    %3280 = vmatprep.subr.bf16.mxu0 0
    %3281 = vmatpush2.bf16.msra.mxu0 0
    %3282 = vmatprep.subr.bf16.mxu0 0
    %3283 = vmatpush2.bf16.msra.mxu0 0
    %3284 = vmatprep.subr.bf16.mxu0 0
    %3285 = vmatpush2.bf16.msra.mxu0 0
    %3286 = vmatprep.mubr.bf16.mxu0 0
    %3287 = vmatmul.mubr.bf16.gmra.mxu0 %v3051
    %v3288 = vpop.f32.mrf.mxu0
    %v3289 = vadd.f32 %v3012, %v3288
    %v3290 = vpop.f32.mrf.mxu0
    %v3291 = vadd.f32 %v3016, %v3290
    %v3292 = vpop.f32.mrf.mxu0
    %v3293 = vpop.f32.mrf.mxu0
    %3294 = vdwg.mxu0
    %v3295 = vld [vmem:[%s1] sm:$0xf]
    %v3296 = vld [vmem:[%s6] sm:$0xff]
    %v3297 = vld [vmem:[%s6 + $0x8] sm:$0xff]
    %v3298 = vld [vmem:[%s6 + $0x10] sm:$0xff]
    %v3299 = vld [vmem:[%s6 + $0x18] sm:$0xff]
    %v3300 = vld [vmem:[%s6 + $0x20] sm:$0xff]
    %v3301 = vld [vmem:[%s6 + $0x28] sm:$0xff]
    %v3302 = vld [vmem:[%s6 + $0x30] sm:$0xff]
    %v3303 = vld [vmem:[%s6 + $0x38] sm:$0xff]
    %v3304 = vld [vmem:[%s7] sm:$0xf]
    %v3306 = vlaneseq
    %v3307 = vshrl.u32 %v3306, 7
    %v3308 = vsub.s32 0, %v3307
    %v3309 = vrot.slane %v3304, %v3308
    %v3310 = vlaneseq
    %v3311 = vshrl.u32 %v3310, 7
    %v3312 = vsub.s32 1, %v3311
    %v3313 = vrot.slane %v3304, %v3312
    %v3314 = vlaneseq
    %v3315 = vshrl.u32 %v3314, 7
    %v3316 = vsub.s32 2, %v3315
    %v3317 = vrot.slane %v3304, %v3316
    %v3318 = vlaneseq
    %v3319 = vshrl.u32 %v3318, 7
    %v3320 = vsub.s32 3, %v3319
    %v3321 = vrot.slane %v3304, %v3320
    %v3334 = vunpack.c.l.b16 %v3296
    %v3335 = vunpack.c.h.b16 %v3296
    %v3336 = vunpack.c.l.b16 %v3297
    %v3337 = vunpack.c.h.b16 %v3297
    %v3338 = vunpack.c.l.b16 %v3298
    %v3339 = vunpack.c.h.b16 %v3298
    %v3340 = vunpack.c.l.b16 %v3299
    %v3341 = vunpack.c.h.b16 %v3299
    %v3342 = vunpack.c.l.b16 %v3300
    %v3343 = vunpack.c.h.b16 %v3300
    %v3344 = vunpack.c.l.b16 %v3301
    %v3345 = vunpack.c.h.b16 %v3301
    %v3346 = vunpack.c.l.b16 %v3302
    %v3347 = vunpack.c.h.b16 %v3302
    %v3348 = vunpack.c.l.b16 %v3303
    %v3349 = vunpack.c.h.b16 %v3303
    %v3350 = vpack.c.b16 %v3338, %v3334
    %v3351 = vpack.c.b16 %v3339, %v3335
    %v3352 = vpack.c.b16 %v3340, %v3336
    %v3353 = vpack.c.b16 %v3341, %v3337
    %v3354 = vpack.c.b16 %v3346, %v3342
    %v3355 = vpack.c.b16 %v3347, %v3343
    %v3356 = vpack.c.b16 %v3348, %v3344
    %v3357 = vpack.c.b16 %v3349, %v3345
    %vm3366 = vcmask 261120
    %v3368 = vsel %vm3366, %v3295, 0
    %3370 = vmatprep.subr.bf16.mxu0 0
    %3371 = vmatpush1.bf16.msra.mxu0 0
    %3372 = vmatprep.subr.bf16.mxu0 0
    %3373 = vmatpush1.bf16.msra.mxu0 0
    %3374 = vmatprep.subr.bf16.mxu0 0
    %3375 = vmatpush1.bf16.msra.mxu0 0
    %3376 = vmatprep.subr.bf16.mxu0 0
    %3377 = vmatpush1.bf16.msra.mxu0 0
    %3378 = vmatprep.subr.bf16.mxu0 0
    %3379 = vmatpush1.bf16.msra.mxu0 0
    %3380 = vmatprep.subr.bf16.mxu0 0
    %3381 = vmatpush1.bf16.msra.mxu0 0
    %3382 = vmatprep.subr.bf16.mxu0 %v3355
    %3383 = vmatpush1.bf16.msra.mxu0 %v3354
    %3384 = vmatprep.subr.bf16.mxu0 %v3351
    %3385 = vmatpush1.bf16.msra.mxu0 %v3350
    %3386 = vmatprep.subr.bf16.mxu0 0
    %3387 = vmatpush2.bf16.msra.mxu0 0
    %3388 = vmatprep.subr.bf16.mxu0 0
    %3389 = vmatpush2.bf16.msra.mxu0 0
    %3390 = vmatprep.subr.bf16.mxu0 0
    %3391 = vmatpush2.bf16.msra.mxu0 0
    %3392 = vmatprep.subr.bf16.mxu0 0
    %3393 = vmatpush2.bf16.msra.mxu0 0
    %3394 = vmatprep.subr.bf16.mxu0 0
    %3395 = vmatpush2.bf16.msra.mxu0 0
    %3396 = vmatprep.subr.bf16.mxu0 0
    %3397 = vmatpush2.bf16.msra.mxu0 0
    %3398 = vmatprep.subr.bf16.mxu0 0
    %3399 = vmatpush2.bf16.msra.mxu0 0
    %3400 = vmatprep.subr.bf16.mxu0 0
    %3401 = vmatpush2.bf16.msra.mxu0 0
    %3402 = vmatprep.mubr.bf16.mxu0 0
    %3403 = vmatmul.mubr.bf16.gmra.mxu0 %v3368
    %v3404 = vpop.f32.mrf.mxu0
    %v3405 = vadd.f32 %v3309, %v3404
    %v3406 = vpop.f32.mrf.mxu0
    %v3407 = vadd.f32 %v3313, %v3406
    %v3408 = vpop.f32.mrf.mxu0
    %v3409 = vpop.f32.mrf.mxu0
    %3410 = vdwg.mxu0
    %3411 = vmatprep.subr.bf16.mxu0 0
    %3412 = vmatpush1.bf16.msra.mxu0 0
    %3413 = vmatprep.subr.bf16.mxu0 0
    %3414 = vmatpush1.bf16.msra.mxu0 0
    %3415 = vmatprep.subr.bf16.mxu0 0
    %3416 = vmatpush1.bf16.msra.mxu0 0
    %3417 = vmatprep.subr.bf16.mxu0 0
    %3418 = vmatpush1.bf16.msra.mxu0 0
    %3419 = vmatprep.subr.bf16.mxu0 0
    %3420 = vmatpush1.bf16.msra.mxu0 0
    %3421 = vmatprep.subr.bf16.mxu0 0
    %3422 = vmatpush1.bf16.msra.mxu0 0
    %3423 = vmatprep.subr.bf16.mxu0 %v3357
    %3424 = vmatpush1.bf16.msra.mxu0 %v3356
    %3425 = vmatprep.subr.bf16.mxu0 %v3353
    %3426 = vmatpush1.bf16.msra.mxu0 %v3352
    %3427 = vmatprep.subr.bf16.mxu0 0
    %3428 = vmatpush2.bf16.msra.mxu0 0
    %3429 = vmatprep.subr.bf16.mxu0 0
    %3430 = vmatpush2.bf16.msra.mxu0 0
    %3431 = vmatprep.subr.bf16.mxu0 0
    %3432 = vmatpush2.bf16.msra.mxu0 0
    %3433 = vmatprep.subr.bf16.mxu0 0
    %3434 = vmatpush2.bf16.msra.mxu0 0
    %3435 = vmatprep.subr.bf16.mxu0 0
    %3436 = vmatpush2.bf16.msra.mxu0 0
    %3437 = vmatprep.subr.bf16.mxu0 0
    %3438 = vmatpush2.bf16.msra.mxu0 0
    %3439 = vmatprep.subr.bf16.mxu0 0
    %3440 = vmatpush2.bf16.msra.mxu0 0
    %3441 = vmatprep.subr.bf16.mxu0 0
    %3442 = vmatpush2.bf16.msra.mxu0 0
    %3443 = vmatprep.mubr.bf16.mxu0 0
    %3444 = vmatmul.mubr.bf16.gmra.mxu0 %v3368
    %v3445 = vpop.f32.mrf.mxu0
    %v3446 = vadd.f32 %v3317, %v3445
    %v3447 = vpop.f32.mrf.mxu0
    %v3448 = vadd.f32 %v3321, %v3447
    %v3449 = vpop.f32.mrf.mxu0
    %v3450 = vpop.f32.mrf.mxu0
    %3451 = vdwg.mxu0
    %v3452 = vpack.c.bf16 %v3248, %v3248
    %v3453 = vpack.c.bf16 %v3250, %v3250
    %v3454 = vpack.c.bf16 %v3289, %v3289
    %v3455 = vpack.c.bf16 %v3291, %v3291
    %v3456 = vld [vmem:[%s8] sm:$0xf]
    %v3457 = vld [vmem:[%s8 + $0x4] sm:$0xf]
    %v3458 = vld [vmem:[%s8 + $0x8] sm:$0xf]
    %v3459 = vld [vmem:[%s8 + $0xc] sm:$0xf]
    %v3460 = vld [vmem:[%s8 + $0x10] sm:$0xf]
    %v3461 = vld [vmem:[%s8 + $0x14] sm:$0xf]
    %v3462 = vld [vmem:[%s8 + $0x18] sm:$0xf]
    %v3463 = vld [vmem:[%s8 + $0x1c] sm:$0xf]
    %v3464 = vld [vmem:[%s8 + $0x20] sm:$0xf]
    %v3465 = vld [vmem:[%s8 + $0x24] sm:$0xf]
    %v3466 = vld [vmem:[%s8 + $0x28] sm:$0xf]
    %v3467 = vld [vmem:[%s8 + $0x2c] sm:$0xf]
    %v3468 = vld [vmem:[%s8 + $0x30] sm:$0xf]
    %v3469 = vld [vmem:[%s8 + $0x34] sm:$0xf]
    %v3470 = vld [vmem:[%s8 + $0x38] sm:$0xf]
    %v3471 = vld [vmem:[%s8 + $0x3c] sm:$0xf]
    %v3472 = vld [vmem:[%s8 + $0x40] sm:$0xf]
    %v3473 = vld [vmem:[%s8 + $0x44] sm:$0xf]
    %v3474 = vld [vmem:[%s8 + $0x48] sm:$0xf]
    %v3475 = vld [vmem:[%s8 + $0x4c] sm:$0xf]
    %v3476 = vld [vmem:[%s8 + $0x50] sm:$0xf]
    %v3477 = vld [vmem:[%s8 + $0x54] sm:$0xf]
    %v3478 = vld [vmem:[%s8 + $0x58] sm:$0xf]
    %v3479 = vld [vmem:[%s8 + $0x5c] sm:$0xf]
    %v3480 = vld [vmem:[%s8 + $0x60] sm:$0xf]
    %v3481 = vld [vmem:[%s8 + $0x64] sm:$0xf]
    %v3482 = vld [vmem:[%s8 + $0x68] sm:$0xf]
    %v3483 = vld [vmem:[%s8 + $0x6c] sm:$0xf]
    %v3484 = vld [vmem:[%s8 + $0x70] sm:$0xf]
    %v3485 = vld [vmem:[%s8 + $0x74] sm:$0xf]
    %v3486 = vld [vmem:[%s8 + $0x78] sm:$0xf]
    %v3487 = vld [vmem:[%s8 + $0x7c] sm:$0xf]
    %v3488 = vld [vmem:[%s8 + $0x80] sm:$0xf]
    %v3489 = vld [vmem:[%s8 + $0x84] sm:$0xf]
    %v3490 = vld [vmem:[%s8 + $0x88] sm:$0xf]
    %v3491 = vld [vmem:[%s8 + $0x8c] sm:$0xf]
    %v3492 = vld [vmem:[%s8 + $0x90] sm:$0xf]
    %v3493 = vld [vmem:[%s8 + $0x94] sm:$0xf]
    %v3494 = vld [vmem:[%s8 + $0x98] sm:$0xf]
    %v3495 = vld [vmem:[%s8 + $0x9c] sm:$0xf]
    %v3496 = vld [vmem:[%s8 + $0xa0] sm:$0xf]
    %v3497 = vld [vmem:[%s8 + $0xa4] sm:$0xf]
    %v3498 = vld [vmem:[%s8 + $0xa8] sm:$0xf]
    %v3499 = vld [vmem:[%s8 + $0xac] sm:$0xf]
    %v3500 = vld [vmem:[%s8 + $0xb0] sm:$0xf]
    %v3501 = vld [vmem:[%s8 + $0xb4] sm:$0xf]
    %v3502 = vld [vmem:[%s8 + $0xb8] sm:$0xf]
    %v3503 = vld [vmem:[%s8 + $0xbc] sm:$0xf]
    %v3504 = vld [vmem:[%s8 + $0xc0] sm:$0xf]
    %v3505 = vld [vmem:[%s8 + $0xc4] sm:$0xf]
    %v3506 = vld [vmem:[%s8 + $0xc8] sm:$0xf]
    %v3507 = vld [vmem:[%s8 + $0xcc] sm:$0xf]
    %v3508 = vld [vmem:[%s8 + $0xd0] sm:$0xf]
    %v3509 = vld [vmem:[%s8 + $0xd4] sm:$0xf]
    %v3510 = vld [vmem:[%s8 + $0xd8] sm:$0xf]
    %v3511 = vld [vmem:[%s8 + $0xdc] sm:$0xf]
    %v3512 = vld [vmem:[%s8 + $0xe0] sm:$0xf]
    %v3513 = vld [vmem:[%s8 + $0xe4] sm:$0xf]
    %v3514 = vld [vmem:[%s8 + $0xe8] sm:$0xf]
    %v3515 = vld [vmem:[%s8 + $0xec] sm:$0xf]
    %v3516 = vld [vmem:[%s8 + $0xf0] sm:$0xf]
    %v3517 = vld [vmem:[%s8 + $0xf4] sm:$0xf]
    %v3518 = vld [vmem:[%s8 + $0xf8] sm:$0xf]
    %v3519 = vld [vmem:[%s8 + $0xfc] sm:$0xf]
    %v3520 = vpack.c.bf16 %v3405, %v3405
    %v3521 = vpack.c.bf16 %v3407, %v3407
    %v3522 = vpack.c.bf16 %v3446, %v3446
    %v3523 = vpack.c.bf16 %v3448, %v3448
    %v3524 = vld [vmem:[%s9] sm:$0xf]
    %v3525 = vld [vmem:[%s9 + $0x4] sm:$0xf]
    %v3526 = vld [vmem:[%s9 + $0x8] sm:$0xf]
    %v3527 = vld [vmem:[%s9 + $0xc] sm:$0xf]
    %v3528 = vld [vmem:[%s9 + $0x10] sm:$0xf]
    %v3529 = vld [vmem:[%s9 + $0x14] sm:$0xf]
    %v3530 = vld [vmem:[%s9 + $0x18] sm:$0xf]
    %v3531 = vld [vmem:[%s9 + $0x1c] sm:$0xf]
    %v3532 = vld [vmem:[%s9 + $0x20] sm:$0xf]
    %v3533 = vld [vmem:[%s9 + $0x24] sm:$0xf]
    %v3534 = vld [vmem:[%s9 + $0x28] sm:$0xf]
    %v3535 = vld [vmem:[%s9 + $0x2c] sm:$0xf]
    %v3536 = vld [vmem:[%s9 + $0x30] sm:$0xf]
    %v3537 = vld [vmem:[%s9 + $0x34] sm:$0xf]
    %v3538 = vld [vmem:[%s9 + $0x38] sm:$0xf]
    %v3539 = vld [vmem:[%s9 + $0x3c] sm:$0xf]
    %v3540 = vld [vmem:[%s9 + $0x40] sm:$0xf]
    %v3541 = vld [vmem:[%s9 + $0x44] sm:$0xf]
    %v3542 = vld [vmem:[%s9 + $0x48] sm:$0xf]
    %v3543 = vld [vmem:[%s9 + $0x4c] sm:$0xf]
    %v3544 = vld [vmem:[%s9 + $0x50] sm:$0xf]
    %v3545 = vld [vmem:[%s9 + $0x54] sm:$0xf]
    %v3546 = vld [vmem:[%s9 + $0x58] sm:$0xf]
    %v3547 = vld [vmem:[%s9 + $0x5c] sm:$0xf]
    %v3548 = vld [vmem:[%s9 + $0x60] sm:$0xf]
    %v3549 = vld [vmem:[%s9 + $0x64] sm:$0xf]
    %v3550 = vld [vmem:[%s9 + $0x68] sm:$0xf]
    %v3551 = vld [vmem:[%s9 + $0x6c] sm:$0xf]
    %v3552 = vld [vmem:[%s9 + $0x70] sm:$0xf]
    %v3553 = vld [vmem:[%s9 + $0x74] sm:$0xf]
    %v3554 = vld [vmem:[%s9 + $0x78] sm:$0xf]
    %v3555 = vld [vmem:[%s9 + $0x7c] sm:$0xf]
    %v3556 = vld [vmem:[%s9 + $0x80] sm:$0xf]
    %v3557 = vld [vmem:[%s9 + $0x84] sm:$0xf]
    %v3558 = vld [vmem:[%s9 + $0x88] sm:$0xf]
    %v3559 = vld [vmem:[%s9 + $0x8c] sm:$0xf]
    %v3560 = vld [vmem:[%s9 + $0x90] sm:$0xf]
    %v3561 = vld [vmem:[%s9 + $0x94] sm:$0xf]
    %v3562 = vld [vmem:[%s9 + $0x98] sm:$0xf]
    %v3563 = vld [vmem:[%s9 + $0x9c] sm:$0xf]
    %v3564 = vld [vmem:[%s9 + $0xa0] sm:$0xf]
    %v3565 = vld [vmem:[%s9 + $0xa4] sm:$0xf]
    %v3566 = vld [vmem:[%s9 + $0xa8] sm:$0xf]
    %v3567 = vld [vmem:[%s9 + $0xac] sm:$0xf]
    %v3568 = vld [vmem:[%s9 + $0xb0] sm:$0xf]
    %v3569 = vld [vmem:[%s9 + $0xb4] sm:$0xf]
    %v3570 = vld [vmem:[%s9 + $0xb8] sm:$0xf]
    %v3571 = vld [vmem:[%s9 + $0xbc] sm:$0xf]
    %v3572 = vld [vmem:[%s9 + $0xc0] sm:$0xf]
    %v3573 = vld [vmem:[%s9 + $0xc4] sm:$0xf]
    %v3574 = vld [vmem:[%s9 + $0xc8] sm:$0xf]
    %v3575 = vld [vmem:[%s9 + $0xcc] sm:$0xf]
    %v3576 = vld [vmem:[%s9 + $0xd0] sm:$0xf]
    %v3577 = vld [vmem:[%s9 + $0xd4] sm:$0xf]
    %v3578 = vld [vmem:[%s9 + $0xd8] sm:$0xf]
    %v3579 = vld [vmem:[%s9 + $0xdc] sm:$0xf]
    %v3580 = vld [vmem:[%s9 + $0xe0] sm:$0xf]
    %v3581 = vld [vmem:[%s9 + $0xe4] sm:$0xf]
    %v3582 = vld [vmem:[%s9 + $0xe8] sm:$0xf]
    %v3583 = vld [vmem:[%s9 + $0xec] sm:$0xf]
    %v3584 = vld [vmem:[%s9 + $0xf0] sm:$0xf]
    %v3585 = vld [vmem:[%s9 + $0xf4] sm:$0xf]
    %v3586 = vld [vmem:[%s9 + $0xf8] sm:$0xf]
    %v3587 = vld [vmem:[%s9 + $0xfc] sm:$0xf]
    %v3652 = vunpack.c.l.b16 %v3524
    %v3653 = vunpack.c.l.b16 %v3525
    %v3654 = vunpack.c.l.b16 %v3526
    %v3655 = vunpack.c.l.b16 %v3527
    %v3656 = vunpack.c.l.b16 %v3528
    %v3657 = vunpack.c.l.b16 %v3529
    %v3658 = vunpack.c.l.b16 %v3530
    %v3659 = vunpack.c.l.b16 %v3531
    %v3660 = vunpack.c.l.b16 %v3532
    %v3661 = vunpack.c.l.b16 %v3533
    %v3662 = vunpack.c.l.b16 %v3534
    %v3663 = vunpack.c.l.b16 %v3535
    %v3664 = vunpack.c.l.b16 %v3536
    %v3665 = vunpack.c.l.b16 %v3537
    %v3666 = vunpack.c.l.b16 %v3538
    %v3667 = vunpack.c.l.b16 %v3539
    %v3668 = vunpack.c.l.b16 %v3540
    %v3669 = vunpack.c.l.b16 %v3541
    %v3670 = vunpack.c.l.b16 %v3542
    %v3671 = vunpack.c.l.b16 %v3543
    %v3672 = vunpack.c.l.b16 %v3544
    %v3673 = vunpack.c.l.b16 %v3545
    %v3674 = vunpack.c.l.b16 %v3546
    %v3675 = vunpack.c.l.b16 %v3547
    %v3676 = vunpack.c.l.b16 %v3548
    %v3677 = vunpack.c.l.b16 %v3549
    %v3678 = vunpack.c.l.b16 %v3550
    %v3679 = vunpack.c.l.b16 %v3551
    %v3680 = vunpack.c.l.b16 %v3552
    %v3681 = vunpack.c.l.b16 %v3553
    %v3682 = vunpack.c.l.b16 %v3554
    %v3683 = vunpack.c.l.b16 %v3555
    %v3684 = vunpack.c.l.b16 %v3556
    %v3685 = vunpack.c.l.b16 %v3557
    %v3686 = vunpack.c.l.b16 %v3558
    %v3687 = vunpack.c.l.b16 %v3559
    %v3688 = vunpack.c.l.b16 %v3560
    %v3689 = vunpack.c.l.b16 %v3561
    %v3690 = vunpack.c.l.b16 %v3562
    %v3691 = vunpack.c.l.b16 %v3563
    %v3692 = vunpack.c.l.b16 %v3564
    %v3693 = vunpack.c.l.b16 %v3565
    %v3694 = vunpack.c.l.b16 %v3566
    %v3695 = vunpack.c.l.b16 %v3567
    %v3696 = vunpack.c.l.b16 %v3568
    %v3697 = vunpack.c.l.b16 %v3569
    %v3698 = vunpack.c.l.b16 %v3570
    %v3699 = vunpack.c.l.b16 %v3571
    %v3700 = vunpack.c.l.b16 %v3572
    %v3701 = vunpack.c.l.b16 %v3573
    %v3702 = vunpack.c.l.b16 %v3574
    %v3703 = vunpack.c.l.b16 %v3575
    %v3704 = vunpack.c.l.b16 %v3576
    %v3705 = vunpack.c.l.b16 %v3577
    %v3706 = vunpack.c.l.b16 %v3578
    %v3707 = vunpack.c.l.b16 %v3579
    %v3708 = vunpack.c.l.b16 %v3580
    %v3709 = vunpack.c.l.b16 %v3581
    %v3710 = vunpack.c.l.b16 %v3582
    %v3711 = vunpack.c.l.b16 %v3583
    %v3712 = vunpack.c.l.b16 %v3584
    %v3713 = vunpack.c.l.b16 %v3585
    %v3714 = vunpack.c.l.b16 %v3586
    %v3715 = vunpack.c.l.b16 %v3587
    %v3716 = vpack.c.b16 %v3653, %v3652
    %v3717 = vpack.c.b16 %v3655, %v3654
    %v3718 = vpack.c.b16 %v3657, %v3656
    %v3719 = vpack.c.b16 %v3659, %v3658
    %v3720 = vpack.c.b16 %v3661, %v3660
    %v3721 = vpack.c.b16 %v3663, %v3662
    %v3722 = vpack.c.b16 %v3665, %v3664
    %v3723 = vpack.c.b16 %v3667, %v3666
    %v3724 = vpack.c.b16 %v3669, %v3668
    %v3725 = vpack.c.b16 %v3671, %v3670
    %v3726 = vpack.c.b16 %v3673, %v3672
    %v3727 = vpack.c.b16 %v3675, %v3674
    %v3728 = vpack.c.b16 %v3677, %v3676
    %v3729 = vpack.c.b16 %v3679, %v3678
    %v3730 = vpack.c.b16 %v3681, %v3680
    %v3731 = vpack.c.b16 %v3683, %v3682
    %v3732 = vpack.c.b16 %v3685, %v3684
    %v3733 = vpack.c.b16 %v3687, %v3686
    %v3734 = vpack.c.b16 %v3689, %v3688
    %v3735 = vpack.c.b16 %v3691, %v3690
    %v3736 = vpack.c.b16 %v3693, %v3692
    %v3737 = vpack.c.b16 %v3695, %v3694
    %v3738 = vpack.c.b16 %v3697, %v3696
    %v3739 = vpack.c.b16 %v3699, %v3698
    %v3740 = vpack.c.b16 %v3701, %v3700
    %v3741 = vpack.c.b16 %v3703, %v3702
    %v3742 = vpack.c.b16 %v3705, %v3704
    %v3743 = vpack.c.b16 %v3707, %v3706
    %v3744 = vpack.c.b16 %v3709, %v3708
    %v3745 = vpack.c.b16 %v3711, %v3710
    %v3746 = vpack.c.b16 %v3713, %v3712
    %v3747 = vpack.c.b16 %v3715, %v3714
    %3780 = vmatprep.subr.bf16.mxu0 0
    %3781 = vmatpush1.bf16.msra.mxu0 %v3723
    %3782 = vmatprep.subr.bf16.mxu0 0
    %3783 = vmatpush1.bf16.msra.mxu0 %v3722
    %3784 = vmatprep.subr.bf16.mxu0 0
    %3785 = vmatpush1.bf16.msra.mxu0 %v3721
    %3786 = vmatprep.subr.bf16.mxu0 0
    %3787 = vmatpush1.bf16.msra.mxu0 %v3720
    %3788 = vmatprep.subr.bf16.mxu0 0
    %3789 = vmatpush1.bf16.msra.mxu0 %v3719
    %3790 = vmatprep.subr.bf16.mxu0 0
    %3791 = vmatpush1.bf16.msra.mxu0 %v3718
    %3792 = vmatprep.subr.bf16.mxu0 0
    %3793 = vmatpush1.bf16.msra.mxu0 %v3717
    %3794 = vmatprep.subr.bf16.mxu0 0
    %3795 = vmatpush1.bf16.msra.mxu0 %v3716
    %3796 = vmatprep.subr.bf16.mxu0 0
    %3797 = vmatpush2.bf16.msra.mxu0 %v3731
    %3798 = vmatprep.subr.bf16.mxu0 0
    %3799 = vmatpush2.bf16.msra.mxu0 %v3730
    %3800 = vmatprep.subr.bf16.mxu0 0
    %3801 = vmatpush2.bf16.msra.mxu0 %v3729
    %3802 = vmatprep.subr.bf16.mxu0 0
    %3803 = vmatpush2.bf16.msra.mxu0 %v3728
    %3804 = vmatprep.subr.bf16.mxu0 0
    %3805 = vmatpush2.bf16.msra.mxu0 %v3727
    %3806 = vmatprep.subr.bf16.mxu0 0
    %3807 = vmatpush2.bf16.msra.mxu0 %v3726
    %3808 = vmatprep.subr.bf16.mxu0 0
    %3809 = vmatpush2.bf16.msra.mxu0 %v3725
    %3810 = vmatprep.subr.bf16.mxu0 0
    %3811 = vmatpush2.bf16.msra.mxu0 %v3724
    %3812 = vmatprep.mubr.bf16.mxu0 %v3521
    %3813 = vmatmul.mubr.bf16.gmra.mxu0 %v3520
    %v3814 = vpop.f32.mrf.mxu0
    %v3815 = vadd.f32 0.0, %v3814
    %v3816 = vpop.f32.mrf.mxu0
    %v3817 = vpop.f32.mrf.mxu0
    %v3818 = vpop.f32.mrf.mxu0
    %3819 = vdwg.mxu0
    %3820 = vmatprep.subr.bf16.mxu0 0
    %3821 = vmatpush1.bf16.msra.mxu0 %v3739
    %3822 = vmatprep.subr.bf16.mxu0 0
    %3823 = vmatpush1.bf16.msra.mxu0 %v3738
    %3824 = vmatprep.subr.bf16.mxu0 0
    %3825 = vmatpush1.bf16.msra.mxu0 %v3737
    %3826 = vmatprep.subr.bf16.mxu0 0
    %3827 = vmatpush1.bf16.msra.mxu0 %v3736
    %3828 = vmatprep.subr.bf16.mxu0 0
    %3829 = vmatpush1.bf16.msra.mxu0 %v3735
    %3830 = vmatprep.subr.bf16.mxu0 0
    %3831 = vmatpush1.bf16.msra.mxu0 %v3734
    %3832 = vmatprep.subr.bf16.mxu0 0
    %3833 = vmatpush1.bf16.msra.mxu0 %v3733
    %3834 = vmatprep.subr.bf16.mxu0 0
    %3835 = vmatpush1.bf16.msra.mxu0 %v3732
    %3836 = vmatprep.subr.bf16.mxu0 0
    %3837 = vmatpush2.bf16.msra.mxu0 %v3747
    %3838 = vmatprep.subr.bf16.mxu0 0
    %3839 = vmatpush2.bf16.msra.mxu0 %v3746
    %3840 = vmatprep.subr.bf16.mxu0 0
    %3841 = vmatpush2.bf16.msra.mxu0 %v3745
    %3842 = vmatprep.subr.bf16.mxu0 0
    %3843 = vmatpush2.bf16.msra.mxu0 %v3744
    %3844 = vmatprep.subr.bf16.mxu0 0
    %3845 = vmatpush2.bf16.msra.mxu0 %v3743
    %3846 = vmatprep.subr.bf16.mxu0 0
    %3847 = vmatpush2.bf16.msra.mxu0 %v3742
    %3848 = vmatprep.subr.bf16.mxu0 0
    %3849 = vmatpush2.bf16.msra.mxu0 %v3741
    %3850 = vmatprep.subr.bf16.mxu0 0
    %3851 = vmatpush2.bf16.msra.mxu0 %v3740
    %3852 = vmatprep.mubr.bf16.mxu0 %v3523
    %3853 = vmatmul.mubr.bf16.gmra.mxu0 %v3522
    %v3854 = vpop.f32.mrf.mxu0
    %v3855 = vadd.f32 %v3815, %v3854
    %v3856 = vpop.f32.mrf.mxu0
    %v3857 = vpop.f32.mrf.mxu0
    %v3858 = vpop.f32.mrf.mxu0
    %3859 = vdwg.mxu0
    %v3924 = vunpack.c.l.b16 %v3456
    %v3925 = vunpack.c.l.b16 %v3457
    %v3926 = vunpack.c.l.b16 %v3458
    %v3927 = vunpack.c.l.b16 %v3459
    %v3928 = vunpack.c.l.b16 %v3460
    %v3929 = vunpack.c.l.b16 %v3461
    %v3930 = vunpack.c.l.b16 %v3462
    %v3931 = vunpack.c.l.b16 %v3463
    %v3932 = vunpack.c.l.b16 %v3464
    %v3933 = vunpack.c.l.b16 %v3465
    %v3934 = vunpack.c.l.b16 %v3466
    %v3935 = vunpack.c.l.b16 %v3467
    %v3936 = vunpack.c.l.b16 %v3468
    %v3937 = vunpack.c.l.b16 %v3469
    %v3938 = vunpack.c.l.b16 %v3470
    %v3939 = vunpack.c.l.b16 %v3471
    %v3940 = vunpack.c.l.b16 %v3472
    %v3941 = vunpack.c.l.b16 %v3473
    %v3942 = vunpack.c.l.b16 %v3474
    %v3943 = vunpack.c.l.b16 %v3475
    %v3944 = vunpack.c.l.b16 %v3476
    %v3945 = vunpack.c.l.b16 %v3477
    %v3946 = vunpack.c.l.b16 %v3478
    %v3947 = vunpack.c.l.b16 %v3479
    %v3948 = vunpack.c.l.b16 %v3480
    %v3949 = vunpack.c.l.b16 %v3481
    %v3950 = vunpack.c.l.b16 %v3482
    %v3951 = vunpack.c.l.b16 %v3483
    %v3952 = vunpack.c.l.b16 %v3484
    %v3953 = vunpack.c.l.b16 %v3485
    %v3954 = vunpack.c.l.b16 %v3486
    %v3955 = vunpack.c.l.b16 %v3487
    %v3956 = vunpack.c.l.b16 %v3488
    %v3957 = vunpack.c.l.b16 %v3489
    %v3958 = vunpack.c.l.b16 %v3490
    %v3959 = vunpack.c.l.b16 %v3491
    %v3960 = vunpack.c.l.b16 %v3492
    %v3961 = vunpack.c.l.b16 %v3493
    %v3962 = vunpack.c.l.b16 %v3494
    %v3963 = vunpack.c.l.b16 %v3495
    %v3964 = vunpack.c.l.b16 %v3496
    %v3965 = vunpack.c.l.b16 %v3497
    %v3966 = vunpack.c.l.b16 %v3498
    %v3967 = vunpack.c.l.b16 %v3499
    %v3968 = vunpack.c.l.b16 %v3500
    %v3969 = vunpack.c.l.b16 %v3501
    %v3970 = vunpack.c.l.b16 %v3502
    %v3971 = vunpack.c.l.b16 %v3503
    %v3972 = vunpack.c.l.b16 %v3504
    %v3973 = vunpack.c.l.b16 %v3505
    %v3974 = vunpack.c.l.b16 %v3506
    %v3975 = vunpack.c.l.b16 %v3507
    %v3976 = vunpack.c.l.b16 %v3508
    %v3977 = vunpack.c.l.b16 %v3509
    %v3978 = vunpack.c.l.b16 %v3510
    %v3979 = vunpack.c.l.b16 %v3511
    %v3980 = vunpack.c.l.b16 %v3512
    %v3981 = vunpack.c.l.b16 %v3513
    %v3982 = vunpack.c.l.b16 %v3514
    %v3983 = vunpack.c.l.b16 %v3515
    %v3984 = vunpack.c.l.b16 %v3516
    %v3985 = vunpack.c.l.b16 %v3517
    %v3986 = vunpack.c.l.b16 %v3518
    %v3987 = vunpack.c.l.b16 %v3519
    %v3988 = vpack.c.b16 %v3925, %v3924
    %v3989 = vpack.c.b16 %v3927, %v3926
    %v3990 = vpack.c.b16 %v3929, %v3928
    %v3991 = vpack.c.b16 %v3931, %v3930
    %v3992 = vpack.c.b16 %v3933, %v3932
    %v3993 = vpack.c.b16 %v3935, %v3934
    %v3994 = vpack.c.b16 %v3937, %v3936
    %v3995 = vpack.c.b16 %v3939, %v3938
    %v3996 = vpack.c.b16 %v3941, %v3940
    %v3997 = vpack.c.b16 %v3943, %v3942
    %v3998 = vpack.c.b16 %v3945, %v3944
    %v3999 = vpack.c.b16 %v3947, %v3946
    %v4000 = vpack.c.b16 %v3949, %v3948
    %v4001 = vpack.c.b16 %v3951, %v3950
    %v4002 = vpack.c.b16 %v3953, %v3952
    %v4003 = vpack.c.b16 %v3955, %v3954
    %v4004 = vpack.c.b16 %v3957, %v3956
    %v4005 = vpack.c.b16 %v3959, %v3958
    %v4006 = vpack.c.b16 %v3961, %v3960
    %v4007 = vpack.c.b16 %v3963, %v3962
    %v4008 = vpack.c.b16 %v3965, %v3964
    %v4009 = vpack.c.b16 %v3967, %v3966
    %v4010 = vpack.c.b16 %v3969, %v3968
    %v4011 = vpack.c.b16 %v3971, %v3970
    %v4012 = vpack.c.b16 %v3973, %v3972
    %v4013 = vpack.c.b16 %v3975, %v3974
    %v4014 = vpack.c.b16 %v3977, %v3976
    %v4015 = vpack.c.b16 %v3979, %v3978
    %v4016 = vpack.c.b16 %v3981, %v3980
    %v4017 = vpack.c.b16 %v3983, %v3982
    %v4018 = vpack.c.b16 %v3985, %v3984
    %v4019 = vpack.c.b16 %v3987, %v3986
    %4052 = vmatprep.subr.bf16.mxu0 0
    %4053 = vmatpush1.bf16.msra.mxu0 %v3995
    %4054 = vmatprep.subr.bf16.mxu0 0
    %4055 = vmatpush1.bf16.msra.mxu0 %v3994
    %4056 = vmatprep.subr.bf16.mxu0 0
    %4057 = vmatpush1.bf16.msra.mxu0 %v3993
    %4058 = vmatprep.subr.bf16.mxu0 0
    %4059 = vmatpush1.bf16.msra.mxu0 %v3992
    %4060 = vmatprep.subr.bf16.mxu0 0
    %4061 = vmatpush1.bf16.msra.mxu0 %v3991
    %4062 = vmatprep.subr.bf16.mxu0 0
    %4063 = vmatpush1.bf16.msra.mxu0 %v3990
    %4064 = vmatprep.subr.bf16.mxu0 0
    %4065 = vmatpush1.bf16.msra.mxu0 %v3989
    %4066 = vmatprep.subr.bf16.mxu0 0
    %4067 = vmatpush1.bf16.msra.mxu0 %v3988
    %4068 = vmatprep.subr.bf16.mxu0 0
    %4069 = vmatpush2.bf16.msra.mxu0 %v4003
    %4070 = vmatprep.subr.bf16.mxu0 0
    %4071 = vmatpush2.bf16.msra.mxu0 %v4002
    %4072 = vmatprep.subr.bf16.mxu0 0
    %4073 = vmatpush2.bf16.msra.mxu0 %v4001
    %4074 = vmatprep.subr.bf16.mxu0 0
    %4075 = vmatpush2.bf16.msra.mxu0 %v4000
    %4076 = vmatprep.subr.bf16.mxu0 0
    %4077 = vmatpush2.bf16.msra.mxu0 %v3999
    %4078 = vmatprep.subr.bf16.mxu0 0
    %4079 = vmatpush2.bf16.msra.mxu0 %v3998
    %4080 = vmatprep.subr.bf16.mxu0 0
    %4081 = vmatpush2.bf16.msra.mxu0 %v3997
    %4082 = vmatprep.subr.bf16.mxu0 0
    %4083 = vmatpush2.bf16.msra.mxu0 %v3996
    %4084 = vmatprep.mubr.bf16.mxu0 %v3453
    %4085 = vmatmul.mubr.bf16.gmra.mxu0 %v3452
    %v4086 = vpop.f32.mrf.mxu0
    %v4087 = vadd.f32 %v3855, %v4086
    %v4088 = vpop.f32.mrf.mxu0
    %v4089 = vpop.f32.mrf.mxu0
    %v4090 = vpop.f32.mrf.mxu0
    %4091 = vdwg.mxu0
    %4092 = vmatprep.subr.bf16.mxu0 0
    %4093 = vmatpush1.bf16.msra.mxu0 %v4011
    %4094 = vmatprep.subr.bf16.mxu0 0
    %4095 = vmatpush1.bf16.msra.mxu0 %v4010
    %4096 = vmatprep.subr.bf16.mxu0 0
    %4097 = vmatpush1.bf16.msra.mxu0 %v4009
    %4098 = vmatprep.subr.bf16.mxu0 0
    %4099 = vmatpush1.bf16.msra.mxu0 %v4008
    %4100 = vmatprep.subr.bf16.mxu0 0
    %4101 = vmatpush1.bf16.msra.mxu0 %v4007
    %4102 = vmatprep.subr.bf16.mxu0 0
    %4103 = vmatpush1.bf16.msra.mxu0 %v4006
    %4104 = vmatprep.subr.bf16.mxu0 0
    %4105 = vmatpush1.bf16.msra.mxu0 %v4005
    %4106 = vmatprep.subr.bf16.mxu0 0
    %4107 = vmatpush1.bf16.msra.mxu0 %v4004
    %4108 = vmatprep.subr.bf16.mxu0 0
    %4109 = vmatpush2.bf16.msra.mxu0 %v4019
    %4110 = vmatprep.subr.bf16.mxu0 0
    %4111 = vmatpush2.bf16.msra.mxu0 %v4018
    %4112 = vmatprep.subr.bf16.mxu0 0
    %4113 = vmatpush2.bf16.msra.mxu0 %v4017
    %4114 = vmatprep.subr.bf16.mxu0 0
    %4115 = vmatpush2.bf16.msra.mxu0 %v4016
    %4116 = vmatprep.subr.bf16.mxu0 0
    %4117 = vmatpush2.bf16.msra.mxu0 %v4015
    %4118 = vmatprep.subr.bf16.mxu0 0
    %4119 = vmatpush2.bf16.msra.mxu0 %v4014
    %4120 = vmatprep.subr.bf16.mxu0 0
    %4121 = vmatpush2.bf16.msra.mxu0 %v4013
    %4122 = vmatprep.subr.bf16.mxu0 0
    %4123 = vmatpush2.bf16.msra.mxu0 %v4012
    %4124 = vmatprep.mubr.bf16.mxu0 %v3455
    %4125 = vmatmul.mubr.bf16.gmra.mxu0 %v3454
    %v4126 = vpop.f32.mrf.mxu0
    %v4127 = vadd.f32 %v4087, %v4126
    %v4128 = vpop.f32.mrf.mxu0
    %v4129 = vpop.f32.mrf.mxu0
    %v4130 = vpop.f32.mrf.mxu0
    %4131 = vdwg.mxu0
    %v4132 = vld [vmem:[%s10] sm:$0x1]
    %v4134 = vlaneseq
    %v4135 = vshrl.u32 %v4134, 7
    %v4136 = vsub.s32 0, %v4135
    %v4137 = vrot.slane %v4132, %v4136
    %v4139 = vadd.f32 %v4127, %v4137
    %4140 = vst [vmem:[#allocation2] sm:$0xff] %v4139
    // Predicated region
    $region46: #{tpu_custom_call.1} parent=1 // pred_check
      _
    $region47: #{tpu_custom_call.1} parent=1 // pred_check_branch
      %4142 = sbr.rel (0) target = $region49
    $region48: #{tpu_custom_call.1} parent=1 // pred_region
      %s4144 = ssub.s32 128, 128
      %4145 = vsyncadd [#allocation3], %s4144
      %s4147 = sshll.u32 [#allocation2], 4
      %s4148 = int_to_ptr.vmem [resolvable:$true] %s4147
      %4150 = dma.vmem_to_hbm [thread:$0]  %s4148, 128, %s11, [#allocation3]
    $region49: #{tpu_custom_call.1} parent=1 // pred_fallthru
      _
    // Predicated region
    $region50: #{tpu_custom_call.1} parent=1 // pred_check
      _
    $region51: #{tpu_custom_call.1} parent=1 // pred_check_branch
      %4152 = sbr.rel (0) target = $region53
    $region52: #{tpu_custom_call.1} parent=1 // pred_region
      %4153 = dma.done [#allocation3], 128
    $region53: #{tpu_custom_call.1} parent=1 // pred_fallthru
      _
    %4154 = vsyncpa [#allocation3], 1

</llo_original>
